<compile_context>
chip_gen: v7x
topology: tpu7x:2x2x1
jax: 0.10.0
libtpu: 0.0.40
codegen_flags: <defaults>
</compile_context>

<pallas_src>
import math
import functools
import numpy as np
import jax
import jax.numpy as jnp
from jax.experimental import pallas as pl
from jax.experimental.pallas import tpu as pltpu

# ------------------------- configuration (small synthetic shapes) -------------------------
BATCH        = 2      # args.batch_size
N_CHANNELS   = 4      # args.n_channels
LENGTH       = 16     # signal length (divisible by patch size)
PATCH_SIZE   = 8      # args.patch_size
LATENT       = 32     # args.latent_size
NUM_HEADS    = 4      # args.num_heads
NUM_ENCODERS = 2      # args.num_encoders
NUM_CLASSES  = 10     # args.num_classes
HEAD_DIM     = LATENT // NUM_HEADS
NUM_PATCHES  = LENGTH // PATCH_SIZE
SEQ          = NUM_PATCHES + 1          # class token prepended

# Head-selector matrix: HSEL[h*D + d, h] = 1.  (q*k) @ HSEL performs the per-head
# reduction over D; p @ HSEL.T broadcasts per-head probabilities back across D lanes.
_hsel_np = np.zeros((LATENT, NUM_HEADS), dtype=np.float32)
for _h in range(NUM_HEADS):
    _hsel_np[_h * HEAD_DIM:(_h + 1) * HEAD_DIM, _h] = 1.0
HEAD_SEL   = jnp.asarray(_hsel_np)           # (L, H)
HEAD_SEL_T = jnp.asarray(_hsel_np.T.copy())  # (H, L)


# ------------------------------------ fused ViT kernel ------------------------------------

def _vit_kernel(patch_ref, emb_w_ref, emb_b_ref, cls_ref, pos_ref,
                enc_nw_ref, enc_nb_ref, enc_wqkv_ref, enc_bqkv_ref,
                enc_wo_ref, enc_bo_ref, enc_w1_ref, enc_b1_ref,
                enc_w2_ref, enc_b2_ref,
                head_nw_ref, head_nb_ref, head_w1_ref, head_b1_ref,
                head_w2_ref, head_b2_ref,
                hsel_ref, hselT_ref,
                o_ref, *, B, S, L, D, E):
    """Entire ViT forward: embedding -> E encoder blocks -> class token -> MLP head."""
    n = S - 1

    # --- InputEmbedding: linear patch projection + class token concat + pos embedding ---
    lp = jnp.dot(patch_ref[...], emb_w_ref[...],
                 preferred_element_type=jnp.float32) + emb_b_ref[...]      # (B*n, L)
    cls = cls_ref[...]                                                     # (B, L)
    pos = pos_ref[...]                                                     # (B, L), same per pos
    rows = []
    for b in range(B):
        rows.append(cls[b:b + 1, :] + pos[b:b + 1, :])                     # class-token row
        rows.append(lp[b * n:(b + 1) * n, :] + pos[b:b + 1, :])            # patch rows
    h = jnp.concatenate(rows, axis=0)                                      # (B*S, L) row = b*S+s

    hsel = hsel_ref[...]                                                   # (L, H)
    hselT = hselT_ref[...]                                                 # (H, L)
    scale = 1.0 / math.sqrt(D)

    def layernorm(x, w, b):
        mu = jnp.mean(x, axis=-1, keepdims=True)
        var = jnp.mean((x - mu) ** 2, axis=-1, keepdims=True)
        return (x - mu) * jax.lax.rsqrt(var + 1e-5) * w + b

    # --- Encoder blocks (statically unrolled; weights stacked along leading axis) ---
    for e in range(E):
        nw = enc_nw_ref[e]                                                 # (1, L)
        nb = enc_nb_ref[e]

        fn = layernorm(h, nw, nb)

        # Fused QKV projection: one MXU call, (B*S, 3L)
        qkv = jnp.dot(fn, enc_wqkv_ref[e],
                      preferred_element_type=jnp.float32) + enc_bqkv_ref[e]
        q = qkv[:, 0 * L:1 * L]
        k = qkv[:, 1 * L:2 * L]
        v = qkv[:, 2 * L:3 * L]

        # MultiheadAttention with batch_first=False on a (B, S, E) tensor: attention mixes
        # over the batch axis (length B); (s, head) act as independent "batch" slices.
        q_rows = [q[b * S:(b + 1) * S, :] for b in range(B)]               # each (S, L)
        k_rows = [k[b * S:(b + 1) * S, :] for b in range(B)]
        v_rows = [v[b * S:(b + 1) * S, :] for b in range(B)]

        out_rows = []
        for b in range(B):
            # per-head logits against every source batch index c: (S, H)
            logits = [jnp.dot(q_rows[b] * k_rows[c], hsel,
                              preferred_element_type=jnp.float32) * scale
                      for c in range(B)]
            m = logits[0]
            for c in range(1, B):
                m = jnp.maximum(m, logits[c])
            ex = [jnp.exp(lg - m) for lg in logits]
            denom = ex[0]
            for c in range(1, B):
                denom = denom + ex[c]
            inv = pl.reciprocal(denom, approx=False)                       # (S, H)
            o = None
            for c in range(B):
                w = jnp.dot(ex[c] * inv, hselT,
                            preferred_element_type=jnp.float32)            # (S, L)
                term = w * v_rows[c]
                o = term if o is None else o + term
            out_rows.append(o)                                             # (S, L)
        attn = jnp.concatenate(out_rows, axis=0)                           # (B*S, L)

        # Output projection + first residual
        attn_out = jnp.dot(attn, enc_wo_ref[e],
                           preferred_element_type=jnp.float32) + enc_bo_ref[e]
        first_added = attn_out + h

        # Second norm (same weights, as in the reference) + MLP + second residual
        sn = layernorm(first_added, nw, nb)
        m1 = jnp.dot(sn, enc_w1_ref[e],
                     preferred_element_type=jnp.float32) + enc_b1_ref[e]
        m1 = 0.5 * m1 * (1.0 + jax.lax.erf(m1 * (1.0 / math.sqrt(2.0))))   # exact GELU
        m2 = jnp.dot(m1, enc_w2_ref[e],
                     preferred_element_type=jnp.float32) + enc_b2_ref[e]
        h = m2 + first_added

    # --- MLP head on the class token (row b*S of each batch element) ---
    cls_tok = jnp.concatenate([h[b * S:b * S + 1, :] for b in range(B)], axis=0)   # (B, L)
    hn = layernorm(cls_tok, head_nw_ref[...], head_nb_ref[...])
    h1 = jnp.dot(hn, head_w1_ref[...], preferred_element_type=jnp.float32) + head_b1_ref[...]
    o_ref[...] = jnp.dot(h1, head_w2_ref[...],
                         preferred_element_type=jnp.float32) + head_b2_ref[...]


# ---------------------------------- pallas_call wrapper ----------------------------------

def _full_spec(shape):
    """Full-array BlockSpec for a grid=(1,) call (block shape == full array dims)."""
    zeros = (0,) * len(shape)
    return pl.BlockSpec(shape, lambda i, _z=zeros: _z)


def vit_forward_pallas(params, x):
    B, C, length = x.shape
    p, n, L = PATCH_SIZE, NUM_PATCHES, LATENT
    assert length % p == 0

    # PatchExtractor: (B, C, len) -> unfold -> permute -> (B*n, C*p)   (plain-JAX layout glue)
    patches = jnp.transpose(x.reshape(B, C, n, p), (0, 2, 1, 3)).reshape(B * n, C * p)

    args = [
        patches,
        params["emb_w"], params["emb_b"].reshape(1, L),
        params["class_token"].reshape(B, L), params["pos_embedding"].reshape(B, L),
        params["enc_norm_w"], params["enc_norm_b"],
        params["enc_wqkv"], params["enc_bqkv"],
        params["enc_wo"], params["enc_bo"],
        params["enc_w1"], params["enc_b1"],
        params["enc_w2"], params["enc_b2"],
        params["head_norm_w"].reshape(1, L), params["head_norm_b"].reshape(1, L),
        params["head_w1"], params["head_b1"].reshape(1, L),
        params["head_w2"], params["head_b2"].reshape(1, NUM_CLASSES),
        HEAD_SEL, HEAD_SEL_T,
    ]
    return pl.pallas_call(
        functools.partial(_vit_kernel, B=B, S=SEQ, L=LATENT, D=HEAD_DIM, E=NUM_ENCODERS),
        out_shape=jax.ShapeDtypeStruct((B, NUM_CLASSES), jnp.float32),
        grid=(1,),
        in_specs=[_full_spec(a.shape) for a in args],
        out_specs=_full_spec((B, NUM_CLASSES)),
        compiler_params=pltpu.CompilerParams(dimension_semantics=("arbitrary",)),
    )(*args)


# --------------------------- pure-JAX reference (correctness check) ---------------------------

def _ref_layernorm(x, w, b):
    mu = jnp.mean(x, axis=-1, keepdims=True)
    var = jnp.mean((x - mu) ** 2, axis=-1, keepdims=True)
    return (x - mu) * jax.lax.rsqrt(var + 1e-5) * w + b


def vit_forward_ref(params, x):
    B, C, length = x.shape
    p, n, L, H, D = PATCH_SIZE, NUM_PATCHES, LATENT, NUM_HEADS, HEAD_DIM
    S = n + 1

    patches = jnp.transpose(x.reshape(B, C, n, p), (0, 2, 1, 3)).reshape(B, n, C * p)
    lp = (patches.reshape(B * n, C * p) @ params["emb_w"] + params["emb_b"]).reshape(B, n, L)
    tokens = jnp.concatenate([params["class_token"], lp], axis=1)
    tokens = tokens + params["pos_embedding"][:, :n + 1, :]

    h3 = tokens
    for e in range(NUM_ENCODERS):
        nw = params["enc_norm_w"][e, 0]
        nb = params["enc_norm_b"][e, 0]
        wqkv = params["enc_wqkv"][e]
        bqkv = params["enc_bqkv"][e, 0]

        x2 = h3.reshape(B * S, L)
        fn = _ref_layernorm(x2, nw, nb)
        q = fn @ wqkv[:, 0 * L:1 * L] + bqkv[0 * L:1 * L]
        k = fn @ wqkv[:, 1 * L:2 * L] + bqkv[1 * L:2 * L]
        v = fn @ wqkv[:, 2 * L:3 * L] + bqkv[2 * L:3 * L]

        def to_heads(t):  # (B*S, L) -> (S*H, T=B, D)   (batch_first=False convention)
            return t.reshape(B, S, H, D).transpose(1, 2, 0, 3).reshape(S * H, B, D)

        s = jnp.einsum("gtd,gsd->gts", to_heads(q), to_heads(k)) / math.sqrt(D)
        pmat = jax.nn.softmax(s, axis=-1)
        o = jnp.einsum("gts,gsd->gtd", pmat, to_heads(v))
        o = o.reshape(S, H, B, D).transpose(2, 0, 1, 3).reshape(B * S, L)
        attn_out = (o @ params["enc_wo"][e] + params["enc_bo"][e, 0]).reshape(B, S, L)

        first_added = attn_out + h3
        sn = _ref_layernorm(first_added.reshape(B * S, L), nw, nb)
        m1 = sn @ params["enc_w1"][e] + params["enc_b1"][e, 0]
        m1 = 0.5 * m1 * (1.0 + jax.scipy.special.erf(m1 / math.sqrt(2.0)))
        m2 = (m1 @ params["enc_w2"][e] + params["enc_b2"][e, 0]).reshape(B, S, L)
        h3 = m2 + first_added

    cls = h3[:, 0]
    hn = _ref_layernorm(cls, params["head_norm_w"], params["head_norm_b"])
    hh = hn @ params["head_w1"] + params["head_b1"]
    return hh @ params["head_w2"] + params["head_b2"]


# --------------------------------- deterministic parameters ---------------------------------

def init_params(key):
    keys = iter(jax.random.split(key, 64))

    def nrm(shape, scale=0.05):
        return scale * jax.random.normal(next(keys), shape, dtype=jnp.float32)

    L, E = LATENT, NUM_ENCODERS
    # Linear weights stored as (in_features, out_features), i.e. torch weight transposed.
    # Per-encoder weights stacked along a leading NUM_ENCODERS axis.
    return dict(
        emb_w=nrm((N_CHANNELS * PATCH_SIZE, L)), emb_b=nrm((L,)),
        class_token=nrm((BATCH, 1, L), 1.0),
        pos_embedding=nrm((BATCH, 1, L), 1.0),
        enc_norm_w=1.0 + nrm((E, 1, L)), enc_norm_b=nrm((E, 1, L)),
        enc_wqkv=nrm((E, L, 3 * L)), enc_bqkv=nrm((E, 1, 3 * L)),   # fused Q|K|V projection
        enc_wo=nrm((E, L, L)), enc_bo=nrm((E, 1, L)),
        enc_w1=nrm((E, L, 4 * L)), enc_b1=nrm((E, 1, 4 * L)),
        enc_w2=nrm((E, 4 * L, L)), enc_b2=nrm((E, 1, L)),
        head_norm_w=1.0 + nrm((L,)), head_norm_b=nrm((L,)),
        head_w1=nrm((L, L)), head_b1=nrm((L,)),
        head_w2=nrm((L, NUM_CLASSES)), head_b2=nrm((NUM_CLASSES,)),
    )


# -------------------------------------------- main --------------------------------------------

if __name__ == "__main__":
    key = jax.random.PRNGKey(0)
    pkey, xkey = jax.random.split(key)
    params = init_params(pkey)
    x = jax.random.normal(xkey, (BATCH, N_CHANNELS, LENGTH), dtype=jnp.float32)

    fwd = jax.jit(vit_forward_pallas)
    out = jax.block_until_ready(fwd(params, x))
    assert out.shape == (BATCH, NUM_CLASSES), out.shape

    ref = vit_forward_ref(params, x)
    np.testing.assert_allclose(np.asarray(out), np.asarray(ref), rtol=1e-4, atol=1e-4)

    print("KERNEL_OK")
</pallas_src>

<mosaic_0001>
module attributes {stable_mosaic.version = 11 : i64} {
  func.func @_vit_kernel(%arg0: i32, %arg1: memref<4x32xf32, #tpu.memory_space<vmem>>, %arg2: memref<32x32xf32, #tpu.memory_space<vmem>>, %arg3: memref<1x32xf32, #tpu.memory_space<vmem>>, %arg4: memref<2x32xf32, #tpu.memory_space<vmem>>, %arg5: memref<2x32xf32, #tpu.memory_space<vmem>>, %arg6: memref<2x1x32xf32, #tpu.memory_space<vmem>>, %arg7: memref<2x1x32xf32, #tpu.memory_space<vmem>>, %arg8: memref<2x32x96xf32, #tpu.memory_space<vmem>>, %arg9: memref<2x1x96xf32, #tpu.memory_space<vmem>>, %arg10: memref<2x32x32xf32, #tpu.memory_space<vmem>>, %arg11: memref<2x1x32xf32, #tpu.memory_space<vmem>>, %arg12: memref<2x32x128xf32, #tpu.memory_space<vmem>>, %arg13: memref<2x1x128xf32, #tpu.memory_space<vmem>>, %arg14: memref<2x128x32xf32, #tpu.memory_space<vmem>>, %arg15: memref<2x1x32xf32, #tpu.memory_space<vmem>>, %arg16: memref<1x32xf32, #tpu.memory_space<vmem>>, %arg17: memref<1x32xf32, #tpu.memory_space<vmem>>, %arg18: memref<32x32xf32, #tpu.memory_space<vmem>>, %arg19: memref<1x32xf32, #tpu.memory_space<vmem>>, %arg20: memref<32x10xf32, #tpu.memory_space<vmem>>, %arg21: memref<1x10xf32, #tpu.memory_space<vmem>>, %arg22: memref<32x4xf32, #tpu.memory_space<vmem>>, %arg23: memref<4x32xf32, #tpu.memory_space<vmem>>, %arg24: memref<2x10xf32, #tpu.memory_space<vmem>>) attributes {dimension_semantics = [#tpu.dimension_semantics<arbitrary>], iteration_bounds = array<i64: 1>, scalar_prefetch = 0 : i64, scratch_operands = 0 : i64, tpu.core_type = #tpu.core_type<tc>, window_params = [{pipeline_mode = #tpu.pipeline_mode<synchronous>, transform_indices = @transform_0, window_bounds = array<i64: 4, 32>}, {pipeline_mode = #tpu.pipeline_mode<synchronous>, transform_indices = @transform_1, window_bounds = array<i64: 32, 32>}, {pipeline_mode = #tpu.pipeline_mode<synchronous>, transform_indices = @transform_2, window_bounds = array<i64: 1, 32>}, {pipeline_mode = #tpu.pipeline_mode<synchronous>, transform_indices = @transform_3, window_bounds = array<i64: 2, 32>}, {pipeline_mode = #tpu.pipeline_mode<synchronous>, transform_indices = @transform_4, window_bounds = array<i64: 2, 32>}, {pipeline_mode = #tpu.pipeline_mode<synchronous>, transform_indices = @transform_5, window_bounds = array<i64: 2, 1, 32>}, {pipeline_mode = #tpu.pipeline_mode<synchronous>, transform_indices = @transform_6, window_bounds = array<i64: 2, 1, 32>}, {pipeline_mode = #tpu.pipeline_mode<synchronous>, transform_indices = @transform_7, window_bounds = array<i64: 2, 32, 96>}, {pipeline_mode = #tpu.pipeline_mode<synchronous>, transform_indices = @transform_8, window_bounds = array<i64: 2, 1, 96>}, {pipeline_mode = #tpu.pipeline_mode<synchronous>, transform_indices = @transform_9, window_bounds = array<i64: 2, 32, 32>}, {pipeline_mode = #tpu.pipeline_mode<synchronous>, transform_indices = @transform_10, window_bounds = array<i64: 2, 1, 32>}, {pipeline_mode = #tpu.pipeline_mode<synchronous>, transform_indices = @transform_11, window_bounds = array<i64: 2, 32, 128>}, {pipeline_mode = #tpu.pipeline_mode<synchronous>, transform_indices = @transform_12, window_bounds = array<i64: 2, 1, 128>}, {pipeline_mode = #tpu.pipeline_mode<synchronous>, transform_indices = @transform_13, window_bounds = array<i64: 2, 128, 32>}, {pipeline_mode = #tpu.pipeline_mode<synchronous>, transform_indices = @transform_14, window_bounds = array<i64: 2, 1, 32>}, {pipeline_mode = #tpu.pipeline_mode<synchronous>, transform_indices = @transform_15, window_bounds = array<i64: 1, 32>}, {pipeline_mode = #tpu.pipeline_mode<synchronous>, transform_indices = @transform_16, window_bounds = array<i64: 1, 32>}, {pipeline_mode = #tpu.pipeline_mode<synchronous>, transform_indices = @transform_17, window_bounds = array<i64: 32, 32>}, {pipeline_mode = #tpu.pipeline_mode<synchronous>, transform_indices = @transform_18, window_bounds = array<i64: 1, 32>}, {pipeline_mode = #tpu.pipeline_mode<synchronous>, transform_indices = @transform_19, window_bounds = array<i64: 32, 10>}, {pipeline_mode = #tpu.pipeline_mode<synchronous>, transform_indices = @transform_20, window_bounds = array<i64: 1, 10>}, {pipeline_mode = #tpu.pipeline_mode<synchronous>, transform_indices = @transform_21, window_bounds = array<i64: 32, 4>}, {pipeline_mode = #tpu.pipeline_mode<synchronous>, transform_indices = @transform_22, window_bounds = array<i64: 4, 32>}, {pipeline_mode = #tpu.pipeline_mode<synchronous>, transform_indices = @transform_23, window_bounds = array<i64: 2, 10>}]} {
    %c0 = arith.constant 0 : index
    %c0_0 = arith.constant 0 : index
    %0 = vector.load %arg1[%c0, %c0_0] : memref<4x32xf32, #tpu.memory_space<vmem>>, vector<4x32xf32>
    %c0_1 = arith.constant 0 : index
    %c0_2 = arith.constant 0 : index
    %1 = vector.load %arg2[%c0_1, %c0_2] : memref<32x32xf32, #tpu.memory_space<vmem>>, vector<32x32xf32>
    %cst = arith.constant dense<0.000000e+00> : vector<4x32xf32>
    %2 = tpu.matmul %0, %1, %cst {dimension_numbers = #tpu.dot_dimension_numbers<[1], [0], [0], [1], [0, 0, 1, 1], [], []>} : vector<4x32xf32>, vector<32x32xf32>, vector<4x32xf32> -> vector<4x32xf32>
    %c0_3 = arith.constant 0 : index
    %c0_4 = arith.constant 0 : index
    %3 = vector.load %arg3[%c0_3, %c0_4] : memref<1x32xf32, #tpu.memory_space<vmem>>, vector<1x32xf32>
    %4 = vector.broadcast %3 : vector<1x32xf32> to vector<4x32xf32>
    %5 = arith.addf %2, %4 : vector<4x32xf32>
    %c0_5 = arith.constant 0 : index
    %c0_6 = arith.constant 0 : index
    %6 = vector.load %arg4[%c0_5, %c0_6] : memref<2x32xf32, #tpu.memory_space<vmem>>, vector<2x32xf32>
    %c0_7 = arith.constant 0 : index
    %c0_8 = arith.constant 0 : index
    %7 = vector.load %arg5[%c0_7, %c0_8] : memref<2x32xf32, #tpu.memory_space<vmem>>, vector<2x32xf32>
    %8 = vector.extract_strided_slice %6 {offsets = [0, 0], sizes = [1, 32], strides = [1, 1]} : vector<2x32xf32> to vector<1x32xf32>
    %9 = vector.extract_strided_slice %7 {offsets = [0, 0], sizes = [1, 32], strides = [1, 1]} : vector<2x32xf32> to vector<1x32xf32>
    %10 = arith.addf %8, %9 : vector<1x32xf32>
    %11 = vector.extract_strided_slice %5 {offsets = [0, 0], sizes = [2, 32], strides = [1, 1]} : vector<4x32xf32> to vector<2x32xf32>
    %12 = vector.extract_strided_slice %7 {offsets = [0, 0], sizes = [1, 32], strides = [1, 1]} : vector<2x32xf32> to vector<1x32xf32>
    %13 = vector.broadcast %12 : vector<1x32xf32> to vector<2x32xf32>
    %14 = arith.addf %11, %13 : vector<2x32xf32>
    %15 = vector.extract_strided_slice %6 {offsets = [1, 0], sizes = [1, 32], strides = [1, 1]} : vector<2x32xf32> to vector<1x32xf32>
    %16 = vector.extract_strided_slice %7 {offsets = [1, 0], sizes = [1, 32], strides = [1, 1]} : vector<2x32xf32> to vector<1x32xf32>
    %17 = arith.addf %15, %16 : vector<1x32xf32>
    %18 = vector.extract_strided_slice %5 {offsets = [2, 0], sizes = [2, 32], strides = [1, 1]} : vector<4x32xf32> to vector<2x32xf32>
    %19 = vector.extract_strided_slice %7 {offsets = [1, 0], sizes = [1, 32], strides = [1, 1]} : vector<2x32xf32> to vector<1x32xf32>
    %20 = vector.broadcast %19 : vector<1x32xf32> to vector<2x32xf32>
    %21 = arith.addf %18, %20 : vector<2x32xf32>
    %22 = tpu.concatenate %10, %14, %17, %21 in 0 : vector<1x32xf32>, vector<2x32xf32>, vector<1x32xf32>, vector<2x32xf32> -> vector<6x32xf32>
    %c0_9 = arith.constant 0 : index
    %c0_10 = arith.constant 0 : index
    %23 = vector.load %arg22[%c0_9, %c0_10] : memref<32x4xf32, #tpu.memory_space<vmem>>, vector<32x4xf32>
    %c0_11 = arith.constant 0 : index
    %c0_12 = arith.constant 0 : index
    %24 = vector.load %arg23[%c0_11, %c0_12] : memref<4x32xf32, #tpu.memory_space<vmem>>, vector<4x32xf32>
    %c0_13 = arith.constant 0 : index
    %c0_14 = arith.constant 0 : index
    %c0_15 = arith.constant 0 : index
    %25 = vector.load %arg6[%c0_13, %c0_14, %c0_15] : memref<2x1x32xf32, #tpu.memory_space<vmem>>, vector<1x1x32xf32>
    %26 = vector.shape_cast %25 : vector<1x1x32xf32> to vector<1x32xf32>
    %c0_16 = arith.constant 0 : index
    %c0_17 = arith.constant 0 : index
    %c0_18 = arith.constant 0 : index
    %27 = vector.load %arg7[%c0_16, %c0_17, %c0_18] : memref<2x1x32xf32, #tpu.memory_space<vmem>>, vector<1x1x32xf32>
    %28 = vector.shape_cast %27 : vector<1x1x32xf32> to vector<1x32xf32>
    %cst_19 = arith.constant dense<0.000000e+00> : vector<6xf32>
    %29 = vector.multi_reduction <add>, %22, %cst_19 [1] : vector<6x32xf32> to vector<6xf32>
    %30 = vector.shape_cast %29 : vector<6xf32> to vector<6x1xf32>
    %cst_20 = arith.constant 3.200000e+01 : f32
    %31 = vector.broadcast %cst_20 : f32 to vector<6x1xf32>
    %32 = arith.divf %30, %31 : vector<6x1xf32>
    %33 = vector.broadcast %32 : vector<6x1xf32> to vector<6x32xf32>
    %34 = arith.subf %22, %33 : vector<6x32xf32>
    %35 = arith.mulf %34, %34 : vector<6x32xf32>
    %cst_21 = arith.constant dense<0.000000e+00> : vector<6xf32>
    %36 = vector.multi_reduction <add>, %35, %cst_21 [1] : vector<6x32xf32> to vector<6xf32>
    %37 = vector.shape_cast %36 : vector<6xf32> to vector<6x1xf32>
    %cst_22 = arith.constant 3.200000e+01 : f32
    %38 = vector.broadcast %cst_22 : f32 to vector<6x1xf32>
    %39 = arith.divf %37, %38 : vector<6x1xf32>
    %40 = vector.broadcast %32 : vector<6x1xf32> to vector<6x32xf32>
    %41 = arith.subf %22, %40 : vector<6x32xf32>
    %cst_23 = arith.constant 9.99999974E-6 : f32
    %42 = vector.broadcast %cst_23 : f32 to vector<6x1xf32>
    %43 = arith.addf %39, %42 : vector<6x1xf32>
    %44 = math.rsqrt %43 : vector<6x1xf32>
    %45 = vector.broadcast %44 : vector<6x1xf32> to vector<6x32xf32>
    %46 = arith.mulf %41, %45 : vector<6x32xf32>
    %47 = vector.broadcast %26 : vector<1x32xf32> to vector<6x32xf32>
    %48 = arith.mulf %46, %47 : vector<6x32xf32>
    %49 = vector.broadcast %28 : vector<1x32xf32> to vector<6x32xf32>
    %50 = arith.addf %48, %49 : vector<6x32xf32>
    %c0_24 = arith.constant 0 : index
    %c0_25 = arith.constant 0 : index
    %c0_26 = arith.constant 0 : index
    %51 = vector.load %arg8[%c0_24, %c0_25, %c0_26] : memref<2x32x96xf32, #tpu.memory_space<vmem>>, vector<1x32x96xf32>
    %52 = vector.shape_cast %51 : vector<1x32x96xf32> to vector<32x96xf32>
    %cst_27 = arith.constant dense<0.000000e+00> : vector<6x96xf32>
    %53 = tpu.matmul %50, %52, %cst_27 {dimension_numbers = #tpu.dot_dimension_numbers<[1], [0], [0], [1], [0, 0, 1, 1], [], []>} : vector<6x32xf32>, vector<32x96xf32>, vector<6x96xf32> -> vector<6x96xf32>
    %c0_28 = arith.constant 0 : index
    %c0_29 = arith.constant 0 : index
    %c0_30 = arith.constant 0 : index
    %54 = vector.load %arg9[%c0_28, %c0_29, %c0_30] : memref<2x1x96xf32, #tpu.memory_space<vmem>>, vector<1x1x96xf32>
    %55 = vector.shape_cast %54 : vector<1x1x96xf32> to vector<1x96xf32>
    %56 = vector.broadcast %55 : vector<1x96xf32> to vector<6x96xf32>
    %57 = arith.addf %53, %56 : vector<6x96xf32>
    %58 = vector.extract_strided_slice %57 {offsets = [0, 0], sizes = [6, 32], strides = [1, 1]} : vector<6x96xf32> to vector<6x32xf32>
    %59 = vector.extract_strided_slice %57 {offsets = [0, 32], sizes = [6, 32], strides = [1, 1]} : vector<6x96xf32> to vector<6x32xf32>
    %60 = vector.extract_strided_slice %57 {offsets = [0, 64], sizes = [6, 32], strides = [1, 1]} : vector<6x96xf32> to vector<6x32xf32>
    %61 = vector.extract_strided_slice %58 {offsets = [0, 0], sizes = [3, 32], strides = [1, 1]} : vector<6x32xf32> to vector<3x32xf32>
    %62 = vector.extract_strided_slice %58 {offsets = [3, 0], sizes = [3, 32], strides = [1, 1]} : vector<6x32xf32> to vector<3x32xf32>
    %63 = vector.extract_strided_slice %59 {offsets = [0, 0], sizes = [3, 32], strides = [1, 1]} : vector<6x32xf32> to vector<3x32xf32>
    %64 = vector.extract_strided_slice %59 {offsets = [3, 0], sizes = [3, 32], strides = [1, 1]} : vector<6x32xf32> to vector<3x32xf32>
    %65 = vector.extract_strided_slice %60 {offsets = [0, 0], sizes = [3, 32], strides = [1, 1]} : vector<6x32xf32> to vector<3x32xf32>
    %66 = vector.extract_strided_slice %60 {offsets = [3, 0], sizes = [3, 32], strides = [1, 1]} : vector<6x32xf32> to vector<3x32xf32>
    %67 = arith.mulf %61, %63 : vector<3x32xf32>
    %cst_31 = arith.constant dense<0.000000e+00> : vector<3x4xf32>
    %68 = tpu.matmul %67, %23, %cst_31 {dimension_numbers = #tpu.dot_dimension_numbers<[1], [0], [0], [1], [0, 0, 1, 1], [], []>} : vector<3x32xf32>, vector<32x4xf32>, vector<3x4xf32> -> vector<3x4xf32>
    %cst_32 = arith.constant 0.353553385 : f32
    %69 = vector.broadcast %cst_32 : f32 to vector<3x4xf32>
    %70 = arith.mulf %68, %69 : vector<3x4xf32>
    %71 = arith.mulf %61, %64 : vector<3x32xf32>
    %cst_33 = arith.constant dense<0.000000e+00> : vector<3x4xf32>
    %72 = tpu.matmul %71, %23, %cst_33 {dimension_numbers = #tpu.dot_dimension_numbers<[1], [0], [0], [1], [0, 0, 1, 1], [], []>} : vector<3x32xf32>, vector<32x4xf32>, vector<3x4xf32> -> vector<3x4xf32>
    %cst_34 = arith.constant 0.353553385 : f32
    %73 = vector.broadcast %cst_34 : f32 to vector<3x4xf32>
    %74 = arith.mulf %72, %73 : vector<3x4xf32>
    %75 = arith.maximumf %70, %74 : vector<3x4xf32>
    %76 = arith.subf %70, %75 : vector<3x4xf32>
    %77 = math.exp %76 : vector<3x4xf32>
    %78 = arith.subf %74, %75 : vector<3x4xf32>
    %79 = math.exp %78 : vector<3x4xf32>
    %80 = arith.addf %77, %79 : vector<3x4xf32>
    %81 = tpu.reciprocal %80 : vector<3x4xf32> -> vector<3x4xf32>
    %82 = arith.mulf %77, %81 : vector<3x4xf32>
    %cst_35 = arith.constant dense<0.000000e+00> : vector<3x32xf32>
    %83 = tpu.matmul %82, %24, %cst_35 {dimension_numbers = #tpu.dot_dimension_numbers<[1], [0], [0], [1], [0, 0, 1, 1], [], []>} : vector<3x4xf32>, vector<4x32xf32>, vector<3x32xf32> -> vector<3x32xf32>
    %84 = arith.mulf %83, %65 : vector<3x32xf32>
    %85 = arith.mulf %79, %81 : vector<3x4xf32>
    %cst_36 = arith.constant dense<0.000000e+00> : vector<3x32xf32>
    %86 = tpu.matmul %85, %24, %cst_36 {dimension_numbers = #tpu.dot_dimension_numbers<[1], [0], [0], [1], [0, 0, 1, 1], [], []>} : vector<3x4xf32>, vector<4x32xf32>, vector<3x32xf32> -> vector<3x32xf32>
    %87 = arith.mulf %86, %66 : vector<3x32xf32>
    %88 = arith.addf %84, %87 : vector<3x32xf32>
    %89 = arith.mulf %62, %63 : vector<3x32xf32>
    %cst_37 = arith.constant dense<0.000000e+00> : vector<3x4xf32>
    %90 = tpu.matmul %89, %23, %cst_37 {dimension_numbers = #tpu.dot_dimension_numbers<[1], [0], [0], [1], [0, 0, 1, 1], [], []>} : vector<3x32xf32>, vector<32x4xf32>, vector<3x4xf32> -> vector<3x4xf32>
    %cst_38 = arith.constant 0.353553385 : f32
    %91 = vector.broadcast %cst_38 : f32 to vector<3x4xf32>
    %92 = arith.mulf %90, %91 : vector<3x4xf32>
    %93 = arith.mulf %62, %64 : vector<3x32xf32>
    %cst_39 = arith.constant dense<0.000000e+00> : vector<3x4xf32>
    %94 = tpu.matmul %93, %23, %cst_39 {dimension_numbers = #tpu.dot_dimension_numbers<[1], [0], [0], [1], [0, 0, 1, 1], [], []>} : vector<3x32xf32>, vector<32x4xf32>, vector<3x4xf32> -> vector<3x4xf32>
    %cst_40 = arith.constant 0.353553385 : f32
    %95 = vector.broadcast %cst_40 : f32 to vector<3x4xf32>
    %96 = arith.mulf %94, %95 : vector<3x4xf32>
    %97 = arith.maximumf %92, %96 : vector<3x4xf32>
    %98 = arith.subf %92, %97 : vector<3x4xf32>
    %99 = math.exp %98 : vector<3x4xf32>
    %100 = arith.subf %96, %97 : vector<3x4xf32>
    %101 = math.exp %100 : vector<3x4xf32>
    %102 = arith.addf %99, %101 : vector<3x4xf32>
    %103 = tpu.reciprocal %102 : vector<3x4xf32> -> vector<3x4xf32>
    %104 = arith.mulf %99, %103 : vector<3x4xf32>
    %cst_41 = arith.constant dense<0.000000e+00> : vector<3x32xf32>
    %105 = tpu.matmul %104, %24, %cst_41 {dimension_numbers = #tpu.dot_dimension_numbers<[1], [0], [0], [1], [0, 0, 1, 1], [], []>} : vector<3x4xf32>, vector<4x32xf32>, vector<3x32xf32> -> vector<3x32xf32>
    %106 = arith.mulf %105, %65 : vector<3x32xf32>
    %107 = arith.mulf %101, %103 : vector<3x4xf32>
    %cst_42 = arith.constant dense<0.000000e+00> : vector<3x32xf32>
    %108 = tpu.matmul %107, %24, %cst_42 {dimension_numbers = #tpu.dot_dimension_numbers<[1], [0], [0], [1], [0, 0, 1, 1], [], []>} : vector<3x4xf32>, vector<4x32xf32>, vector<3x32xf32> -> vector<3x32xf32>
    %109 = arith.mulf %108, %66 : vector<3x32xf32>
    %110 = arith.addf %106, %109 : vector<3x32xf32>
    %111 = tpu.concatenate %88, %110 in 0 : vector<3x32xf32>, vector<3x32xf32> -> vector<6x32xf32>
    %c0_43 = arith.constant 0 : index
    %c0_44 = arith.constant 0 : index
    %c0_45 = arith.constant 0 : index
    %112 = vector.load %arg10[%c0_43, %c0_44, %c0_45] : memref<2x32x32xf32, #tpu.memory_space<vmem>>, vector<1x32x32xf32>
    %113 = vector.shape_cast %112 : vector<1x32x32xf32> to vector<32x32xf32>
    %cst_46 = arith.constant dense<0.000000e+00> : vector<6x32xf32>
    %114 = tpu.matmul %111, %113, %cst_46 {dimension_numbers = #tpu.dot_dimension_numbers<[1], [0], [0], [1], [0, 0, 1, 1], [], []>} : vector<6x32xf32>, vector<32x32xf32>, vector<6x32xf32> -> vector<6x32xf32>
    %c0_47 = arith.constant 0 : index
    %c0_48 = arith.constant 0 : index
    %c0_49 = arith.constant 0 : index
    %115 = vector.load %arg11[%c0_47, %c0_48, %c0_49] : memref<2x1x32xf32, #tpu.memory_space<vmem>>, vector<1x1x32xf32>
    %116 = vector.shape_cast %115 : vector<1x1x32xf32> to vector<1x32xf32>
    %117 = vector.broadcast %116 : vector<1x32xf32> to vector<6x32xf32>
    %118 = arith.addf %114, %117 : vector<6x32xf32>
    %119 = arith.addf %118, %22 : vector<6x32xf32>
    %cst_50 = arith.constant dense<0.000000e+00> : vector<6xf32>
    %120 = vector.multi_reduction <add>, %119, %cst_50 [1] : vector<6x32xf32> to vector<6xf32>
    %121 = vector.shape_cast %120 : vector<6xf32> to vector<6x1xf32>
    %cst_51 = arith.constant 3.200000e+01 : f32
    %122 = vector.broadcast %cst_51 : f32 to vector<6x1xf32>
    %123 = arith.divf %121, %122 : vector<6x1xf32>
    %124 = vector.broadcast %123 : vector<6x1xf32> to vector<6x32xf32>
    %125 = arith.subf %119, %124 : vector<6x32xf32>
    %126 = arith.mulf %125, %125 : vector<6x32xf32>
    %cst_52 = arith.constant dense<0.000000e+00> : vector<6xf32>
    %127 = vector.multi_reduction <add>, %126, %cst_52 [1] : vector<6x32xf32> to vector<6xf32>
    %128 = vector.shape_cast %127 : vector<6xf32> to vector<6x1xf32>
    %cst_53 = arith.constant 3.200000e+01 : f32
    %129 = vector.broadcast %cst_53 : f32 to vector<6x1xf32>
    %130 = arith.divf %128, %129 : vector<6x1xf32>
    %131 = vector.broadcast %123 : vector<6x1xf32> to vector<6x32xf32>
    %132 = arith.subf %119, %131 : vector<6x32xf32>
    %cst_54 = arith.constant 9.99999974E-6 : f32
    %133 = vector.broadcast %cst_54 : f32 to vector<6x1xf32>
    %134 = arith.addf %130, %133 : vector<6x1xf32>
    %135 = math.rsqrt %134 : vector<6x1xf32>
    %136 = vector.broadcast %135 : vector<6x1xf32> to vector<6x32xf32>
    %137 = arith.mulf %132, %136 : vector<6x32xf32>
    %138 = vector.broadcast %26 : vector<1x32xf32> to vector<6x32xf32>
    %139 = arith.mulf %137, %138 : vector<6x32xf32>
    %140 = vector.broadcast %28 : vector<1x32xf32> to vector<6x32xf32>
    %141 = arith.addf %139, %140 : vector<6x32xf32>
    %c0_55 = arith.constant 0 : index
    %c0_56 = arith.constant 0 : index
    %c0_57 = arith.constant 0 : index
    %142 = vector.load %arg12[%c0_55, %c0_56, %c0_57] : memref<2x32x128xf32, #tpu.memory_space<vmem>>, vector<1x32x128xf32>
    %143 = vector.shape_cast %142 : vector<1x32x128xf32> to vector<32x128xf32>
    %cst_58 = arith.constant dense<0.000000e+00> : vector<6x128xf32>
    %144 = tpu.matmul %141, %143, %cst_58 {dimension_numbers = #tpu.dot_dimension_numbers<[1], [0], [0], [1], [0, 0, 1, 1], [], []>} : vector<6x32xf32>, vector<32x128xf32>, vector<6x128xf32> -> vector<6x128xf32>
    %c0_59 = arith.constant 0 : index
    %c0_60 = arith.constant 0 : index
    %c0_61 = arith.constant 0 : index
    %145 = vector.load %arg13[%c0_59, %c0_60, %c0_61] : memref<2x1x128xf32, #tpu.memory_space<vmem>>, vector<1x1x128xf32>
    %146 = vector.shape_cast %145 : vector<1x1x128xf32> to vector<1x128xf32>
    %147 = vector.broadcast %146 : vector<1x128xf32> to vector<6x128xf32>
    %148 = arith.addf %144, %147 : vector<6x128xf32>
    %cst_62 = arith.constant 5.000000e-01 : f32
    %149 = vector.broadcast %cst_62 : f32 to vector<6x128xf32>
    %150 = arith.mulf %149, %148 : vector<6x128xf32>
    %cst_63 = arith.constant 0.707106769 : f32
    %151 = vector.broadcast %cst_63 : f32 to vector<6x128xf32>
    %152 = arith.mulf %148, %151 : vector<6x128xf32>
    %153 = math.erf %152 : vector<6x128xf32>
    %cst_64 = arith.constant 1.000000e+00 : f32
    %154 = vector.broadcast %cst_64 : f32 to vector<6x128xf32>
    %155 = arith.addf %154, %153 : vector<6x128xf32>
    %156 = arith.mulf %150, %155 : vector<6x128xf32>
    %c0_65 = arith.constant 0 : index
    %c0_66 = arith.constant 0 : index
    %c0_67 = arith.constant 0 : index
    %157 = vector.load %arg14[%c0_65, %c0_66, %c0_67] : memref<2x128x32xf32, #tpu.memory_space<vmem>>, vector<1x128x32xf32>
    %158 = vector.shape_cast %157 : vector<1x128x32xf32> to vector<128x32xf32>
    %cst_68 = arith.constant dense<0.000000e+00> : vector<6x32xf32>
    %159 = tpu.matmul %156, %158, %cst_68 {dimension_numbers = #tpu.dot_dimension_numbers<[1], [0], [0], [1], [0, 0, 1, 1], [], []>} : vector<6x128xf32>, vector<128x32xf32>, vector<6x32xf32> -> vector<6x32xf32>
    %c0_69 = arith.constant 0 : index
    %c0_70 = arith.constant 0 : index
    %c0_71 = arith.constant 0 : index
    %160 = vector.load %arg15[%c0_69, %c0_70, %c0_71] : memref<2x1x32xf32, #tpu.memory_space<vmem>>, vector<1x1x32xf32>
    %161 = vector.shape_cast %160 : vector<1x1x32xf32> to vector<1x32xf32>
    %162 = vector.broadcast %161 : vector<1x32xf32> to vector<6x32xf32>
    %163 = arith.addf %159, %162 : vector<6x32xf32>
    %164 = arith.addf %163, %119 : vector<6x32xf32>
    %c1 = arith.constant 1 : index
    %c0_72 = arith.constant 0 : index
    %c0_73 = arith.constant 0 : index
    %165 = vector.load %arg6[%c1, %c0_72, %c0_73] : memref<2x1x32xf32, #tpu.memory_space<vmem>>, vector<1x1x32xf32>
    %166 = vector.shape_cast %165 : vector<1x1x32xf32> to vector<1x32xf32>
    %c1_74 = arith.constant 1 : index
    %c0_75 = arith.constant 0 : index
    %c0_76 = arith.constant 0 : index
    %167 = vector.load %arg7[%c1_74, %c0_75, %c0_76] : memref<2x1x32xf32, #tpu.memory_space<vmem>>, vector<1x1x32xf32>
    %168 = vector.shape_cast %167 : vector<1x1x32xf32> to vector<1x32xf32>
    %cst_77 = arith.constant dense<0.000000e+00> : vector<6xf32>
    %169 = vector.multi_reduction <add>, %164, %cst_77 [1] : vector<6x32xf32> to vector<6xf32>
    %170 = vector.shape_cast %169 : vector<6xf32> to vector<6x1xf32>
    %cst_78 = arith.constant 3.200000e+01 : f32
    %171 = vector.broadcast %cst_78 : f32 to vector<6x1xf32>
    %172 = arith.divf %170, %171 : vector<6x1xf32>
    %173 = vector.broadcast %172 : vector<6x1xf32> to vector<6x32xf32>
    %174 = arith.subf %164, %173 : vector<6x32xf32>
    %175 = arith.mulf %174, %174 : vector<6x32xf32>
    %cst_79 = arith.constant dense<0.000000e+00> : vector<6xf32>
    %176 = vector.multi_reduction <add>, %175, %cst_79 [1] : vector<6x32xf32> to vector<6xf32>
    %177 = vector.shape_cast %176 : vector<6xf32> to vector<6x1xf32>
    %cst_80 = arith.constant 3.200000e+01 : f32
    %178 = vector.broadcast %cst_80 : f32 to vector<6x1xf32>
    %179 = arith.divf %177, %178 : vector<6x1xf32>
    %180 = vector.broadcast %172 : vector<6x1xf32> to vector<6x32xf32>
    %181 = arith.subf %164, %180 : vector<6x32xf32>
    %cst_81 = arith.constant 9.99999974E-6 : f32
    %182 = vector.broadcast %cst_81 : f32 to vector<6x1xf32>
    %183 = arith.addf %179, %182 : vector<6x1xf32>
    %184 = math.rsqrt %183 : vector<6x1xf32>
    %185 = vector.broadcast %184 : vector<6x1xf32> to vector<6x32xf32>
    %186 = arith.mulf %181, %185 : vector<6x32xf32>
    %187 = vector.broadcast %166 : vector<1x32xf32> to vector<6x32xf32>
    %188 = arith.mulf %186, %187 : vector<6x32xf32>
    %189 = vector.broadcast %168 : vector<1x32xf32> to vector<6x32xf32>
    %190 = arith.addf %188, %189 : vector<6x32xf32>
    %c1_82 = arith.constant 1 : index
    %c0_83 = arith.constant 0 : index
    %c0_84 = arith.constant 0 : index
    %191 = vector.load %arg8[%c1_82, %c0_83, %c0_84] : memref<2x32x96xf32, #tpu.memory_space<vmem>>, vector<1x32x96xf32>
    %192 = vector.shape_cast %191 : vector<1x32x96xf32> to vector<32x96xf32>
    %cst_85 = arith.constant dense<0.000000e+00> : vector<6x96xf32>
    %193 = tpu.matmul %190, %192, %cst_85 {dimension_numbers = #tpu.dot_dimension_numbers<[1], [0], [0], [1], [0, 0, 1, 1], [], []>} : vector<6x32xf32>, vector<32x96xf32>, vector<6x96xf32> -> vector<6x96xf32>
    %c1_86 = arith.constant 1 : index
    %c0_87 = arith.constant 0 : index
    %c0_88 = arith.constant 0 : index
    %194 = vector.load %arg9[%c1_86, %c0_87, %c0_88] : memref<2x1x96xf32, #tpu.memory_space<vmem>>, vector<1x1x96xf32>
    %195 = vector.shape_cast %194 : vector<1x1x96xf32> to vector<1x96xf32>
    %196 = vector.broadcast %195 : vector<1x96xf32> to vector<6x96xf32>
    %197 = arith.addf %193, %196 : vector<6x96xf32>
    %198 = vector.extract_strided_slice %197 {offsets = [0, 0], sizes = [6, 32], strides = [1, 1]} : vector<6x96xf32> to vector<6x32xf32>
    %199 = vector.extract_strided_slice %197 {offsets = [0, 32], sizes = [6, 32], strides = [1, 1]} : vector<6x96xf32> to vector<6x32xf32>
    %200 = vector.extract_strided_slice %197 {offsets = [0, 64], sizes = [6, 32], strides = [1, 1]} : vector<6x96xf32> to vector<6x32xf32>
    %201 = vector.extract_strided_slice %198 {offsets = [0, 0], sizes = [3, 32], strides = [1, 1]} : vector<6x32xf32> to vector<3x32xf32>
    %202 = vector.extract_strided_slice %198 {offsets = [3, 0], sizes = [3, 32], strides = [1, 1]} : vector<6x32xf32> to vector<3x32xf32>
    %203 = vector.extract_strided_slice %199 {offsets = [0, 0], sizes = [3, 32], strides = [1, 1]} : vector<6x32xf32> to vector<3x32xf32>
    %204 = vector.extract_strided_slice %199 {offsets = [3, 0], sizes = [3, 32], strides = [1, 1]} : vector<6x32xf32> to vector<3x32xf32>
    %205 = vector.extract_strided_slice %200 {offsets = [0, 0], sizes = [3, 32], strides = [1, 1]} : vector<6x32xf32> to vector<3x32xf32>
    %206 = vector.extract_strided_slice %200 {offsets = [3, 0], sizes = [3, 32], strides = [1, 1]} : vector<6x32xf32> to vector<3x32xf32>
    %207 = arith.mulf %201, %203 : vector<3x32xf32>
    %cst_89 = arith.constant dense<0.000000e+00> : vector<3x4xf32>
    %208 = tpu.matmul %207, %23, %cst_89 {dimension_numbers = #tpu.dot_dimension_numbers<[1], [0], [0], [1], [0, 0, 1, 1], [], []>} : vector<3x32xf32>, vector<32x4xf32>, vector<3x4xf32> -> vector<3x4xf32>
    %cst_90 = arith.constant 0.353553385 : f32
    %209 = vector.broadcast %cst_90 : f32 to vector<3x4xf32>
    %210 = arith.mulf %208, %209 : vector<3x4xf32>
    %211 = arith.mulf %201, %204 : vector<3x32xf32>
    %cst_91 = arith.constant dense<0.000000e+00> : vector<3x4xf32>
    %212 = tpu.matmul %211, %23, %cst_91 {dimension_numbers = #tpu.dot_dimension_numbers<[1], [0], [0], [1], [0, 0, 1, 1], [], []>} : vector<3x32xf32>, vector<32x4xf32>, vector<3x4xf32> -> vector<3x4xf32>
    %cst_92 = arith.constant 0.353553385 : f32
    %213 = vector.broadcast %cst_92 : f32 to vector<3x4xf32>
    %214 = arith.mulf %212, %213 : vector<3x4xf32>
    %215 = arith.maximumf %210, %214 : vector<3x4xf32>
    %216 = arith.subf %210, %215 : vector<3x4xf32>
    %217 = math.exp %216 : vector<3x4xf32>
    %218 = arith.subf %214, %215 : vector<3x4xf32>
    %219 = math.exp %218 : vector<3x4xf32>
    %220 = arith.addf %217, %219 : vector<3x4xf32>
    %221 = tpu.reciprocal %220 : vector<3x4xf32> -> vector<3x4xf32>
    %222 = arith.mulf %217, %221 : vector<3x4xf32>
    %cst_93 = arith.constant dense<0.000000e+00> : vector<3x32xf32>
    %223 = tpu.matmul %222, %24, %cst_93 {dimension_numbers = #tpu.dot_dimension_numbers<[1], [0], [0], [1], [0, 0, 1, 1], [], []>} : vector<3x4xf32>, vector<4x32xf32>, vector<3x32xf32> -> vector<3x32xf32>
    %224 = arith.mulf %223, %205 : vector<3x32xf32>
    %225 = arith.mulf %219, %221 : vector<3x4xf32>
    %cst_94 = arith.constant dense<0.000000e+00> : vector<3x32xf32>
    %226 = tpu.matmul %225, %24, %cst_94 {dimension_numbers = #tpu.dot_dimension_numbers<[1], [0], [0], [1], [0, 0, 1, 1], [], []>} : vector<3x4xf32>, vector<4x32xf32>, vector<3x32xf32> -> vector<3x32xf32>
    %227 = arith.mulf %226, %206 : vector<3x32xf32>
    %228 = arith.addf %224, %227 : vector<3x32xf32>
    %229 = arith.mulf %202, %203 : vector<3x32xf32>
    %cst_95 = arith.constant dense<0.000000e+00> : vector<3x4xf32>
    %230 = tpu.matmul %229, %23, %cst_95 {dimension_numbers = #tpu.dot_dimension_numbers<[1], [0], [0], [1], [0, 0, 1, 1], [], []>} : vector<3x32xf32>, vector<32x4xf32>, vector<3x4xf32> -> vector<3x4xf32>
    %cst_96 = arith.constant 0.353553385 : f32
    %231 = vector.broadcast %cst_96 : f32 to vector<3x4xf32>
    %232 = arith.mulf %230, %231 : vector<3x4xf32>
    %233 = arith.mulf %202, %204 : vector<3x32xf32>
    %cst_97 = arith.constant dense<0.000000e+00> : vector<3x4xf32>
    %234 = tpu.matmul %233, %23, %cst_97 {dimension_numbers = #tpu.dot_dimension_numbers<[1], [0], [0], [1], [0, 0, 1, 1], [], []>} : vector<3x32xf32>, vector<32x4xf32>, vector<3x4xf32> -> vector<3x4xf32>
    %cst_98 = arith.constant 0.353553385 : f32
    %235 = vector.broadcast %cst_98 : f32 to vector<3x4xf32>
    %236 = arith.mulf %234, %235 : vector<3x4xf32>
    %237 = arith.maximumf %232, %236 : vector<3x4xf32>
    %238 = arith.subf %232, %237 : vector<3x4xf32>
    %239 = math.exp %238 : vector<3x4xf32>
    %240 = arith.subf %236, %237 : vector<3x4xf32>
    %241 = math.exp %240 : vector<3x4xf32>
    %242 = arith.addf %239, %241 : vector<3x4xf32>
    %243 = tpu.reciprocal %242 : vector<3x4xf32> -> vector<3x4xf32>
    %244 = arith.mulf %239, %243 : vector<3x4xf32>
    %cst_99 = arith.constant dense<0.000000e+00> : vector<3x32xf32>
    %245 = tpu.matmul %244, %24, %cst_99 {dimension_numbers = #tpu.dot_dimension_numbers<[1], [0], [0], [1], [0, 0, 1, 1], [], []>} : vector<3x4xf32>, vector<4x32xf32>, vector<3x32xf32> -> vector<3x32xf32>
    %246 = arith.mulf %245, %205 : vector<3x32xf32>
    %247 = arith.mulf %241, %243 : vector<3x4xf32>
    %cst_100 = arith.constant dense<0.000000e+00> : vector<3x32xf32>
    %248 = tpu.matmul %247, %24, %cst_100 {dimension_numbers = #tpu.dot_dimension_numbers<[1], [0], [0], [1], [0, 0, 1, 1], [], []>} : vector<3x4xf32>, vector<4x32xf32>, vector<3x32xf32> -> vector<3x32xf32>
    %249 = arith.mulf %248, %206 : vector<3x32xf32>
    %250 = arith.addf %246, %249 : vector<3x32xf32>
    %251 = tpu.concatenate %228, %250 in 0 : vector<3x32xf32>, vector<3x32xf32> -> vector<6x32xf32>
    %c1_101 = arith.constant 1 : index
    %c0_102 = arith.constant 0 : index
    %c0_103 = arith.constant 0 : index
    %252 = vector.load %arg10[%c1_101, %c0_102, %c0_103] : memref<2x32x32xf32, #tpu.memory_space<vmem>>, vector<1x32x32xf32>
    %253 = vector.shape_cast %252 : vector<1x32x32xf32> to vector<32x32xf32>
    %cst_104 = arith.constant dense<0.000000e+00> : vector<6x32xf32>
    %254 = tpu.matmul %251, %253, %cst_104 {dimension_numbers = #tpu.dot_dimension_numbers<[1], [0], [0], [1], [0, 0, 1, 1], [], []>} : vector<6x32xf32>, vector<32x32xf32>, vector<6x32xf32> -> vector<6x32xf32>
    %c1_105 = arith.constant 1 : index
    %c0_106 = arith.constant 0 : index
    %c0_107 = arith.constant 0 : index
    %255 = vector.load %arg11[%c1_105, %c0_106, %c0_107] : memref<2x1x32xf32, #tpu.memory_space<vmem>>, vector<1x1x32xf32>
    %256 = vector.shape_cast %255 : vector<1x1x32xf32> to vector<1x32xf32>
    %257 = vector.broadcast %256 : vector<1x32xf32> to vector<6x32xf32>
    %258 = arith.addf %254, %257 : vector<6x32xf32>
    %259 = arith.addf %258, %164 : vector<6x32xf32>
    %cst_108 = arith.constant dense<0.000000e+00> : vector<6xf32>
    %260 = vector.multi_reduction <add>, %259, %cst_108 [1] : vector<6x32xf32> to vector<6xf32>
    %261 = vector.shape_cast %260 : vector<6xf32> to vector<6x1xf32>
    %cst_109 = arith.constant 3.200000e+01 : f32
    %262 = vector.broadcast %cst_109 : f32 to vector<6x1xf32>
    %263 = arith.divf %261, %262 : vector<6x1xf32>
    %264 = vector.broadcast %263 : vector<6x1xf32> to vector<6x32xf32>
    %265 = arith.subf %259, %264 : vector<6x32xf32>
    %266 = arith.mulf %265, %265 : vector<6x32xf32>
    %cst_110 = arith.constant dense<0.000000e+00> : vector<6xf32>
    %267 = vector.multi_reduction <add>, %266, %cst_110 [1] : vector<6x32xf32> to vector<6xf32>
    %268 = vector.shape_cast %267 : vector<6xf32> to vector<6x1xf32>
    %cst_111 = arith.constant 3.200000e+01 : f32
    %269 = vector.broadcast %cst_111 : f32 to vector<6x1xf32>
    %270 = arith.divf %268, %269 : vector<6x1xf32>
    %271 = vector.broadcast %263 : vector<6x1xf32> to vector<6x32xf32>
    %272 = arith.subf %259, %271 : vector<6x32xf32>
    %cst_112 = arith.constant 9.99999974E-6 : f32
    %273 = vector.broadcast %cst_112 : f32 to vector<6x1xf32>
    %274 = arith.addf %270, %273 : vector<6x1xf32>
    %275 = math.rsqrt %274 : vector<6x1xf32>
    %276 = vector.broadcast %275 : vector<6x1xf32> to vector<6x32xf32>
    %277 = arith.mulf %272, %276 : vector<6x32xf32>
    %278 = vector.broadcast %166 : vector<1x32xf32> to vector<6x32xf32>
    %279 = arith.mulf %277, %278 : vector<6x32xf32>
    %280 = vector.broadcast %168 : vector<1x32xf32> to vector<6x32xf32>
    %281 = arith.addf %279, %280 : vector<6x32xf32>
    %c1_113 = arith.constant 1 : index
    %c0_114 = arith.constant 0 : index
    %c0_115 = arith.constant 0 : index
    %282 = vector.load %arg12[%c1_113, %c0_114, %c0_115] : memref<2x32x128xf32, #tpu.memory_space<vmem>>, vector<1x32x128xf32>
    %283 = vector.shape_cast %282 : vector<1x32x128xf32> to vector<32x128xf32>
    %cst_116 = arith.constant dense<0.000000e+00> : vector<6x128xf32>
    %284 = tpu.matmul %281, %283, %cst_116 {dimension_numbers = #tpu.dot_dimension_numbers<[1], [0], [0], [1], [0, 0, 1, 1], [], []>} : vector<6x32xf32>, vector<32x128xf32>, vector<6x128xf32> -> vector<6x128xf32>
    %c1_117 = arith.constant 1 : index
    %c0_118 = arith.constant 0 : index
    %c0_119 = arith.constant 0 : index
    %285 = vector.load %arg13[%c1_117, %c0_118, %c0_119] : memref<2x1x128xf32, #tpu.memory_space<vmem>>, vector<1x1x128xf32>
    %286 = vector.shape_cast %285 : vector<1x1x128xf32> to vector<1x128xf32>
    %287 = vector.broadcast %286 : vector<1x128xf32> to vector<6x128xf32>
    %288 = arith.addf %284, %287 : vector<6x128xf32>
    %cst_120 = arith.constant 5.000000e-01 : f32
    %289 = vector.broadcast %cst_120 : f32 to vector<6x128xf32>
    %290 = arith.mulf %289, %288 : vector<6x128xf32>
    %cst_121 = arith.constant 0.707106769 : f32
    %291 = vector.broadcast %cst_121 : f32 to vector<6x128xf32>
    %292 = arith.mulf %288, %291 : vector<6x128xf32>
    %293 = math.erf %292 : vector<6x128xf32>
    %cst_122 = arith.constant 1.000000e+00 : f32
    %294 = vector.broadcast %cst_122 : f32 to vector<6x128xf32>
    %295 = arith.addf %294, %293 : vector<6x128xf32>
    %296 = arith.mulf %290, %295 : vector<6x128xf32>
    %c1_123 = arith.constant 1 : index
    %c0_124 = arith.constant 0 : index
    %c0_125 = arith.constant 0 : index
    %297 = vector.load %arg14[%c1_123, %c0_124, %c0_125] : memref<2x128x32xf32, #tpu.memory_space<vmem>>, vector<1x128x32xf32>
    %298 = vector.shape_cast %297 : vector<1x128x32xf32> to vector<128x32xf32>
    %cst_126 = arith.constant dense<0.000000e+00> : vector<6x32xf32>
    %299 = tpu.matmul %296, %298, %cst_126 {dimension_numbers = #tpu.dot_dimension_numbers<[1], [0], [0], [1], [0, 0, 1, 1], [], []>} : vector<6x128xf32>, vector<128x32xf32>, vector<6x32xf32> -> vector<6x32xf32>
    %c1_127 = arith.constant 1 : index
    %c0_128 = arith.constant 0 : index
    %c0_129 = arith.constant 0 : index
    %300 = vector.load %arg15[%c1_127, %c0_128, %c0_129] : memref<2x1x32xf32, #tpu.memory_space<vmem>>, vector<1x1x32xf32>
    %301 = vector.shape_cast %300 : vector<1x1x32xf32> to vector<1x32xf32>
    %302 = vector.broadcast %301 : vector<1x32xf32> to vector<6x32xf32>
    %303 = arith.addf %299, %302 : vector<6x32xf32>
    %304 = arith.addf %303, %259 : vector<6x32xf32>
    %305 = vector.extract_strided_slice %304 {offsets = [0, 0], sizes = [1, 32], strides = [1, 1]} : vector<6x32xf32> to vector<1x32xf32>
    %306 = vector.extract_strided_slice %304 {offsets = [3, 0], sizes = [1, 32], strides = [1, 1]} : vector<6x32xf32> to vector<1x32xf32>
    %307 = tpu.concatenate %305, %306 in 0 : vector<1x32xf32>, vector<1x32xf32> -> vector<2x32xf32>
    %c0_130 = arith.constant 0 : index
    %c0_131 = arith.constant 0 : index
    %308 = vector.load %arg16[%c0_130, %c0_131] : memref<1x32xf32, #tpu.memory_space<vmem>>, vector<1x32xf32>
    %c0_132 = arith.constant 0 : index
    %c0_133 = arith.constant 0 : index
    %309 = vector.load %arg17[%c0_132, %c0_133] : memref<1x32xf32, #tpu.memory_space<vmem>>, vector<1x32xf32>
    %cst_134 = arith.constant dense<0.000000e+00> : vector<2xf32>
    %310 = vector.multi_reduction <add>, %307, %cst_134 [1] : vector<2x32xf32> to vector<2xf32>
    %311 = vector.shape_cast %310 : vector<2xf32> to vector<2x1xf32>
    %cst_135 = arith.constant 3.200000e+01 : f32
    %312 = vector.broadcast %cst_135 : f32 to vector<2x1xf32>
    %313 = arith.divf %311, %312 : vector<2x1xf32>
    %314 = vector.broadcast %313 : vector<2x1xf32> to vector<2x32xf32>
    %315 = arith.subf %307, %314 : vector<2x32xf32>
    %316 = arith.mulf %315, %315 : vector<2x32xf32>
    %cst_136 = arith.constant dense<0.000000e+00> : vector<2xf32>
    %317 = vector.multi_reduction <add>, %316, %cst_136 [1] : vector<2x32xf32> to vector<2xf32>
    %318 = vector.shape_cast %317 : vector<2xf32> to vector<2x1xf32>
    %cst_137 = arith.constant 3.200000e+01 : f32
    %319 = vector.broadcast %cst_137 : f32 to vector<2x1xf32>
    %320 = arith.divf %318, %319 : vector<2x1xf32>
    %321 = vector.broadcast %313 : vector<2x1xf32> to vector<2x32xf32>
    %322 = arith.subf %307, %321 : vector<2x32xf32>
    %cst_138 = arith.constant 9.99999974E-6 : f32
    %323 = vector.broadcast %cst_138 : f32 to vector<2x1xf32>
    %324 = arith.addf %320, %323 : vector<2x1xf32>
    %325 = math.rsqrt %324 : vector<2x1xf32>
    %326 = vector.broadcast %325 : vector<2x1xf32> to vector<2x32xf32>
    %327 = arith.mulf %322, %326 : vector<2x32xf32>
    %328 = vector.broadcast %308 : vector<1x32xf32> to vector<2x32xf32>
    %329 = arith.mulf %327, %328 : vector<2x32xf32>
    %330 = vector.broadcast %309 : vector<1x32xf32> to vector<2x32xf32>
    %331 = arith.addf %329, %330 : vector<2x32xf32>
    %c0_139 = arith.constant 0 : index
    %c0_140 = arith.constant 0 : index
    %332 = vector.load %arg18[%c0_139, %c0_140] : memref<32x32xf32, #tpu.memory_space<vmem>>, vector<32x32xf32>
    %cst_141 = arith.constant dense<0.000000e+00> : vector<2x32xf32>
    %333 = tpu.matmul %331, %332, %cst_141 {dimension_numbers = #tpu.dot_dimension_numbers<[1], [0], [0], [1], [0, 0, 1, 1], [], []>} : vector<2x32xf32>, vector<32x32xf32>, vector<2x32xf32> -> vector<2x32xf32>
    %c0_142 = arith.constant 0 : index
    %c0_143 = arith.constant 0 : index
    %334 = vector.load %arg19[%c0_142, %c0_143] : memref<1x32xf32, #tpu.memory_space<vmem>>, vector<1x32xf32>
    %335 = vector.broadcast %334 : vector<1x32xf32> to vector<2x32xf32>
    %336 = arith.addf %333, %335 : vector<2x32xf32>
    %c0_144 = arith.constant 0 : index
    %c0_145 = arith.constant 0 : index
    %337 = vector.load %arg20[%c0_144, %c0_145] : memref<32x10xf32, #tpu.memory_space<vmem>>, vector<32x10xf32>
    %cst_146 = arith.constant dense<0.000000e+00> : vector<2x10xf32>
    %338 = tpu.matmul %336, %337, %cst_146 {dimension_numbers = #tpu.dot_dimension_numbers<[1], [0], [0], [1], [0, 0, 1, 1], [], []>} : vector<2x32xf32>, vector<32x10xf32>, vector<2x10xf32> -> vector<2x10xf32>
    %c0_147 = arith.constant 0 : index
    %c0_148 = arith.constant 0 : index
    %339 = vector.load %arg21[%c0_147, %c0_148] : memref<1x10xf32, #tpu.memory_space<vmem>>, vector<1x10xf32>
    %340 = vector.broadcast %339 : vector<1x10xf32> to vector<2x10xf32>
    %341 = arith.addf %338, %340 : vector<2x10xf32>
    %c0_149 = arith.constant 0 : index
    %c0_150 = arith.constant 0 : index
    %342 = vector.load %arg24[%c0_149, %c0_150] : memref<2x10xf32, #tpu.memory_space<vmem>>, vector<2x10xf32>
    tpu.vector_store %arg24[%c0_149, %c0_150], %341 {strides = array<i32>} : memref<2x10xf32, #tpu.memory_space<vmem>>, vector<2x10xf32>,
    return
  }
  func.func @transform_0(%arg0: i32) -> (i32, i32) {
    %c0_i32 = arith.constant 0 : i32
    %c0_i32_0 = arith.constant 0 : i32
    %c0_i32_1 = arith.constant 0 : i32
    return %c0_i32, %c0_i32_0 : i32, i32
  }
  func.func @transform_1(%arg0: i32) -> (i32, i32) {
    %c0_i32 = arith.constant 0 : i32
    %c0_i32_0 = arith.constant 0 : i32
    %c0_i32_1 = arith.constant 0 : i32
    return %c0_i32, %c0_i32_0 : i32, i32
  }
  func.func @transform_2(%arg0: i32) -> (i32, i32) {
    %c0_i32 = arith.constant 0 : i32
    %c0_i32_0 = arith.constant 0 : i32
    %c0_i32_1 = arith.constant 0 : i32
    return %c0_i32, %c0_i32_0 : i32, i32
  }
  func.func @transform_3(%arg0: i32) -> (i32, i32) {
    %c0_i32 = arith.constant 0 : i32
    %c0_i32_0 = arith.constant 0 : i32
    %c0_i32_1 = arith.constant 0 : i32
    return %c0_i32, %c0_i32_0 : i32, i32
  }
  func.func @transform_4(%arg0: i32) -> (i32, i32) {
    %c0_i32 = arith.constant 0 : i32
    %c0_i32_0 = arith.constant 0 : i32
    %c0_i32_1 = arith.constant 0 : i32
    return %c0_i32, %c0_i32_0 : i32, i32
  }
  func.func @transform_5(%arg0: i32) -> (i32, i32, i32) {
    %c0_i32 = arith.constant 0 : i32
    %c0_i32_0 = arith.constant 0 : i32
    %c0_i32_1 = arith.constant 0 : i32
    %c0_i32_2 = arith.constant 0 : i32
    return %c0_i32, %c0_i32_0, %c0_i32_1 : i32, i32, i32
  }
  func.func @transform_6(%arg0: i32) -> (i32, i32, i32) {
    %c0_i32 = arith.constant 0 : i32
    %c0_i32_0 = arith.constant 0 : i32
    %c0_i32_1 = arith.constant 0 : i32
    %c0_i32_2 = arith.constant 0 : i32
    return %c0_i32, %c0_i32_0, %c0_i32_1 : i32, i32, i32
  }
  func.func @transform_7(%arg0: i32) -> (i32, i32, i32) {
    %c0_i32 = arith.constant 0 : i32
    %c0_i32_0 = arith.constant 0 : i32
    %c0_i32_1 = arith.constant 0 : i32
    %c0_i32_2 = arith.constant 0 : i32
    return %c0_i32, %c0_i32_0, %c0_i32_1 : i32, i32, i32
  }
  func.func @transform_8(%arg0: i32) -> (i32, i32, i32) {
    %c0_i32 = arith.constant 0 : i32
    %c0_i32_0 = arith.constant 0 : i32
    %c0_i32_1 = arith.constant 0 : i32
    %c0_i32_2 = arith.constant 0 : i32
    return %c0_i32, %c0_i32_0, %c0_i32_1 : i32, i32, i32
  }
  func.func @transform_9(%arg0: i32) -> (i32, i32, i32) {
    %c0_i32 = arith.constant 0 : i32
    %c0_i32_0 = arith.constant 0 : i32
    %c0_i32_1 = arith.constant 0 : i32
    %c0_i32_2 = arith.constant 0 : i32
    return %c0_i32, %c0_i32_0, %c0_i32_1 : i32, i32, i32
  }
  func.func @transform_10(%arg0: i32) -> (i32, i32, i32) {
    %c0_i32 = arith.constant 0 : i32
    %c0_i32_0 = arith.constant 0 : i32
    %c0_i32_1 = arith.constant 0 : i32
    %c0_i32_2 = arith.constant 0 : i32
    return %c0_i32, %c0_i32_0, %c0_i32_1 : i32, i32, i32
  }
  func.func @transform_11(%arg0: i32) -> (i32, i32, i32) {
    %c0_i32 = arith.constant 0 : i32
    %c0_i32_0 = arith.constant 0 : i32
    %c0_i32_1 = arith.constant 0 : i32
    %c0_i32_2 = arith.constant 0 : i32
    return %c0_i32, %c0_i32_0, %c0_i32_1 : i32, i32, i32
  }
  func.func @transform_12(%arg0: i32) -> (i32, i32, i32) {
    %c0_i32 = arith.constant 0 : i32
    %c0_i32_0 = arith.constant 0 : i32
    %c0_i32_1 = arith.constant 0 : i32
    %c0_i32_2 = arith.constant 0 : i32
    return %c0_i32, %c0_i32_0, %c0_i32_1 : i32, i32, i32
  }
  func.func @transform_13(%arg0: i32) -> (i32, i32, i32) {
    %c0_i32 = arith.constant 0 : i32
    %c0_i32_0 = arith.constant 0 : i32
    %c0_i32_1 = arith.constant 0 : i32
    %c0_i32_2 = arith.constant 0 : i32
    return %c0_i32, %c0_i32_0, %c0_i32_1 : i32, i32, i32
  }
  func.func @transform_14(%arg0: i32) -> (i32, i32, i32) {
    %c0_i32 = arith.constant 0 : i32
    %c0_i32_0 = arith.constant 0 : i32
    %c0_i32_1 = arith.constant 0 : i32
    %c0_i32_2 = arith.constant 0 : i32
    return %c0_i32, %c0_i32_0, %c0_i32_1 : i32, i32, i32
  }
  func.func @transform_15(%arg0: i32) -> (i32, i32) {
    %c0_i32 = arith.constant 0 : i32
    %c0_i32_0 = arith.constant 0 : i32
    %c0_i32_1 = arith.constant 0 : i32
    return %c0_i32, %c0_i32_0 : i32, i32
  }
  func.func @transform_16(%arg0: i32) -> (i32, i32) {
    %c0_i32 = arith.constant 0 : i32
    %c0_i32_0 = arith.constant 0 : i32
    %c0_i32_1 = arith.constant 0 : i32
    return %c0_i32, %c0_i32_0 : i32, i32
  }
  func.func @transform_17(%arg0: i32) -> (i32, i32) {
    %c0_i32 = arith.constant 0 : i32
    %c0_i32_0 = arith.constant 0 : i32
    %c0_i32_1 = arith.constant 0 : i32
    return %c0_i32, %c0_i32_0 : i32, i32
  }
  func.func @transform_18(%arg0: i32) -> (i32, i32) {
    %c0_i32 = arith.constant 0 : i32
    %c0_i32_0 = arith.constant 0 : i32
    %c0_i32_1 = arith.constant 0 : i32
    return %c0_i32, %c0_i32_0 : i32, i32
  }
  func.func @transform_19(%arg0: i32) -> (i32, i32) {
    %c0_i32 = arith.constant 0 : i32
    %c0_i32_0 = arith.constant 0 : i32
    %c0_i32_1 = arith.constant 0 : i32
    return %c0_i32, %c0_i32_0 : i32, i32
  }
  func.func @transform_20(%arg0: i32) -> (i32, i32) {
    %c0_i32 = arith.constant 0 : i32
    %c0_i32_0 = arith.constant 0 : i32
    %c0_i32_1 = arith.constant 0 : i32
    return %c0_i32, %c0_i32_0 : i32, i32
  }
  func.func @transform_21(%arg0: i32) -> (i32, i32) {
    %c0_i32 = arith.constant 0 : i32
    %c0_i32_0 = arith.constant 0 : i32
    %c0_i32_1 = arith.constant 0 : i32
    return %c0_i32, %c0_i32_0 : i32, i32
  }
  func.func @transform_22(%arg0: i32) -> (i32, i32) {
    %c0_i32 = arith.constant 0 : i32
    %c0_i32_0 = arith.constant 0 : i32
    %c0_i32_1 = arith.constant 0 : i32
    return %c0_i32, %c0_i32_0 : i32, i32
  }
  func.func @transform_23(%arg0: i32) -> (i32, i32) {
    %c0_i32 = arith.constant 0 : i32
    %c0_i32_0 = arith.constant 0 : i32
    %c0_i32_1 = arith.constant 0 : i32
    return %c0_i32, %c0_i32_0 : i32, i32
  }
}

</mosaic_0001>

<llo_original>
// kernel: vit_forward_pallas.1
$region0: #{vit_forward_pallas.1}
  #allocation0 [shape = 'u32[]', space=smem, size = 0x4, offset = 0x4, fixed_abs, tag = 'smem constant byte address 0x4 - core index']
  #allocation1 [shape = 'u32[144,128]{1,0:T(1,128)}', space=vmem, size = 0x12000, scoped, tag = 'internal scratch']
  %s0 = inlined_call_operand.vmem [shape: f32[4,32], index: 0, kind: input, shape index: {}]
  %s1 = inlined_call_operand.vmem [shape: f32[32,32], index: 1, kind: input, shape index: {}]
  %s2 = inlined_call_operand.vmem [shape: f32[1,32], index: 2, kind: input, shape index: {}]
  %s3 = inlined_call_operand.vmem [shape: f32[2,32], index: 3, kind: input, shape index: {}]
  %s4 = inlined_call_operand.vmem [shape: f32[2,32], index: 4, kind: input, shape index: {}]
  %s5 = inlined_call_operand.vmem [shape: f32[2,1,32], index: 5, kind: input, shape index: {}]
  %s6 = inlined_call_operand.vmem [shape: f32[2,1,32], index: 6, kind: input, shape index: {}]
  %s7 = inlined_call_operand.vmem [shape: f32[2,32,96], index: 7, kind: input, shape index: {}]
  %s8 = inlined_call_operand.vmem [shape: f32[2,1,96], index: 8, kind: input, shape index: {}]
  %s9 = inlined_call_operand.vmem [shape: f32[2,32,32], index: 9, kind: input, shape index: {}]
  %s10 = inlined_call_operand.vmem [shape: f32[2,1,32], index: 10, kind: input, shape index: {}]
  %s11 = inlined_call_operand.vmem [shape: f32[2,32,128], index: 11, kind: input, shape index: {}]
  %s12 = inlined_call_operand.vmem [shape: f32[2,1,128], index: 12, kind: input, shape index: {}]
  %s13 = inlined_call_operand.vmem [shape: f32[2,128,32], index: 13, kind: input, shape index: {}]
  %s14 = inlined_call_operand.vmem [shape: f32[2,1,32], index: 14, kind: input, shape index: {}]
  %s15 = inlined_call_operand.vmem [shape: f32[1,32], index: 15, kind: input, shape index: {}]
  %s16 = inlined_call_operand.vmem [shape: f32[1,32], index: 16, kind: input, shape index: {}]
  %s17 = inlined_call_operand.vmem [shape: f32[32,32], index: 17, kind: input, shape index: {}]
  %s18 = inlined_call_operand.vmem [shape: f32[1,32], index: 18, kind: input, shape index: {}]
  %s19 = inlined_call_operand.vmem [shape: f32[32,10], index: 19, kind: input, shape index: {}]
  %s20 = inlined_call_operand.vmem [shape: f32[1,10], index: 20, kind: input, shape index: {}]
  %s21 = inlined_call_operand.vmem [shape: f32[32,4], index: 21, kind: input, shape index: {}]
  %s22 = inlined_call_operand.vmem [shape: f32[4,32], index: 22, kind: input, shape index: {}]
  %s23 = inlined_call_operand.hbm [shape: f32[2,10], index: 23, kind: output, shape index: {}]
  %s24 = sld [smem:[#allocation0]]
  $region102: #{vit_forward_pallas.1} parent=0
    _
  %s26 = ssub.s32 1, %s24
  %s27 = scalar_select 0, %s26, %s24
  $region1: #{vit_forward_pallas.1} parent=0
    #allocation2 [shape = 'u8[1024]{0}', space=vmem, size = 0x400, scoped, tag = 'output window, operand 0, single buffered']
    #allocation3 [shape = 's32[1]{0}', space=sflag, size = 0x4, scoped, tag = 'scoped memory for vit_forward_pallas.1']
    %28 = vsyncpa [#allocation3], 0
    // Predicated region
    $region2: #{vit_forward_pallas.1} parent=1 // pred_check
      _
    $region3: #{vit_forward_pallas.1} parent=1 // pred_check_branch
      %30 = sbr.rel (0) target = $region5
    $region4: #{vit_forward_pallas.1} parent=1 // pred_region
      _
    $region5: #{vit_forward_pallas.1} parent=1 // pred_fallthru
      _
    // Predicated region
    $region6: #{vit_forward_pallas.1} parent=1 // pred_check
      _
    $region7: #{vit_forward_pallas.1} parent=1 // pred_check_branch
      %32 = sbr.rel (0) target = $region9
    $region8: #{vit_forward_pallas.1} parent=1 // pred_region
      _
    $region9: #{vit_forward_pallas.1} parent=1 // pred_fallthru
      _
    // Predicated region
    $region10: #{vit_forward_pallas.1} parent=1 // pred_check
      _
    $region11: #{vit_forward_pallas.1} parent=1 // pred_check_branch
      %34 = sbr.rel (0) target = $region13
    $region12: #{vit_forward_pallas.1} parent=1 // pred_region
      _
    $region13: #{vit_forward_pallas.1} parent=1 // pred_fallthru
      _
    // Predicated region
    $region14: #{vit_forward_pallas.1} parent=1 // pred_check
      _
    $region15: #{vit_forward_pallas.1} parent=1 // pred_check_branch
      %36 = sbr.rel (0) target = $region17
    $region16: #{vit_forward_pallas.1} parent=1 // pred_region
      _
    $region17: #{vit_forward_pallas.1} parent=1 // pred_fallthru
      _
    // Predicated region
    $region18: #{vit_forward_pallas.1} parent=1 // pred_check
      _
    $region19: #{vit_forward_pallas.1} parent=1 // pred_check_branch
      %38 = sbr.rel (0) target = $region21
    $region20: #{vit_forward_pallas.1} parent=1 // pred_region
      _
    $region21: #{vit_forward_pallas.1} parent=1 // pred_fallthru
      _
    // Predicated region
    $region22: #{vit_forward_pallas.1} parent=1 // pred_check
      _
    $region23: #{vit_forward_pallas.1} parent=1 // pred_check_branch
      %40 = sbr.rel (0) target = $region25
    $region24: #{vit_forward_pallas.1} parent=1 // pred_region
      _
    $region25: #{vit_forward_pallas.1} parent=1 // pred_fallthru
      _
    // Predicated region
    $region26: #{vit_forward_pallas.1} parent=1 // pred_check
      _
    $region27: #{vit_forward_pallas.1} parent=1 // pred_check_branch
      %42 = sbr.rel (0) target = $region29
    $region28: #{vit_forward_pallas.1} parent=1 // pred_region
      _
    $region29: #{vit_forward_pallas.1} parent=1 // pred_fallthru
      _
    // Predicated region
    $region30: #{vit_forward_pallas.1} parent=1 // pred_check
      _
    $region31: #{vit_forward_pallas.1} parent=1 // pred_check_branch
      %44 = sbr.rel (0) target = $region33
    $region32: #{vit_forward_pallas.1} parent=1 // pred_region
      _
    $region33: #{vit_forward_pallas.1} parent=1 // pred_fallthru
      _
    // Predicated region
    $region34: #{vit_forward_pallas.1} parent=1 // pred_check
      _
    $region35: #{vit_forward_pallas.1} parent=1 // pred_check_branch
      %46 = sbr.rel (0) target = $region37
    $region36: #{vit_forward_pallas.1} parent=1 // pred_region
      _
    $region37: #{vit_forward_pallas.1} parent=1 // pred_fallthru
      _
    // Predicated region
    $region38: #{vit_forward_pallas.1} parent=1 // pred_check
      _
    $region39: #{vit_forward_pallas.1} parent=1 // pred_check_branch
      %48 = sbr.rel (0) target = $region41
    $region40: #{vit_forward_pallas.1} parent=1 // pred_region
      _
    $region41: #{vit_forward_pallas.1} parent=1 // pred_fallthru
      _
    // Predicated region
    $region42: #{vit_forward_pallas.1} parent=1 // pred_check
      _
    $region43: #{vit_forward_pallas.1} parent=1 // pred_check_branch
      %50 = sbr.rel (0) target = $region45
    $region44: #{vit_forward_pallas.1} parent=1 // pred_region
      _
    $region45: #{vit_forward_pallas.1} parent=1 // pred_fallthru
      _
    // Predicated region
    $region46: #{vit_forward_pallas.1} parent=1 // pred_check
      _
    $region47: #{vit_forward_pallas.1} parent=1 // pred_check_branch
      %52 = sbr.rel (0) target = $region49
    $region48: #{vit_forward_pallas.1} parent=1 // pred_region
      _
    $region49: #{vit_forward_pallas.1} parent=1 // pred_fallthru
      _
    // Predicated region
    $region50: #{vit_forward_pallas.1} parent=1 // pred_check
      _
    $region51: #{vit_forward_pallas.1} parent=1 // pred_check_branch
      %54 = sbr.rel (0) target = $region53
    $region52: #{vit_forward_pallas.1} parent=1 // pred_region
      _
    $region53: #{vit_forward_pallas.1} parent=1 // pred_fallthru
      _
    // Predicated region
    $region54: #{vit_forward_pallas.1} parent=1 // pred_check
      _
    $region55: #{vit_forward_pallas.1} parent=1 // pred_check_branch
      %56 = sbr.rel (0) target = $region57
    $region56: #{vit_forward_pallas.1} parent=1 // pred_region
      _
    $region57: #{vit_forward_pallas.1} parent=1 // pred_fallthru
      _
    // Predicated region
    $region58: #{vit_forward_pallas.1} parent=1 // pred_check
      _
    $region59: #{vit_forward_pallas.1} parent=1 // pred_check_branch
      %58 = sbr.rel (0) target = $region61
    $region60: #{vit_forward_pallas.1} parent=1 // pred_region
      _
    $region61: #{vit_forward_pallas.1} parent=1 // pred_fallthru
      _
    // Predicated region
    $region62: #{vit_forward_pallas.1} parent=1 // pred_check
      _
    $region63: #{vit_forward_pallas.1} parent=1 // pred_check_branch
      %60 = sbr.rel (0) target = $region65
    $region64: #{vit_forward_pallas.1} parent=1 // pred_region
      _
    $region65: #{vit_forward_pallas.1} parent=1 // pred_fallthru
      _
    // Predicated region
    $region66: #{vit_forward_pallas.1} parent=1 // pred_check
      _
    $region67: #{vit_forward_pallas.1} parent=1 // pred_check_branch
      %62 = sbr.rel (0) target = $region69
    $region68: #{vit_forward_pallas.1} parent=1 // pred_region
      _
    $region69: #{vit_forward_pallas.1} parent=1 // pred_fallthru
      _
    // Predicated region
    $region70: #{vit_forward_pallas.1} parent=1 // pred_check
      _
    $region71: #{vit_forward_pallas.1} parent=1 // pred_check_branch
      %64 = sbr.rel (0) target = $region73
    $region72: #{vit_forward_pallas.1} parent=1 // pred_region
      _
    $region73: #{vit_forward_pallas.1} parent=1 // pred_fallthru
      _
    // Predicated region
    $region74: #{vit_forward_pallas.1} parent=1 // pred_check
      _
    $region75: #{vit_forward_pallas.1} parent=1 // pred_check_branch
      %66 = sbr.rel (0) target = $region77
    $region76: #{vit_forward_pallas.1} parent=1 // pred_region
      _
    $region77: #{vit_forward_pallas.1} parent=1 // pred_fallthru
      _
    // Predicated region
    $region78: #{vit_forward_pallas.1} parent=1 // pred_check
      _
    $region79: #{vit_forward_pallas.1} parent=1 // pred_check_branch
      %68 = sbr.rel (0) target = $region81
    $region80: #{vit_forward_pallas.1} parent=1 // pred_region
      _
    $region81: #{vit_forward_pallas.1} parent=1 // pred_fallthru
      _
    // Predicated region
    $region82: #{vit_forward_pallas.1} parent=1 // pred_check
      _
    $region83: #{vit_forward_pallas.1} parent=1 // pred_check_branch
      %70 = sbr.rel (0) target = $region85
    $region84: #{vit_forward_pallas.1} parent=1 // pred_region
      _
    $region85: #{vit_forward_pallas.1} parent=1 // pred_fallthru
      _
    // Predicated region
    $region86: #{vit_forward_pallas.1} parent=1 // pred_check
      _
    $region87: #{vit_forward_pallas.1} parent=1 // pred_check_branch
      %72 = sbr.rel (0) target = $region89
    $region88: #{vit_forward_pallas.1} parent=1 // pred_region
      _
    $region89: #{vit_forward_pallas.1} parent=1 // pred_fallthru
      _
    // Predicated region
    $region90: #{vit_forward_pallas.1} parent=1 // pred_check
      _
    $region91: #{vit_forward_pallas.1} parent=1 // pred_check_branch
      %74 = sbr.rel (0) target = $region93
    $region92: #{vit_forward_pallas.1} parent=1 // pred_region
      _
    $region93: #{vit_forward_pallas.1} parent=1 // pred_fallthru
      _
    %v75 = vld [vmem:[%s0] sm:$0xf]
    %v76 = vld [vmem:[%s1] sm:$0xff]
    %v77 = vld [vmem:[%s1 + $0x8] sm:$0xff]
    %v78 = vld [vmem:[%s1 + $0x10] sm:$0xff]
    %v79 = vld [vmem:[%s1 + $0x18] sm:$0xff]
    %v80 = vld [vmem:[%s2] sm:$0x1]
    %v82 = vlaneseq
    %v83 = vshrl.u32 %v82, 7
    %v84 = vsub.s32 0, %v83
    %v85 = vrot.slane %v80, %v84
    %vm87 = vcmask 261120
    %v89 = vsel %vm87, %v75, 0
    %91 = vmatprep.subr.mxu0 0.0
    %92 = vmatpush1.msra.mxu0 %v76
    %93 = vmatprep.subr.mxu0 0.0
    %94 = vmatpush1.msra.mxu0 %v77
    %95 = vmatprep.subr.mxu0 0.0
    %96 = vmatpush1.msra.mxu0 %v78
    %97 = vmatprep.subr.mxu0 0.0
    %98 = vmatpush1.msra.mxu0 %v79
    %99 = vmatprep.subr.mxu0 0.0
    %100 = vmatpush1.msra.mxu0 0.0
    %101 = vmatprep.subr.mxu0 0.0
    %102 = vmatpush1.msra.mxu0 0.0
    %103 = vmatprep.subr.mxu0 0.0
    %104 = vmatpush1.msra.mxu0 0.0
    %105 = vmatprep.subr.mxu0 0.0
    %106 = vmatpush1.msra.mxu0 0.0
    %107 = vmatprep.subr.mxu0 0.0
    %108 = vmatpush1.msra.mxu0 0.0
    %109 = vmatprep.subr.mxu0 0.0
    %110 = vmatpush1.msra.mxu0 0.0
    %111 = vmatprep.subr.mxu0 0.0
    %112 = vmatpush1.msra.mxu0 0.0
    %113 = vmatprep.subr.mxu0 0.0
    %114 = vmatpush1.msra.mxu0 0.0
    %115 = vmatprep.subr.mxu0 0.0
    %116 = vmatpush1.msra.mxu0 0.0
    %117 = vmatprep.subr.mxu0 0.0
    %118 = vmatpush1.msra.mxu0 0.0
    %119 = vmatprep.subr.mxu0 0.0
    %120 = vmatpush1.msra.mxu0 0.0
    %121 = vmatprep.subr.mxu0 0.0
    %122 = vmatpush1.msra.mxu0 0.0
    %123 = vmatprep.subr.mxu0 0.0
    %124 = vmatpush1.msra.mxu0 0.0
    %125 = vmatprep.subr.mxu0 0.0
    %126 = vmatpush1.msra.mxu0 0.0
    %127 = vmatprep.subr.mxu0 0.0
    %128 = vmatpush1.msra.mxu0 0.0
    %129 = vmatprep.subr.mxu0 0.0
    %130 = vmatpush1.msra.mxu0 0.0
    %131 = vmatprep.subr.mxu0 0.0
    %132 = vmatpush1.msra.mxu0 0.0
    %133 = vmatprep.subr.mxu0 0.0
    %134 = vmatpush1.msra.mxu0 0.0
    %135 = vmatprep.subr.mxu0 0.0
    %136 = vmatpush1.msra.mxu0 0.0
    %137 = vmatprep.subr.mxu0 0.0
    %138 = vmatpush1.msra.mxu0 0.0
    %139 = vmatprep.subr.mxu0 0.0
    %140 = vmatpush1.msra.mxu0 0.0
    %141 = vmatprep.subr.mxu0 0.0
    %142 = vmatpush1.msra.mxu0 0.0
    %143 = vmatprep.subr.mxu0 0.0
    %144 = vmatpush1.msra.mxu0 0.0
    %145 = vmatprep.subr.mxu0 0.0
    %146 = vmatpush1.msra.mxu0 0.0
    %147 = vmatprep.subr.mxu0 0.0
    %148 = vmatpush1.msra.mxu0 0.0
    %149 = vmatprep.subr.mxu0 0.0
    %150 = vmatpush1.msra.mxu0 0.0
    %151 = vmatprep.subr.mxu0 0.0
    %152 = vmatpush1.msra.mxu0 0.0
    %153 = vmatprep.subr.mxu0 0.0
    %154 = vmatpush1.msra.mxu0 0.0
    %155 = vmatprep.mubr.f32.mxu0 0.0
    %156 = vmatmul.mubr.f32.gmra.mrb[0].mxu0 %v89
    %v157 = vpop.f32.mrb[0].mxu0
    %v158 = vadd.f32 %v85, %v157
    %v159 = vpop.f32.mrb[0].mxu0
    %160 = vdwg.mxu0
    %v161 = vld [vmem:[%s3] sm:$0x3]
    %v162 = vld [vmem:[%s4] sm:$0x3]
    %v163 = vadd.f32 %v161, %v162
    %v164 = vlaneseq
    %v165 = vshrl.u32 %v164, 7
    %v166 = vsub.s32 0, %v165
    %v167 = vrot.slane %v162, %v166
    %v168 = vadd.f32 %v158, %v167
    %v169 = vlaneseq
    %v170 = vshrl.u32 %v169, 7
    %v171 = vsub.s32 1, %v170
    %v172 = vrot.slane %v162, %v171
    %v173 = vadd.f32 %v158, %v172
    %v175 = vrot.slane %v168, 7
    %v178 = vrot.slane %v163, 6
    %v181 = vrot.slane %v173, 6
    %vm183 = vcmask 1040384
    %v184 = vsel %vm183, %v163, %v175
    %vm185 = vcmask 1042432
    %v186 = vsel %vm185, %v184, %v178
    %vm187 = vcmask 1043456
    %v188 = vsel %vm187, %v186, %v181
    %v189 = vld [vmem:[%s21] sm:$0xff]
    %v190 = vld [vmem:[%s21 + $0x8] sm:$0xff]
    %v191 = vld [vmem:[%s21 + $0x10] sm:$0xff]
    %v192 = vld [vmem:[%s21 + $0x18] sm:$0xff]
    %v193 = vld [vmem:[%s22] sm:$0xf]
    %v194 = vld [vmem:[%s5] sm:$0x1]
    %v195 = vld [vmem:[%s6] sm:$0x1]
    %vm196 = vcmask 259072
    %v197 = vsel %vm196, %v188, 0.0
    %198 = vadd.xlane.f32.xlu0 %v197
    %v199 = vpop.xlane.xlu0 %198
    %v200 = vrcp.pop 32.0
    %v201 = vmul.f32 %v199, %v200
    %v202 = vsub.f32 %v188, %v201
    %v203 = vmul.f32 %v202, %v202
    %v204 = vsel %vm196, %v203, 0.0
    %205 = vadd.xlane.f32.xlu0 %v204
    %v206 = vpop.xlane.xlu0 %205
    %v207 = vmul.f32 %v206, %v200
    %v208 = vadd.f32 %v207, 1e-05
    %v209 = vrsqrt.pop %v208
    %v210 = vmul.f32 %v202, %v209
    %v212 = vlaneseq
    %v213 = vshrl.u32 %v212, 7
    %v214 = vsub.s32 0, %v213
    %v215 = vrot.slane %v194, %v214
    %v217 = vmul.f32 %v210, %v215
    %v219 = vlaneseq
    %v220 = vshrl.u32 %v219, 7
    %v221 = vsub.s32 0, %v220
    %v222 = vrot.slane %v195, %v221
    %v224 = vadd.f32 %v217, %v222
    %v225 = vld [vmem:[%s7] sm:$0xff]
    %v226 = vld [vmem:[%s7 + $0x8] sm:$0xff]
    %v227 = vld [vmem:[%s7 + $0x10] sm:$0xff]
    %v228 = vld [vmem:[%s7 + $0x18] sm:$0xff]
    %v229 = vld [vmem:[%s8] sm:$0x1]
    %v231 = vlaneseq
    %v232 = vshrl.u32 %v231, 7
    %v233 = vsub.s32 0, %v232
    %v234 = vrot.slane %v229, %v233
    %v237 = vsel %vm87, %v224, 0
    %239 = vmatprep.subr.mxu0 0.0
    %240 = vmatpush1.msra.mxu0 %v225
    %241 = vmatprep.subr.mxu0 0.0
    %242 = vmatpush1.msra.mxu0 %v226
    %243 = vmatprep.subr.mxu0 0.0
    %244 = vmatpush1.msra.mxu0 %v227
    %245 = vmatprep.subr.mxu0 0.0
    %246 = vmatpush1.msra.mxu0 %v228
    %247 = vmatprep.subr.mxu0 0.0
    %248 = vmatpush1.msra.mxu0 0.0
    %249 = vmatprep.subr.mxu0 0.0
    %250 = vmatpush1.msra.mxu0 0.0
    %251 = vmatprep.subr.mxu0 0.0
    %252 = vmatpush1.msra.mxu0 0.0
    %253 = vmatprep.subr.mxu0 0.0
    %254 = vmatpush1.msra.mxu0 0.0
    %255 = vmatprep.subr.mxu0 0.0
    %256 = vmatpush1.msra.mxu0 0.0
    %257 = vmatprep.subr.mxu0 0.0
    %258 = vmatpush1.msra.mxu0 0.0
    %259 = vmatprep.subr.mxu0 0.0
    %260 = vmatpush1.msra.mxu0 0.0
    %261 = vmatprep.subr.mxu0 0.0
    %262 = vmatpush1.msra.mxu0 0.0
    %263 = vmatprep.subr.mxu0 0.0
    %264 = vmatpush1.msra.mxu0 0.0
    %265 = vmatprep.subr.mxu0 0.0
    %266 = vmatpush1.msra.mxu0 0.0
    %267 = vmatprep.subr.mxu0 0.0
    %268 = vmatpush1.msra.mxu0 0.0
    %269 = vmatprep.subr.mxu0 0.0
    %270 = vmatpush1.msra.mxu0 0.0
    %271 = vmatprep.subr.mxu0 0.0
    %272 = vmatpush1.msra.mxu0 0.0
    %273 = vmatprep.subr.mxu0 0.0
    %274 = vmatpush1.msra.mxu0 0.0
    %275 = vmatprep.subr.mxu0 0.0
    %276 = vmatpush1.msra.mxu0 0.0
    %277 = vmatprep.subr.mxu0 0.0
    %278 = vmatpush1.msra.mxu0 0.0
    %279 = vmatprep.subr.mxu0 0.0
    %280 = vmatpush1.msra.mxu0 0.0
    %281 = vmatprep.subr.mxu0 0.0
    %282 = vmatpush1.msra.mxu0 0.0
    %283 = vmatprep.subr.mxu0 0.0
    %284 = vmatpush1.msra.mxu0 0.0
    %285 = vmatprep.subr.mxu0 0.0
    %286 = vmatpush1.msra.mxu0 0.0
    %287 = vmatprep.subr.mxu0 0.0
    %288 = vmatpush1.msra.mxu0 0.0
    %289 = vmatprep.subr.mxu0 0.0
    %290 = vmatpush1.msra.mxu0 0.0
    %291 = vmatprep.subr.mxu0 0.0
    %292 = vmatpush1.msra.mxu0 0.0
    %293 = vmatprep.subr.mxu0 0.0
    %294 = vmatpush1.msra.mxu0 0.0
    %295 = vmatprep.subr.mxu0 0.0
    %296 = vmatpush1.msra.mxu0 0.0
    %297 = vmatprep.subr.mxu0 0.0
    %298 = vmatpush1.msra.mxu0 0.0
    %299 = vmatprep.subr.mxu0 0.0
    %300 = vmatpush1.msra.mxu0 0.0
    %301 = vmatprep.subr.mxu0 0.0
    %302 = vmatpush1.msra.mxu0 0.0
    %303 = vmatprep.mubr.f32.mxu0 0.0
    %304 = vmatmul.mubr.f32.gmra.mrb[0].mxu0 %v237
    %v305 = vpop.f32.mrb[0].mxu0
    %v306 = vadd.f32 %v234, %v305
    %v307 = vpop.f32.mrb[0].mxu0
    %308 = vdwg.mxu0
    %310 = vrot.lane.b32.xlu0 %v306, 96
    %v311 = vpop.permute.xlu0 %310
    %v313 = vmul.f32 %v306, %v311
    %v315 = vsel %vm87, %v313, 0
    %317 = vmatprep.subr.mxu0 0.0
    %318 = vmatpush1.msra.mxu0 %v189
    %319 = vmatprep.subr.mxu0 0.0
    %320 = vmatpush1.msra.mxu0 %v190
    %321 = vmatprep.subr.mxu0 0.0
    %322 = vmatpush1.msra.mxu0 %v191
    %323 = vmatprep.subr.mxu0 0.0
    %324 = vmatpush1.msra.mxu0 %v192
    %325 = vmatprep.subr.mxu0 0.0
    %326 = vmatpush1.msra.mxu0 0.0
    %327 = vmatprep.subr.mxu0 0.0
    %328 = vmatpush1.msra.mxu0 0.0
    %329 = vmatprep.subr.mxu0 0.0
    %330 = vmatpush1.msra.mxu0 0.0
    %331 = vmatprep.subr.mxu0 0.0
    %332 = vmatpush1.msra.mxu0 0.0
    %333 = vmatprep.subr.mxu0 0.0
    %334 = vmatpush1.msra.mxu0 0.0
    %335 = vmatprep.subr.mxu0 0.0
    %336 = vmatpush1.msra.mxu0 0.0
    %337 = vmatprep.subr.mxu0 0.0
    %338 = vmatpush1.msra.mxu0 0.0
    %339 = vmatprep.subr.mxu0 0.0
    %340 = vmatpush1.msra.mxu0 0.0
    %341 = vmatprep.subr.mxu0 0.0
    %342 = vmatpush1.msra.mxu0 0.0
    %343 = vmatprep.subr.mxu0 0.0
    %344 = vmatpush1.msra.mxu0 0.0
    %345 = vmatprep.subr.mxu0 0.0
    %346 = vmatpush1.msra.mxu0 0.0
    %347 = vmatprep.subr.mxu0 0.0
    %348 = vmatpush1.msra.mxu0 0.0
    %349 = vmatprep.subr.mxu0 0.0
    %350 = vmatpush1.msra.mxu0 0.0
    %351 = vmatprep.subr.mxu0 0.0
    %352 = vmatpush1.msra.mxu0 0.0
    %353 = vmatprep.subr.mxu0 0.0
    %354 = vmatpush1.msra.mxu0 0.0
    %355 = vmatprep.subr.mxu0 0.0
    %356 = vmatpush1.msra.mxu0 0.0
    %357 = vmatprep.subr.mxu0 0.0
    %358 = vmatpush1.msra.mxu0 0.0
    %359 = vmatprep.subr.mxu0 0.0
    %360 = vmatpush1.msra.mxu0 0.0
    %361 = vmatprep.subr.mxu0 0.0
    %362 = vmatpush1.msra.mxu0 0.0
    %363 = vmatprep.subr.mxu0 0.0
    %364 = vmatpush1.msra.mxu0 0.0
    %365 = vmatprep.subr.mxu0 0.0
    %366 = vmatpush1.msra.mxu0 0.0
    %367 = vmatprep.subr.mxu0 0.0
    %368 = vmatpush1.msra.mxu0 0.0
    %369 = vmatprep.subr.mxu0 0.0
    %370 = vmatpush1.msra.mxu0 0.0
    %371 = vmatprep.subr.mxu0 0.0
    %372 = vmatpush1.msra.mxu0 0.0
    %373 = vmatprep.subr.mxu0 0.0
    %374 = vmatpush1.msra.mxu0 0.0
    %375 = vmatprep.subr.mxu0 0.0
    %376 = vmatpush1.msra.mxu0 0.0
    %377 = vmatprep.subr.mxu0 0.0
    %378 = vmatpush1.msra.mxu0 0.0
    %379 = vmatprep.subr.mxu0 0.0
    %380 = vmatpush1.msra.mxu0 0.0
    %381 = vmatprep.mubr.f32.mxu0 0.0
    %382 = vmatmul.mubr.f32.gmra.mrb[0].mxu0 %v315
    %v383 = vpop.f32.mrb[0].mxu0
    %v384 = vadd.f32 0.0, %v383
    %v385 = vpop.f32.mrb[0].mxu0
    %386 = vdwg.mxu0
    %v387 = vmul.f32 %v384, 0.35355338
    %v388 = vrot.slane %v306, 3
    %389 = vrot.lane.b32.xlu0 %v388, 96
    %v390 = vpop.permute.xlu0 %389
    %v392 = vmul.f32 %v306, %v390
    %v394 = vsel %vm87, %v392, 0
    %396 = vmatprep.subr.mxu0 0.0
    %397 = vmatpush1.msra.mxu0 %v189
    %398 = vmatprep.subr.mxu0 0.0
    %399 = vmatpush1.msra.mxu0 %v190
    %400 = vmatprep.subr.mxu0 0.0
    %401 = vmatpush1.msra.mxu0 %v191
    %402 = vmatprep.subr.mxu0 0.0
    %403 = vmatpush1.msra.mxu0 %v192
    %404 = vmatprep.subr.mxu0 0.0
    %405 = vmatpush1.msra.mxu0 0.0
    %406 = vmatprep.subr.mxu0 0.0
    %407 = vmatpush1.msra.mxu0 0.0
    %408 = vmatprep.subr.mxu0 0.0
    %409 = vmatpush1.msra.mxu0 0.0
    %410 = vmatprep.subr.mxu0 0.0
    %411 = vmatpush1.msra.mxu0 0.0
    %412 = vmatprep.subr.mxu0 0.0
    %413 = vmatpush1.msra.mxu0 0.0
    %414 = vmatprep.subr.mxu0 0.0
    %415 = vmatpush1.msra.mxu0 0.0
    %416 = vmatprep.subr.mxu0 0.0
    %417 = vmatpush1.msra.mxu0 0.0
    %418 = vmatprep.subr.mxu0 0.0
    %419 = vmatpush1.msra.mxu0 0.0
    %420 = vmatprep.subr.mxu0 0.0
    %421 = vmatpush1.msra.mxu0 0.0
    %422 = vmatprep.subr.mxu0 0.0
    %423 = vmatpush1.msra.mxu0 0.0
    %424 = vmatprep.subr.mxu0 0.0
    %425 = vmatpush1.msra.mxu0 0.0
    %426 = vmatprep.subr.mxu0 0.0
    %427 = vmatpush1.msra.mxu0 0.0
    %428 = vmatprep.subr.mxu0 0.0
    %429 = vmatpush1.msra.mxu0 0.0
    %430 = vmatprep.subr.mxu0 0.0
    %431 = vmatpush1.msra.mxu0 0.0
    %432 = vmatprep.subr.mxu0 0.0
    %433 = vmatpush1.msra.mxu0 0.0
    %434 = vmatprep.subr.mxu0 0.0
    %435 = vmatpush1.msra.mxu0 0.0
    %436 = vmatprep.subr.mxu0 0.0
    %437 = vmatpush1.msra.mxu0 0.0
    %438 = vmatprep.subr.mxu0 0.0
    %439 = vmatpush1.msra.mxu0 0.0
    %440 = vmatprep.subr.mxu0 0.0
    %441 = vmatpush1.msra.mxu0 0.0
    %442 = vmatprep.subr.mxu0 0.0
    %443 = vmatpush1.msra.mxu0 0.0
    %444 = vmatprep.subr.mxu0 0.0
    %445 = vmatpush1.msra.mxu0 0.0
    %446 = vmatprep.subr.mxu0 0.0
    %447 = vmatpush1.msra.mxu0 0.0
    %448 = vmatprep.subr.mxu0 0.0
    %449 = vmatpush1.msra.mxu0 0.0
    %450 = vmatprep.subr.mxu0 0.0
    %451 = vmatpush1.msra.mxu0 0.0
    %452 = vmatprep.subr.mxu0 0.0
    %453 = vmatpush1.msra.mxu0 0.0
    %454 = vmatprep.subr.mxu0 0.0
    %455 = vmatpush1.msra.mxu0 0.0
    %456 = vmatprep.subr.mxu0 0.0
    %457 = vmatpush1.msra.mxu0 0.0
    %458 = vmatprep.subr.mxu0 0.0
    %459 = vmatpush1.msra.mxu0 0.0
    %460 = vmatprep.mubr.f32.mxu0 0.0
    %461 = vmatmul.mubr.f32.gmra.mrb[0].mxu0 %v394
    %v462 = vpop.f32.mrb[0].mxu0
    %v463 = vadd.f32 0.0, %v462
    %v464 = vpop.f32.mrb[0].mxu0
    %465 = vdwg.mxu0
    %v466 = vmul.f32 %v463, 0.35355338
    %v467 = vmax.f32 %v387, %v466
    %v468 = vsub.f32 %v387, %v467
    %v469 = vmul.f32 %v468, 1.442695
    %v470 = vpow.pop %v469
    %v471 = vsub.f32 %v466, %v467
    %v472 = vmul.f32 %v471, 1.442695
    %v473 = vpow.pop %v472
    %v474 = vadd.f32 %v470, %v473
    %v475 = vrcp.pop %v474
    %v476 = vmul.f32 %v470, %v475
    %vm477 = vcmask 31744
    %v479 = vsel %vm477, %v476, 0
    %v482 = vsel %vm187, %v193, 0
    %484 = vmatprep.subr.mxu0 0.0
    %485 = vmatpush1.msra.mxu0 %v482
    %486 = vmatprep.subr.mxu0 0.0
    %487 = vmatpush1.msra.mxu0 0.0
    %488 = vmatprep.subr.mxu0 0.0
    %489 = vmatpush1.msra.mxu0 0.0
    %490 = vmatprep.subr.mxu0 0.0
    %491 = vmatpush1.msra.mxu0 0.0
    %492 = vmatprep.subr.mxu0 0.0
    %493 = vmatpush1.msra.mxu0 0.0
    %494 = vmatprep.subr.mxu0 0.0
    %495 = vmatpush1.msra.mxu0 0.0
    %496 = vmatprep.subr.mxu0 0.0
    %497 = vmatpush1.msra.mxu0 0.0
    %498 = vmatprep.subr.mxu0 0.0
    %499 = vmatpush1.msra.mxu0 0.0
    %500 = vmatprep.subr.mxu0 0.0
    %501 = vmatpush1.msra.mxu0 0.0
    %502 = vmatprep.subr.mxu0 0.0
    %503 = vmatpush1.msra.mxu0 0.0
    %504 = vmatprep.subr.mxu0 0.0
    %505 = vmatpush1.msra.mxu0 0.0
    %506 = vmatprep.subr.mxu0 0.0
    %507 = vmatpush1.msra.mxu0 0.0
    %508 = vmatprep.subr.mxu0 0.0
    %509 = vmatpush1.msra.mxu0 0.0
    %510 = vmatprep.subr.mxu0 0.0
    %511 = vmatpush1.msra.mxu0 0.0
    %512 = vmatprep.subr.mxu0 0.0
    %513 = vmatpush1.msra.mxu0 0.0
    %514 = vmatprep.subr.mxu0 0.0
    %515 = vmatpush1.msra.mxu0 0.0
    %516 = vmatprep.subr.mxu0 0.0
    %517 = vmatpush1.msra.mxu0 0.0
    %518 = vmatprep.subr.mxu0 0.0
    %519 = vmatpush1.msra.mxu0 0.0
    %520 = vmatprep.subr.mxu0 0.0
    %521 = vmatpush1.msra.mxu0 0.0
    %522 = vmatprep.subr.mxu0 0.0
    %523 = vmatpush1.msra.mxu0 0.0
    %524 = vmatprep.subr.mxu0 0.0
    %525 = vmatpush1.msra.mxu0 0.0
    %526 = vmatprep.subr.mxu0 0.0
    %527 = vmatpush1.msra.mxu0 0.0
    %528 = vmatprep.subr.mxu0 0.0
    %529 = vmatpush1.msra.mxu0 0.0
    %530 = vmatprep.subr.mxu0 0.0
    %531 = vmatpush1.msra.mxu0 0.0
    %532 = vmatprep.subr.mxu0 0.0
    %533 = vmatpush1.msra.mxu0 0.0
    %534 = vmatprep.subr.mxu0 0.0
    %535 = vmatpush1.msra.mxu0 0.0
    %536 = vmatprep.subr.mxu0 0.0
    %537 = vmatpush1.msra.mxu0 0.0
    %538 = vmatprep.subr.mxu0 0.0
    %539 = vmatpush1.msra.mxu0 0.0
    %540 = vmatprep.subr.mxu0 0.0
    %541 = vmatpush1.msra.mxu0 0.0
    %542 = vmatprep.subr.mxu0 0.0
    %543 = vmatpush1.msra.mxu0 0.0
    %544 = vmatprep.subr.mxu0 0.0
    %545 = vmatpush1.msra.mxu0 0.0
    %546 = vmatprep.subr.mxu0 0.0
    %547 = vmatpush1.msra.mxu0 0.0
    %548 = vmatprep.mubr.f32.mxu0 0.0
    %549 = vmatmul.mubr.f32.gmra.mrb[0].mxu0 %v479
    %v550 = vpop.f32.mrb[0].mxu0
    %v551 = vadd.f32 0.0, %v550
    %v552 = vpop.f32.mrb[0].mxu0
    %553 = vdwg.mxu0
    %554 = vrot.lane.b32.xlu0 %v306, 64
    %v555 = vpop.permute.xlu0 %554
    %v557 = vmul.f32 %v551, %v555
    %v558 = vmul.f32 %v473, %v475
    %v560 = vsel %vm477, %v558, 0
    %562 = vmatprep.subr.mxu0 0.0
    %563 = vmatpush1.msra.mxu0 %v482
    %564 = vmatprep.subr.mxu0 0.0
    %565 = vmatpush1.msra.mxu0 0.0
    %566 = vmatprep.subr.mxu0 0.0
    %567 = vmatpush1.msra.mxu0 0.0
    %568 = vmatprep.subr.mxu0 0.0
    %569 = vmatpush1.msra.mxu0 0.0
    %570 = vmatprep.subr.mxu0 0.0
    %571 = vmatpush1.msra.mxu0 0.0
    %572 = vmatprep.subr.mxu0 0.0
    %573 = vmatpush1.msra.mxu0 0.0
    %574 = vmatprep.subr.mxu0 0.0
    %575 = vmatpush1.msra.mxu0 0.0
    %576 = vmatprep.subr.mxu0 0.0
    %577 = vmatpush1.msra.mxu0 0.0
    %578 = vmatprep.subr.mxu0 0.0
    %579 = vmatpush1.msra.mxu0 0.0
    %580 = vmatprep.subr.mxu0 0.0
    %581 = vmatpush1.msra.mxu0 0.0
    %582 = vmatprep.subr.mxu0 0.0
    %583 = vmatpush1.msra.mxu0 0.0
    %584 = vmatprep.subr.mxu0 0.0
    %585 = vmatpush1.msra.mxu0 0.0
    %586 = vmatprep.subr.mxu0 0.0
    %587 = vmatpush1.msra.mxu0 0.0
    %588 = vmatprep.subr.mxu0 0.0
    %589 = vmatpush1.msra.mxu0 0.0
    %590 = vmatprep.subr.mxu0 0.0
    %591 = vmatpush1.msra.mxu0 0.0
    %592 = vmatprep.subr.mxu0 0.0
    %593 = vmatpush1.msra.mxu0 0.0
    %594 = vmatprep.subr.mxu0 0.0
    %595 = vmatpush1.msra.mxu0 0.0
    %596 = vmatprep.subr.mxu0 0.0
    %597 = vmatpush1.msra.mxu0 0.0
    %598 = vmatprep.subr.mxu0 0.0
    %599 = vmatpush1.msra.mxu0 0.0
    %600 = vmatprep.subr.mxu0 0.0
    %601 = vmatpush1.msra.mxu0 0.0
    %602 = vmatprep.subr.mxu0 0.0
    %603 = vmatpush1.msra.mxu0 0.0
    %604 = vmatprep.subr.mxu0 0.0
    %605 = vmatpush1.msra.mxu0 0.0
    %606 = vmatprep.subr.mxu0 0.0
    %607 = vmatpush1.msra.mxu0 0.0
    %608 = vmatprep.subr.mxu0 0.0
    %609 = vmatpush1.msra.mxu0 0.0
    %610 = vmatprep.subr.mxu0 0.0
    %611 = vmatpush1.msra.mxu0 0.0
    %612 = vmatprep.subr.mxu0 0.0
    %613 = vmatpush1.msra.mxu0 0.0
    %614 = vmatprep.subr.mxu0 0.0
    %615 = vmatpush1.msra.mxu0 0.0
    %616 = vmatprep.subr.mxu0 0.0
    %617 = vmatpush1.msra.mxu0 0.0
    %618 = vmatprep.subr.mxu0 0.0
    %619 = vmatpush1.msra.mxu0 0.0
    %620 = vmatprep.subr.mxu0 0.0
    %621 = vmatpush1.msra.mxu0 0.0
    %622 = vmatprep.subr.mxu0 0.0
    %623 = vmatpush1.msra.mxu0 0.0
    %624 = vmatprep.subr.mxu0 0.0
    %625 = vmatpush1.msra.mxu0 0.0
    %626 = vmatprep.mubr.f32.mxu0 0.0
    %627 = vmatmul.mubr.f32.gmra.mrb[0].mxu0 %v560
    %v628 = vpop.f32.mrb[0].mxu0
    %v629 = vadd.f32 0.0, %v628
    %v630 = vpop.f32.mrb[0].mxu0
    %631 = vdwg.mxu0
    %632 = vrot.lane.b32.xlu0 %v388, 64
    %v633 = vpop.permute.xlu0 %632
    %v635 = vmul.f32 %v629, %v633
    %v636 = vadd.f32 %v557, %v635
    %v637 = vrot.slane %v306, 5
    %638 = vrot.lane.b32.xlu0 %v637, 96
    %v639 = vpop.permute.xlu0 %638
    %v641 = vmul.f32 %v306, %v639
    %v643 = vrot.slane %v641, 3
    %v644 = vsel %vm87, %v643, 0
    %646 = vmatprep.subr.mxu0 0.0
    %647 = vmatpush1.msra.mxu0 %v189
    %648 = vmatprep.subr.mxu0 0.0
    %649 = vmatpush1.msra.mxu0 %v190
    %650 = vmatprep.subr.mxu0 0.0
    %651 = vmatpush1.msra.mxu0 %v191
    %652 = vmatprep.subr.mxu0 0.0
    %653 = vmatpush1.msra.mxu0 %v192
    %654 = vmatprep.subr.mxu0 0.0
    %655 = vmatpush1.msra.mxu0 0.0
    %656 = vmatprep.subr.mxu0 0.0
    %657 = vmatpush1.msra.mxu0 0.0
    %658 = vmatprep.subr.mxu0 0.0
    %659 = vmatpush1.msra.mxu0 0.0
    %660 = vmatprep.subr.mxu0 0.0
    %661 = vmatpush1.msra.mxu0 0.0
    %662 = vmatprep.subr.mxu0 0.0
    %663 = vmatpush1.msra.mxu0 0.0
    %664 = vmatprep.subr.mxu0 0.0
    %665 = vmatpush1.msra.mxu0 0.0
    %666 = vmatprep.subr.mxu0 0.0
    %667 = vmatpush1.msra.mxu0 0.0
    %668 = vmatprep.subr.mxu0 0.0
    %669 = vmatpush1.msra.mxu0 0.0
    %670 = vmatprep.subr.mxu0 0.0
    %671 = vmatpush1.msra.mxu0 0.0
    %672 = vmatprep.subr.mxu0 0.0
    %673 = vmatpush1.msra.mxu0 0.0
    %674 = vmatprep.subr.mxu0 0.0
    %675 = vmatpush1.msra.mxu0 0.0
    %676 = vmatprep.subr.mxu0 0.0
    %677 = vmatpush1.msra.mxu0 0.0
    %678 = vmatprep.subr.mxu0 0.0
    %679 = vmatpush1.msra.mxu0 0.0
    %680 = vmatprep.subr.mxu0 0.0
    %681 = vmatpush1.msra.mxu0 0.0
    %682 = vmatprep.subr.mxu0 0.0
    %683 = vmatpush1.msra.mxu0 0.0
    %684 = vmatprep.subr.mxu0 0.0
    %685 = vmatpush1.msra.mxu0 0.0
    %686 = vmatprep.subr.mxu0 0.0
    %687 = vmatpush1.msra.mxu0 0.0
    %688 = vmatprep.subr.mxu0 0.0
    %689 = vmatpush1.msra.mxu0 0.0
    %690 = vmatprep.subr.mxu0 0.0
    %691 = vmatpush1.msra.mxu0 0.0
    %692 = vmatprep.subr.mxu0 0.0
    %693 = vmatpush1.msra.mxu0 0.0
    %694 = vmatprep.subr.mxu0 0.0
    %695 = vmatpush1.msra.mxu0 0.0
    %696 = vmatprep.subr.mxu0 0.0
    %697 = vmatpush1.msra.mxu0 0.0
    %698 = vmatprep.subr.mxu0 0.0
    %699 = vmatpush1.msra.mxu0 0.0
    %700 = vmatprep.subr.mxu0 0.0
    %701 = vmatpush1.msra.mxu0 0.0
    %702 = vmatprep.subr.mxu0 0.0
    %703 = vmatpush1.msra.mxu0 0.0
    %704 = vmatprep.subr.mxu0 0.0
    %705 = vmatpush1.msra.mxu0 0.0
    %706 = vmatprep.subr.mxu0 0.0
    %707 = vmatpush1.msra.mxu0 0.0
    %708 = vmatprep.subr.mxu0 0.0
    %709 = vmatpush1.msra.mxu0 0.0
    %710 = vmatprep.mubr.f32.mxu0 0.0
    %711 = vmatmul.mubr.f32.gmra.mrb[0].mxu0 %v644
    %v712 = vpop.f32.mrb[0].mxu0
    %v713 = vadd.f32 0.0, %v712
    %v714 = vpop.f32.mrb[0].mxu0
    %715 = vdwg.mxu0
    %v716 = vmul.f32 %v713, 0.35355338
    %v717 = vrot.slane %v313, 3
    %v718 = vsel %vm87, %v717, 0
    %720 = vmatprep.subr.mxu0 0.0
    %721 = vmatpush1.msra.mxu0 %v189
    %722 = vmatprep.subr.mxu0 0.0
    %723 = vmatpush1.msra.mxu0 %v190
    %724 = vmatprep.subr.mxu0 0.0
    %725 = vmatpush1.msra.mxu0 %v191
    %726 = vmatprep.subr.mxu0 0.0
    %727 = vmatpush1.msra.mxu0 %v192
    %728 = vmatprep.subr.mxu0 0.0
    %729 = vmatpush1.msra.mxu0 0.0
    %730 = vmatprep.subr.mxu0 0.0
    %731 = vmatpush1.msra.mxu0 0.0
    %732 = vmatprep.subr.mxu0 0.0
    %733 = vmatpush1.msra.mxu0 0.0
    %734 = vmatprep.subr.mxu0 0.0
    %735 = vmatpush1.msra.mxu0 0.0
    %736 = vmatprep.subr.mxu0 0.0
    %737 = vmatpush1.msra.mxu0 0.0
    %738 = vmatprep.subr.mxu0 0.0
    %739 = vmatpush1.msra.mxu0 0.0
    %740 = vmatprep.subr.mxu0 0.0
    %741 = vmatpush1.msra.mxu0 0.0
    %742 = vmatprep.subr.mxu0 0.0
    %743 = vmatpush1.msra.mxu0 0.0
    %744 = vmatprep.subr.mxu0 0.0
    %745 = vmatpush1.msra.mxu0 0.0
    %746 = vmatprep.subr.mxu0 0.0
    %747 = vmatpush1.msra.mxu0 0.0
    %748 = vmatprep.subr.mxu0 0.0
    %749 = vmatpush1.msra.mxu0 0.0
    %750 = vmatprep.subr.mxu0 0.0
    %751 = vmatpush1.msra.mxu0 0.0
    %752 = vmatprep.subr.mxu0 0.0
    %753 = vmatpush1.msra.mxu0 0.0
    %754 = vmatprep.subr.mxu0 0.0
    %755 = vmatpush1.msra.mxu0 0.0
    %756 = vmatprep.subr.mxu0 0.0
    %757 = vmatpush1.msra.mxu0 0.0
    %758 = vmatprep.subr.mxu0 0.0
    %759 = vmatpush1.msra.mxu0 0.0
    %760 = vmatprep.subr.mxu0 0.0
    %761 = vmatpush1.msra.mxu0 0.0
    %762 = vmatprep.subr.mxu0 0.0
    %763 = vmatpush1.msra.mxu0 0.0
    %764 = vmatprep.subr.mxu0 0.0
    %765 = vmatpush1.msra.mxu0 0.0
    %766 = vmatprep.subr.mxu0 0.0
    %767 = vmatpush1.msra.mxu0 0.0
    %768 = vmatprep.subr.mxu0 0.0
    %769 = vmatpush1.msra.mxu0 0.0
    %770 = vmatprep.subr.mxu0 0.0
    %771 = vmatpush1.msra.mxu0 0.0
    %772 = vmatprep.subr.mxu0 0.0
    %773 = vmatpush1.msra.mxu0 0.0
    %774 = vmatprep.subr.mxu0 0.0
    %775 = vmatpush1.msra.mxu0 0.0
    %776 = vmatprep.subr.mxu0 0.0
    %777 = vmatpush1.msra.mxu0 0.0
    %778 = vmatprep.subr.mxu0 0.0
    %779 = vmatpush1.msra.mxu0 0.0
    %780 = vmatprep.subr.mxu0 0.0
    %781 = vmatpush1.msra.mxu0 0.0
    %782 = vmatprep.subr.mxu0 0.0
    %783 = vmatpush1.msra.mxu0 0.0
    %784 = vmatprep.mubr.f32.mxu0 0.0
    %785 = vmatmul.mubr.f32.gmra.mrb[0].mxu0 %v718
    %v786 = vpop.f32.mrb[0].mxu0
    %v787 = vadd.f32 0.0, %v786
    %v788 = vpop.f32.mrb[0].mxu0
    %789 = vdwg.mxu0
    %v790 = vmul.f32 %v787, 0.35355338
    %v791 = vmax.f32 %v716, %v790
    %v792 = vsub.f32 %v716, %v791
    %v793 = vmul.f32 %v792, 1.442695
    %v794 = vpow.pop %v793
    %v795 = vsub.f32 %v790, %v791
    %v796 = vmul.f32 %v795, 1.442695
    %v797 = vpow.pop %v796
    %v798 = vadd.f32 %v794, %v797
    %v799 = vrcp.pop %v798
    %v800 = vmul.f32 %v794, %v799
    %v802 = vsel %vm477, %v800, 0
    %804 = vmatprep.subr.mxu0 0.0
    %805 = vmatpush1.msra.mxu0 %v482
    %806 = vmatprep.subr.mxu0 0.0
    %807 = vmatpush1.msra.mxu0 0.0
    %808 = vmatprep.subr.mxu0 0.0
    %809 = vmatpush1.msra.mxu0 0.0
    %810 = vmatprep.subr.mxu0 0.0
    %811 = vmatpush1.msra.mxu0 0.0
    %812 = vmatprep.subr.mxu0 0.0
    %813 = vmatpush1.msra.mxu0 0.0
    %814 = vmatprep.subr.mxu0 0.0
    %815 = vmatpush1.msra.mxu0 0.0
    %816 = vmatprep.subr.mxu0 0.0
    %817 = vmatpush1.msra.mxu0 0.0
    %818 = vmatprep.subr.mxu0 0.0
    %819 = vmatpush1.msra.mxu0 0.0
    %820 = vmatprep.subr.mxu0 0.0
    %821 = vmatpush1.msra.mxu0 0.0
    %822 = vmatprep.subr.mxu0 0.0
    %823 = vmatpush1.msra.mxu0 0.0
    %824 = vmatprep.subr.mxu0 0.0
    %825 = vmatpush1.msra.mxu0 0.0
    %826 = vmatprep.subr.mxu0 0.0
    %827 = vmatpush1.msra.mxu0 0.0
    %828 = vmatprep.subr.mxu0 0.0
    %829 = vmatpush1.msra.mxu0 0.0
    %830 = vmatprep.subr.mxu0 0.0
    %831 = vmatpush1.msra.mxu0 0.0
    %832 = vmatprep.subr.mxu0 0.0
    %833 = vmatpush1.msra.mxu0 0.0
    %834 = vmatprep.subr.mxu0 0.0
    %835 = vmatpush1.msra.mxu0 0.0
    %836 = vmatprep.subr.mxu0 0.0
    %837 = vmatpush1.msra.mxu0 0.0
    %838 = vmatprep.subr.mxu0 0.0
    %839 = vmatpush1.msra.mxu0 0.0
    %840 = vmatprep.subr.mxu0 0.0
    %841 = vmatpush1.msra.mxu0 0.0
    %842 = vmatprep.subr.mxu0 0.0
    %843 = vmatpush1.msra.mxu0 0.0
    %844 = vmatprep.subr.mxu0 0.0
    %845 = vmatpush1.msra.mxu0 0.0
    %846 = vmatprep.subr.mxu0 0.0
    %847 = vmatpush1.msra.mxu0 0.0
    %848 = vmatprep.subr.mxu0 0.0
    %849 = vmatpush1.msra.mxu0 0.0
    %850 = vmatprep.subr.mxu0 0.0
    %851 = vmatpush1.msra.mxu0 0.0
    %852 = vmatprep.subr.mxu0 0.0
    %853 = vmatpush1.msra.mxu0 0.0
    %854 = vmatprep.subr.mxu0 0.0
    %855 = vmatpush1.msra.mxu0 0.0
    %856 = vmatprep.subr.mxu0 0.0
    %857 = vmatpush1.msra.mxu0 0.0
    %858 = vmatprep.subr.mxu0 0.0
    %859 = vmatpush1.msra.mxu0 0.0
    %860 = vmatprep.subr.mxu0 0.0
    %861 = vmatpush1.msra.mxu0 0.0
    %862 = vmatprep.subr.mxu0 0.0
    %863 = vmatpush1.msra.mxu0 0.0
    %864 = vmatprep.subr.mxu0 0.0
    %865 = vmatpush1.msra.mxu0 0.0
    %866 = vmatprep.subr.mxu0 0.0
    %867 = vmatpush1.msra.mxu0 0.0
    %868 = vmatprep.mubr.f32.mxu0 0.0
    %869 = vmatmul.mubr.f32.gmra.mrb[0].mxu0 %v802
    %v870 = vpop.f32.mrb[0].mxu0
    %v871 = vadd.f32 0.0, %v870
    %v872 = vpop.f32.mrb[0].mxu0
    %873 = vdwg.mxu0
    %v874 = vmul.f32 %v871, %v555
    %v875 = vmul.f32 %v797, %v799
    %v877 = vsel %vm477, %v875, 0
    %879 = vmatprep.subr.mxu0 0.0
    %880 = vmatpush1.msra.mxu0 %v482
    %881 = vmatprep.subr.mxu0 0.0
    %882 = vmatpush1.msra.mxu0 0.0
    %883 = vmatprep.subr.mxu0 0.0
    %884 = vmatpush1.msra.mxu0 0.0
    %885 = vmatprep.subr.mxu0 0.0
    %886 = vmatpush1.msra.mxu0 0.0
    %887 = vmatprep.subr.mxu0 0.0
    %888 = vmatpush1.msra.mxu0 0.0
    %889 = vmatprep.subr.mxu0 0.0
    %890 = vmatpush1.msra.mxu0 0.0
    %891 = vmatprep.subr.mxu0 0.0
    %892 = vmatpush1.msra.mxu0 0.0
    %893 = vmatprep.subr.mxu0 0.0
    %894 = vmatpush1.msra.mxu0 0.0
    %895 = vmatprep.subr.mxu0 0.0
    %896 = vmatpush1.msra.mxu0 0.0
    %897 = vmatprep.subr.mxu0 0.0
    %898 = vmatpush1.msra.mxu0 0.0
    %899 = vmatprep.subr.mxu0 0.0
    %900 = vmatpush1.msra.mxu0 0.0
    %901 = vmatprep.subr.mxu0 0.0
    %902 = vmatpush1.msra.mxu0 0.0
    %903 = vmatprep.subr.mxu0 0.0
    %904 = vmatpush1.msra.mxu0 0.0
    %905 = vmatprep.subr.mxu0 0.0
    %906 = vmatpush1.msra.mxu0 0.0
    %907 = vmatprep.subr.mxu0 0.0
    %908 = vmatpush1.msra.mxu0 0.0
    %909 = vmatprep.subr.mxu0 0.0
    %910 = vmatpush1.msra.mxu0 0.0
    %911 = vmatprep.subr.mxu0 0.0
    %912 = vmatpush1.msra.mxu0 0.0
    %913 = vmatprep.subr.mxu0 0.0
    %914 = vmatpush1.msra.mxu0 0.0
    %915 = vmatprep.subr.mxu0 0.0
    %916 = vmatpush1.msra.mxu0 0.0
    %917 = vmatprep.subr.mxu0 0.0
    %918 = vmatpush1.msra.mxu0 0.0
    %919 = vmatprep.subr.mxu0 0.0
    %920 = vmatpush1.msra.mxu0 0.0
    %921 = vmatprep.subr.mxu0 0.0
    %922 = vmatpush1.msra.mxu0 0.0
    %923 = vmatprep.subr.mxu0 0.0
    %924 = vmatpush1.msra.mxu0 0.0
    %925 = vmatprep.subr.mxu0 0.0
    %926 = vmatpush1.msra.mxu0 0.0
    %927 = vmatprep.subr.mxu0 0.0
    %928 = vmatpush1.msra.mxu0 0.0
    %929 = vmatprep.subr.mxu0 0.0
    %930 = vmatpush1.msra.mxu0 0.0
    %931 = vmatprep.subr.mxu0 0.0
    %932 = vmatpush1.msra.mxu0 0.0
    %933 = vmatprep.subr.mxu0 0.0
    %934 = vmatpush1.msra.mxu0 0.0
    %935 = vmatprep.subr.mxu0 0.0
    %936 = vmatpush1.msra.mxu0 0.0
    %937 = vmatprep.subr.mxu0 0.0
    %938 = vmatpush1.msra.mxu0 0.0
    %939 = vmatprep.subr.mxu0 0.0
    %940 = vmatpush1.msra.mxu0 0.0
    %941 = vmatprep.subr.mxu0 0.0
    %942 = vmatpush1.msra.mxu0 0.0
    %943 = vmatprep.mubr.f32.mxu0 0.0
    %944 = vmatmul.mubr.f32.gmra.mrb[0].mxu0 %v877
    %v945 = vpop.f32.mrb[0].mxu0
    %v946 = vadd.f32 0.0, %v945
    %v947 = vpop.f32.mrb[0].mxu0
    %948 = vdwg.mxu0
    %v949 = vmul.f32 %v946, %v633
    %v950 = vadd.f32 %v874, %v949
    %v952 = vrot.slane %v950, 5
    %v954 = vsel %vm185, %v636, %v952
    %v955 = vld [vmem:[%s9] sm:$0xff]
    %v956 = vld [vmem:[%s9 + $0x8] sm:$0xff]
    %v957 = vld [vmem:[%s9 + $0x10] sm:$0xff]
    %v958 = vld [vmem:[%s9 + $0x18] sm:$0xff]
    %v959 = vld [vmem:[%s10] sm:$0x1]
    %v961 = vlaneseq
    %v962 = vshrl.u32 %v961, 7
    %v963 = vsub.s32 0, %v962
    %v964 = vrot.slane %v959, %v963
    %v967 = vsel %vm87, %v954, 0
    %969 = vmatprep.subr.mxu0 0.0
    %970 = vmatpush1.msra.mxu0 %v955
    %971 = vmatprep.subr.mxu0 0.0
    %972 = vmatpush1.msra.mxu0 %v956
    %973 = vmatprep.subr.mxu0 0.0
    %974 = vmatpush1.msra.mxu0 %v957
    %975 = vmatprep.subr.mxu0 0.0
    %976 = vmatpush1.msra.mxu0 %v958
    %977 = vmatprep.subr.mxu0 0.0
    %978 = vmatpush1.msra.mxu0 0.0
    %979 = vmatprep.subr.mxu0 0.0
    %980 = vmatpush1.msra.mxu0 0.0
    %981 = vmatprep.subr.mxu0 0.0
    %982 = vmatpush1.msra.mxu0 0.0
    %983 = vmatprep.subr.mxu0 0.0
    %984 = vmatpush1.msra.mxu0 0.0
    %985 = vmatprep.subr.mxu0 0.0
    %986 = vmatpush1.msra.mxu0 0.0
    %987 = vmatprep.subr.mxu0 0.0
    %988 = vmatpush1.msra.mxu0 0.0
    %989 = vmatprep.subr.mxu0 0.0
    %990 = vmatpush1.msra.mxu0 0.0
    %991 = vmatprep.subr.mxu0 0.0
    %992 = vmatpush1.msra.mxu0 0.0
    %993 = vmatprep.subr.mxu0 0.0
    %994 = vmatpush1.msra.mxu0 0.0
    %995 = vmatprep.subr.mxu0 0.0
    %996 = vmatpush1.msra.mxu0 0.0
    %997 = vmatprep.subr.mxu0 0.0
    %998 = vmatpush1.msra.mxu0 0.0
    %999 = vmatprep.subr.mxu0 0.0
    %1000 = vmatpush1.msra.mxu0 0.0
    %1001 = vmatprep.subr.mxu0 0.0
    %1002 = vmatpush1.msra.mxu0 0.0
    %1003 = vmatprep.subr.mxu0 0.0
    %1004 = vmatpush1.msra.mxu0 0.0
    %1005 = vmatprep.subr.mxu0 0.0
    %1006 = vmatpush1.msra.mxu0 0.0
    %1007 = vmatprep.subr.mxu0 0.0
    %1008 = vmatpush1.msra.mxu0 0.0
    %1009 = vmatprep.subr.mxu0 0.0
    %1010 = vmatpush1.msra.mxu0 0.0
    %1011 = vmatprep.subr.mxu0 0.0
    %1012 = vmatpush1.msra.mxu0 0.0
    %1013 = vmatprep.subr.mxu0 0.0
    %1014 = vmatpush1.msra.mxu0 0.0
    %1015 = vmatprep.subr.mxu0 0.0
    %1016 = vmatpush1.msra.mxu0 0.0
    %1017 = vmatprep.subr.mxu0 0.0
    %1018 = vmatpush1.msra.mxu0 0.0
    %1019 = vmatprep.subr.mxu0 0.0
    %1020 = vmatpush1.msra.mxu0 0.0
    %1021 = vmatprep.subr.mxu0 0.0
    %1022 = vmatpush1.msra.mxu0 0.0
    %1023 = vmatprep.subr.mxu0 0.0
    %1024 = vmatpush1.msra.mxu0 0.0
    %1025 = vmatprep.subr.mxu0 0.0
    %1026 = vmatpush1.msra.mxu0 0.0
    %1027 = vmatprep.subr.mxu0 0.0
    %1028 = vmatpush1.msra.mxu0 0.0
    %1029 = vmatprep.subr.mxu0 0.0
    %1030 = vmatpush1.msra.mxu0 0.0
    %1031 = vmatprep.subr.mxu0 0.0
    %1032 = vmatpush1.msra.mxu0 0.0
    %1033 = vmatprep.mubr.f32.mxu0 0.0
    %1034 = vmatmul.mubr.f32.gmra.mrb[0].mxu0 %v967
    %v1035 = vpop.f32.mrb[0].mxu0
    %v1036 = vadd.f32 %v964, %v1035
    %v1037 = vpop.f32.mrb[0].mxu0
    %1038 = vdwg.mxu0
    %v1039 = vadd.f32 %v1036, %v188
    %v1040 = vsel %vm196, %v1039, 0.0
    %1041 = vadd.xlane.f32.xlu0 %v1040
    %v1042 = vpop.xlane.xlu0 %1041
    %v1043 = vmul.f32 %v1042, %v200
    %v1044 = vsub.f32 %v1039, %v1043
    %v1045 = vmul.f32 %v1044, %v1044
    %v1046 = vsel %vm196, %v1045, 0.0
    %1047 = vadd.xlane.f32.xlu0 %v1046
    %v1048 = vpop.xlane.xlu0 %1047
    %v1049 = vmul.f32 %v1048, %v200
    %v1050 = vadd.f32 %v1049, 1e-05
    %v1051 = vrsqrt.pop %v1050
    %v1052 = vmul.f32 %v1044, %v1051
    %v1053 = vmul.f32 %v1052, %v215
    %v1054 = vadd.f32 %v1053, %v222
    %v1055 = vld [vmem:[%s11] sm:$0xff]
    %v1056 = vld [vmem:[%s11 + $0x8] sm:$0xff]
    %v1057 = vld [vmem:[%s11 + $0x10] sm:$0xff]
    %v1058 = vld [vmem:[%s11 + $0x18] sm:$0xff]
    %v1059 = vld [vmem:[%s12] sm:$0x1]
    %v1061 = vlaneseq
    %v1062 = vshrl.u32 %v1061, 7
    %v1063 = vsub.s32 0, %v1062
    %v1064 = vrot.slane %v1059, %v1063
    %v1067 = vsel %vm87, %v1054, 0
    %1069 = vmatprep.subr.mxu0 0.0
    %1070 = vmatpush1.msra.mxu0 %v1055
    %1071 = vmatprep.subr.mxu0 0.0
    %1072 = vmatpush1.msra.mxu0 %v1056
    %1073 = vmatprep.subr.mxu0 0.0
    %1074 = vmatpush1.msra.mxu0 %v1057
    %1075 = vmatprep.subr.mxu0 0.0
    %1076 = vmatpush1.msra.mxu0 %v1058
    %1077 = vmatprep.subr.mxu0 0.0
    %1078 = vmatpush1.msra.mxu0 0.0
    %1079 = vmatprep.subr.mxu0 0.0
    %1080 = vmatpush1.msra.mxu0 0.0
    %1081 = vmatprep.subr.mxu0 0.0
    %1082 = vmatpush1.msra.mxu0 0.0
    %1083 = vmatprep.subr.mxu0 0.0
    %1084 = vmatpush1.msra.mxu0 0.0
    %1085 = vmatprep.subr.mxu0 0.0
    %1086 = vmatpush1.msra.mxu0 0.0
    %1087 = vmatprep.subr.mxu0 0.0
    %1088 = vmatpush1.msra.mxu0 0.0
    %1089 = vmatprep.subr.mxu0 0.0
    %1090 = vmatpush1.msra.mxu0 0.0
    %1091 = vmatprep.subr.mxu0 0.0
    %1092 = vmatpush1.msra.mxu0 0.0
    %1093 = vmatprep.subr.mxu0 0.0
    %1094 = vmatpush1.msra.mxu0 0.0
    %1095 = vmatprep.subr.mxu0 0.0
    %1096 = vmatpush1.msra.mxu0 0.0
    %1097 = vmatprep.subr.mxu0 0.0
    %1098 = vmatpush1.msra.mxu0 0.0
    %1099 = vmatprep.subr.mxu0 0.0
    %1100 = vmatpush1.msra.mxu0 0.0
    %1101 = vmatprep.subr.mxu0 0.0
    %1102 = vmatpush1.msra.mxu0 0.0
    %1103 = vmatprep.subr.mxu0 0.0
    %1104 = vmatpush1.msra.mxu0 0.0
    %1105 = vmatprep.subr.mxu0 0.0
    %1106 = vmatpush1.msra.mxu0 0.0
    %1107 = vmatprep.subr.mxu0 0.0
    %1108 = vmatpush1.msra.mxu0 0.0
    %1109 = vmatprep.subr.mxu0 0.0
    %1110 = vmatpush1.msra.mxu0 0.0
    %1111 = vmatprep.subr.mxu0 0.0
    %1112 = vmatpush1.msra.mxu0 0.0
    %1113 = vmatprep.subr.mxu0 0.0
    %1114 = vmatpush1.msra.mxu0 0.0
    %1115 = vmatprep.subr.mxu0 0.0
    %1116 = vmatpush1.msra.mxu0 0.0
    %1117 = vmatprep.subr.mxu0 0.0
    %1118 = vmatpush1.msra.mxu0 0.0
    %1119 = vmatprep.subr.mxu0 0.0
    %1120 = vmatpush1.msra.mxu0 0.0
    %1121 = vmatprep.subr.mxu0 0.0
    %1122 = vmatpush1.msra.mxu0 0.0
    %1123 = vmatprep.subr.mxu0 0.0
    %1124 = vmatpush1.msra.mxu0 0.0
    %1125 = vmatprep.subr.mxu0 0.0
    %1126 = vmatpush1.msra.mxu0 0.0
    %1127 = vmatprep.subr.mxu0 0.0
    %1128 = vmatpush1.msra.mxu0 0.0
    %1129 = vmatprep.subr.mxu0 0.0
    %1130 = vmatpush1.msra.mxu0 0.0
    %1131 = vmatprep.subr.mxu0 0.0
    %1132 = vmatpush1.msra.mxu0 0.0
    %1133 = vmatprep.mubr.f32.mxu0 0.0
    %1134 = vmatmul.mubr.f32.gmra.mrb[0].mxu0 %v1067
    %v1135 = vpop.f32.mrb[0].mxu0
    %v1136 = vadd.f32 %v1064, %v1135
    %v1137 = vpop.f32.mrb[0].mxu0
    %1138 = vdwg.mxu0
    %v1139 = vmul.f32 %v1136, 0.5
    %v1140 = vmul.f32 %v1136, 0.70710677
    %v1141 = verf.f32.pop %v1140
    %v1142 = vadd.f32 %v1141, 1.0
    %v1143 = vmul.f32 %v1139, %v1142
    %v1144 = vld [vmem:[%s13] sm:$0xff]
    %v1145 = vld [vmem:[%s13 + $0x8] sm:$0xff]
    %v1146 = vld [vmem:[%s13 + $0x10] sm:$0xff]
    %v1147 = vld [vmem:[%s13 + $0x18] sm:$0xff]
    %v1148 = vld [vmem:[%s13 + $0x20] sm:$0xff]
    %v1149 = vld [vmem:[%s13 + $0x28] sm:$0xff]
    %v1150 = vld [vmem:[%s13 + $0x30] sm:$0xff]
    %v1151 = vld [vmem:[%s13 + $0x38] sm:$0xff]
    %v1152 = vld [vmem:[%s13 + $0x40] sm:$0xff]
    %v1153 = vld [vmem:[%s13 + $0x48] sm:$0xff]
    %v1154 = vld [vmem:[%s13 + $0x50] sm:$0xff]
    %v1155 = vld [vmem:[%s13 + $0x58] sm:$0xff]
    %v1156 = vld [vmem:[%s13 + $0x60] sm:$0xff]
    %v1157 = vld [vmem:[%s13 + $0x68] sm:$0xff]
    %v1158 = vld [vmem:[%s13 + $0x70] sm:$0xff]
    %v1159 = vld [vmem:[%s13 + $0x78] sm:$0xff]
    %v1160 = vld [vmem:[%s14] sm:$0x1]
    %v1162 = vlaneseq
    %v1163 = vshrl.u32 %v1162, 7
    %v1164 = vsub.s32 0, %v1163
    %v1165 = vrot.slane %v1160, %v1164
    %1167 = vmatprep.subr.mxu0 0.0
    %1168 = vmatpush1.msra.mxu0 %v1144
    %1169 = vmatprep.subr.mxu0 0.0
    %1170 = vmatpush1.msra.mxu0 %v1145
    %1171 = vmatprep.subr.mxu0 0.0
    %1172 = vmatpush1.msra.mxu0 %v1146
    %1173 = vmatprep.subr.mxu0 0.0
    %1174 = vmatpush1.msra.mxu0 %v1147
    %1175 = vmatprep.subr.mxu0 0.0
    %1176 = vmatpush1.msra.mxu0 %v1148
    %1177 = vmatprep.subr.mxu0 0.0
    %1178 = vmatpush1.msra.mxu0 %v1149
    %1179 = vmatprep.subr.mxu0 0.0
    %1180 = vmatpush1.msra.mxu0 %v1150
    %1181 = vmatprep.subr.mxu0 0.0
    %1182 = vmatpush1.msra.mxu0 %v1151
    %1183 = vmatprep.subr.mxu0 0.0
    %1184 = vmatpush1.msra.mxu0 %v1152
    %1185 = vmatprep.subr.mxu0 0.0
    %1186 = vmatpush1.msra.mxu0 %v1153
    %1187 = vmatprep.subr.mxu0 0.0
    %1188 = vmatpush1.msra.mxu0 %v1154
    %1189 = vmatprep.subr.mxu0 0.0
    %1190 = vmatpush1.msra.mxu0 %v1155
    %1191 = vmatprep.subr.mxu0 0.0
    %1192 = vmatpush1.msra.mxu0 %v1156
    %1193 = vmatprep.subr.mxu0 0.0
    %1194 = vmatpush1.msra.mxu0 %v1157
    %1195 = vmatprep.subr.mxu0 0.0
    %1196 = vmatpush1.msra.mxu0 %v1158
    %1197 = vmatprep.subr.mxu0 0.0
    %1198 = vmatpush1.msra.mxu0 %v1159
    %1199 = vmatprep.subr.mxu0 0.0
    %1200 = vmatpush1.msra.mxu0 0.0
    %1201 = vmatprep.subr.mxu0 0.0
    %1202 = vmatpush1.msra.mxu0 0.0
    %1203 = vmatprep.subr.mxu0 0.0
    %1204 = vmatpush1.msra.mxu0 0.0
    %1205 = vmatprep.subr.mxu0 0.0
    %1206 = vmatpush1.msra.mxu0 0.0
    %1207 = vmatprep.subr.mxu0 0.0
    %1208 = vmatpush1.msra.mxu0 0.0
    %1209 = vmatprep.subr.mxu0 0.0
    %1210 = vmatpush1.msra.mxu0 0.0
    %1211 = vmatprep.subr.mxu0 0.0
    %1212 = vmatpush1.msra.mxu0 0.0
    %1213 = vmatprep.subr.mxu0 0.0
    %1214 = vmatpush1.msra.mxu0 0.0
    %1215 = vmatprep.subr.mxu0 0.0
    %1216 = vmatpush1.msra.mxu0 0.0
    %1217 = vmatprep.subr.mxu0 0.0
    %1218 = vmatpush1.msra.mxu0 0.0
    %1219 = vmatprep.subr.mxu0 0.0
    %1220 = vmatpush1.msra.mxu0 0.0
    %1221 = vmatprep.subr.mxu0 0.0
    %1222 = vmatpush1.msra.mxu0 0.0
    %1223 = vmatprep.subr.mxu0 0.0
    %1224 = vmatpush1.msra.mxu0 0.0
    %1225 = vmatprep.subr.mxu0 0.0
    %1226 = vmatpush1.msra.mxu0 0.0
    %1227 = vmatprep.subr.mxu0 0.0
    %1228 = vmatpush1.msra.mxu0 0.0
    %1229 = vmatprep.subr.mxu0 0.0
    %1230 = vmatpush1.msra.mxu0 0.0
    %1231 = vmatprep.mubr.f32.mxu0 0.0
    %1232 = vmatmul.mubr.f32.gmra.mrb[0].mxu0 %v1143
    %v1233 = vpop.f32.mrb[0].mxu0
    %v1234 = vadd.f32 %v1165, %v1233
    %v1235 = vpop.f32.mrb[0].mxu0
    %1236 = vdwg.mxu0
    %v1237 = vadd.f32 %v1234, %v1039
    %s1238 = scalar_lea.vmem %s5, 1
    %v1239 = vld [vmem:[%s1238] sm:$0x1]
    %s1240 = scalar_lea.vmem %s6, 1
    %v1241 = vld [vmem:[%s1240] sm:$0x1]
    %v1242 = vsel %vm196, %v1237, 0.0
    %1243 = vadd.xlane.f32.xlu0 %v1242
    %v1244 = vpop.xlane.xlu0 %1243
    %v1245 = vmul.f32 %v1244, %v200
    %v1246 = vsub.f32 %v1237, %v1245
    %v1247 = vmul.f32 %v1246, %v1246
    %v1248 = vsel %vm196, %v1247, 0.0
    %1249 = vadd.xlane.f32.xlu0 %v1248
    %v1250 = vpop.xlane.xlu0 %1249
    %v1251 = vmul.f32 %v1250, %v200
    %v1252 = vadd.f32 %v1251, 1e-05
    %v1253 = vrsqrt.pop %v1252
    %v1254 = vmul.f32 %v1246, %v1253
    %v1256 = vlaneseq
    %v1257 = vshrl.u32 %v1256, 7
    %v1258 = vsub.s32 0, %v1257
    %v1259 = vrot.slane %v1239, %v1258
    %v1261 = vmul.f32 %v1254, %v1259
    %v1263 = vlaneseq
    %v1264 = vshrl.u32 %v1263, 7
    %v1265 = vsub.s32 0, %v1264
    %v1266 = vrot.slane %v1241, %v1265
    %v1268 = vadd.f32 %v1261, %v1266
    %s1269 = scalar_lea.vmem %s7, 32
    %v1270 = vld [vmem:[%s1269] sm:$0xff]
    %v1271 = vld [vmem:[%s1269 + $0x8] sm:$0xff]
    %v1272 = vld [vmem:[%s1269 + $0x10] sm:$0xff]
    %v1273 = vld [vmem:[%s1269 + $0x18] sm:$0xff]
    %s1274 = scalar_lea.vmem %s8, 1
    %v1275 = vld [vmem:[%s1274] sm:$0x1]
    %v1277 = vlaneseq
    %v1278 = vshrl.u32 %v1277, 7
    %v1279 = vsub.s32 0, %v1278
    %v1280 = vrot.slane %v1275, %v1279
    %v1283 = vsel %vm87, %v1268, 0
    %1285 = vmatprep.subr.mxu0 0.0
    %1286 = vmatpush1.msra.mxu0 %v1270
    %1287 = vmatprep.subr.mxu0 0.0
    %1288 = vmatpush1.msra.mxu0 %v1271
    %1289 = vmatprep.subr.mxu0 0.0
    %1290 = vmatpush1.msra.mxu0 %v1272
    %1291 = vmatprep.subr.mxu0 0.0
    %1292 = vmatpush1.msra.mxu0 %v1273
    %1293 = vmatprep.subr.mxu0 0.0
    %1294 = vmatpush1.msra.mxu0 0.0
    %1295 = vmatprep.subr.mxu0 0.0
    %1296 = vmatpush1.msra.mxu0 0.0
    %1297 = vmatprep.subr.mxu0 0.0
    %1298 = vmatpush1.msra.mxu0 0.0
    %1299 = vmatprep.subr.mxu0 0.0
    %1300 = vmatpush1.msra.mxu0 0.0
    %1301 = vmatprep.subr.mxu0 0.0
    %1302 = vmatpush1.msra.mxu0 0.0
    %1303 = vmatprep.subr.mxu0 0.0
    %1304 = vmatpush1.msra.mxu0 0.0
    %1305 = vmatprep.subr.mxu0 0.0
    %1306 = vmatpush1.msra.mxu0 0.0
    %1307 = vmatprep.subr.mxu0 0.0
    %1308 = vmatpush1.msra.mxu0 0.0
    %1309 = vmatprep.subr.mxu0 0.0
    %1310 = vmatpush1.msra.mxu0 0.0
    %1311 = vmatprep.subr.mxu0 0.0
    %1312 = vmatpush1.msra.mxu0 0.0
    %1313 = vmatprep.subr.mxu0 0.0
    %1314 = vmatpush1.msra.mxu0 0.0
    %1315 = vmatprep.subr.mxu0 0.0
    %1316 = vmatpush1.msra.mxu0 0.0
    %1317 = vmatprep.subr.mxu0 0.0
    %1318 = vmatpush1.msra.mxu0 0.0
    %1319 = vmatprep.subr.mxu0 0.0
    %1320 = vmatpush1.msra.mxu0 0.0
    %1321 = vmatprep.subr.mxu0 0.0
    %1322 = vmatpush1.msra.mxu0 0.0
    %1323 = vmatprep.subr.mxu0 0.0
    %1324 = vmatpush1.msra.mxu0 0.0
    %1325 = vmatprep.subr.mxu0 0.0
    %1326 = vmatpush1.msra.mxu0 0.0
    %1327 = vmatprep.subr.mxu0 0.0
    %1328 = vmatpush1.msra.mxu0 0.0
    %1329 = vmatprep.subr.mxu0 0.0
    %1330 = vmatpush1.msra.mxu0 0.0
    %1331 = vmatprep.subr.mxu0 0.0
    %1332 = vmatpush1.msra.mxu0 0.0
    %1333 = vmatprep.subr.mxu0 0.0
    %1334 = vmatpush1.msra.mxu0 0.0
    %1335 = vmatprep.subr.mxu0 0.0
    %1336 = vmatpush1.msra.mxu0 0.0
    %1337 = vmatprep.subr.mxu0 0.0
    %1338 = vmatpush1.msra.mxu0 0.0
    %1339 = vmatprep.subr.mxu0 0.0
    %1340 = vmatpush1.msra.mxu0 0.0
    %1341 = vmatprep.subr.mxu0 0.0
    %1342 = vmatpush1.msra.mxu0 0.0
    %1343 = vmatprep.subr.mxu0 0.0
    %1344 = vmatpush1.msra.mxu0 0.0
    %1345 = vmatprep.subr.mxu0 0.0
    %1346 = vmatpush1.msra.mxu0 0.0
    %1347 = vmatprep.subr.mxu0 0.0
    %1348 = vmatpush1.msra.mxu0 0.0
    %1349 = vmatprep.mubr.f32.mxu0 0.0
    %1350 = vmatmul.mubr.f32.gmra.mrb[0].mxu0 %v1283
    %v1351 = vpop.f32.mrb[0].mxu0
    %v1352 = vadd.f32 %v1280, %v1351
    %v1353 = vpop.f32.mrb[0].mxu0
    %1354 = vdwg.mxu0
    %1356 = vrot.lane.b32.xlu0 %v1352, 96
    %v1357 = vpop.permute.xlu0 %1356
    %v1359 = vmul.f32 %v1352, %v1357
    %v1361 = vsel %vm87, %v1359, 0
    %1363 = vmatprep.subr.mxu0 0.0
    %1364 = vmatpush1.msra.mxu0 %v189
    %1365 = vmatprep.subr.mxu0 0.0
    %1366 = vmatpush1.msra.mxu0 %v190
    %1367 = vmatprep.subr.mxu0 0.0
    %1368 = vmatpush1.msra.mxu0 %v191
    %1369 = vmatprep.subr.mxu0 0.0
    %1370 = vmatpush1.msra.mxu0 %v192
    %1371 = vmatprep.subr.mxu0 0.0
    %1372 = vmatpush1.msra.mxu0 0.0
    %1373 = vmatprep.subr.mxu0 0.0
    %1374 = vmatpush1.msra.mxu0 0.0
    %1375 = vmatprep.subr.mxu0 0.0
    %1376 = vmatpush1.msra.mxu0 0.0
    %1377 = vmatprep.subr.mxu0 0.0
    %1378 = vmatpush1.msra.mxu0 0.0
    %1379 = vmatprep.subr.mxu0 0.0
    %1380 = vmatpush1.msra.mxu0 0.0
    %1381 = vmatprep.subr.mxu0 0.0
    %1382 = vmatpush1.msra.mxu0 0.0
    %1383 = vmatprep.subr.mxu0 0.0
    %1384 = vmatpush1.msra.mxu0 0.0
    %1385 = vmatprep.subr.mxu0 0.0
    %1386 = vmatpush1.msra.mxu0 0.0
    %1387 = vmatprep.subr.mxu0 0.0
    %1388 = vmatpush1.msra.mxu0 0.0
    %1389 = vmatprep.subr.mxu0 0.0
    %1390 = vmatpush1.msra.mxu0 0.0
    %1391 = vmatprep.subr.mxu0 0.0
    %1392 = vmatpush1.msra.mxu0 0.0
    %1393 = vmatprep.subr.mxu0 0.0
    %1394 = vmatpush1.msra.mxu0 0.0
    %1395 = vmatprep.subr.mxu0 0.0
    %1396 = vmatpush1.msra.mxu0 0.0
    %1397 = vmatprep.subr.mxu0 0.0
    %1398 = vmatpush1.msra.mxu0 0.0
    %1399 = vmatprep.subr.mxu0 0.0
    %1400 = vmatpush1.msra.mxu0 0.0
    %1401 = vmatprep.subr.mxu0 0.0
    %1402 = vmatpush1.msra.mxu0 0.0
    %1403 = vmatprep.subr.mxu0 0.0
    %1404 = vmatpush1.msra.mxu0 0.0
    %1405 = vmatprep.subr.mxu0 0.0
    %1406 = vmatpush1.msra.mxu0 0.0
    %1407 = vmatprep.subr.mxu0 0.0
    %1408 = vmatpush1.msra.mxu0 0.0
    %1409 = vmatprep.subr.mxu0 0.0
    %1410 = vmatpush1.msra.mxu0 0.0
    %1411 = vmatprep.subr.mxu0 0.0
    %1412 = vmatpush1.msra.mxu0 0.0
    %1413 = vmatprep.subr.mxu0 0.0
    %1414 = vmatpush1.msra.mxu0 0.0
    %1415 = vmatprep.subr.mxu0 0.0
    %1416 = vmatpush1.msra.mxu0 0.0
    %1417 = vmatprep.subr.mxu0 0.0
    %1418 = vmatpush1.msra.mxu0 0.0
    %1419 = vmatprep.subr.mxu0 0.0
    %1420 = vmatpush1.msra.mxu0 0.0
    %1421 = vmatprep.subr.mxu0 0.0
    %1422 = vmatpush1.msra.mxu0 0.0
    %1423 = vmatprep.subr.mxu0 0.0
    %1424 = vmatpush1.msra.mxu0 0.0
    %1425 = vmatprep.subr.mxu0 0.0
    %1426 = vmatpush1.msra.mxu0 0.0
    %1427 = vmatprep.mubr.f32.mxu0 0.0
    %1428 = vmatmul.mubr.f32.gmra.mrb[0].mxu0 %v1361
    %v1429 = vpop.f32.mrb[0].mxu0
    %v1430 = vadd.f32 0.0, %v1429
    %v1431 = vpop.f32.mrb[0].mxu0
    %1432 = vdwg.mxu0
    %v1433 = vmul.f32 %v1430, 0.35355338
    %v1434 = vrot.slane %v1352, 3
    %1435 = vrot.lane.b32.xlu0 %v1434, 96
    %v1436 = vpop.permute.xlu0 %1435
    %v1438 = vmul.f32 %v1352, %v1436
    %v1440 = vsel %vm87, %v1438, 0
    %1442 = vmatprep.subr.mxu0 0.0
    %1443 = vmatpush1.msra.mxu0 %v189
    %1444 = vmatprep.subr.mxu0 0.0
    %1445 = vmatpush1.msra.mxu0 %v190
    %1446 = vmatprep.subr.mxu0 0.0
    %1447 = vmatpush1.msra.mxu0 %v191
    %1448 = vmatprep.subr.mxu0 0.0
    %1449 = vmatpush1.msra.mxu0 %v192
    %1450 = vmatprep.subr.mxu0 0.0
    %1451 = vmatpush1.msra.mxu0 0.0
    %1452 = vmatprep.subr.mxu0 0.0
    %1453 = vmatpush1.msra.mxu0 0.0
    %1454 = vmatprep.subr.mxu0 0.0
    %1455 = vmatpush1.msra.mxu0 0.0
    %1456 = vmatprep.subr.mxu0 0.0
    %1457 = vmatpush1.msra.mxu0 0.0
    %1458 = vmatprep.subr.mxu0 0.0
    %1459 = vmatpush1.msra.mxu0 0.0
    %1460 = vmatprep.subr.mxu0 0.0
    %1461 = vmatpush1.msra.mxu0 0.0
    %1462 = vmatprep.subr.mxu0 0.0
    %1463 = vmatpush1.msra.mxu0 0.0
    %1464 = vmatprep.subr.mxu0 0.0
    %1465 = vmatpush1.msra.mxu0 0.0
    %1466 = vmatprep.subr.mxu0 0.0
    %1467 = vmatpush1.msra.mxu0 0.0
    %1468 = vmatprep.subr.mxu0 0.0
    %1469 = vmatpush1.msra.mxu0 0.0
    %1470 = vmatprep.subr.mxu0 0.0
    %1471 = vmatpush1.msra.mxu0 0.0
    %1472 = vmatprep.subr.mxu0 0.0
    %1473 = vmatpush1.msra.mxu0 0.0
    %1474 = vmatprep.subr.mxu0 0.0
    %1475 = vmatpush1.msra.mxu0 0.0
    %1476 = vmatprep.subr.mxu0 0.0
    %1477 = vmatpush1.msra.mxu0 0.0
    %1478 = vmatprep.subr.mxu0 0.0
    %1479 = vmatpush1.msra.mxu0 0.0
    %1480 = vmatprep.subr.mxu0 0.0
    %1481 = vmatpush1.msra.mxu0 0.0
    %1482 = vmatprep.subr.mxu0 0.0
    %1483 = vmatpush1.msra.mxu0 0.0
    %1484 = vmatprep.subr.mxu0 0.0
    %1485 = vmatpush1.msra.mxu0 0.0
    %1486 = vmatprep.subr.mxu0 0.0
    %1487 = vmatpush1.msra.mxu0 0.0
    %1488 = vmatprep.subr.mxu0 0.0
    %1489 = vmatpush1.msra.mxu0 0.0
    %1490 = vmatprep.subr.mxu0 0.0
    %1491 = vmatpush1.msra.mxu0 0.0
    %1492 = vmatprep.subr.mxu0 0.0
    %1493 = vmatpush1.msra.mxu0 0.0
    %1494 = vmatprep.subr.mxu0 0.0
    %1495 = vmatpush1.msra.mxu0 0.0
    %1496 = vmatprep.subr.mxu0 0.0
    %1497 = vmatpush1.msra.mxu0 0.0
    %1498 = vmatprep.subr.mxu0 0.0
    %1499 = vmatpush1.msra.mxu0 0.0
    %1500 = vmatprep.subr.mxu0 0.0
    %1501 = vmatpush1.msra.mxu0 0.0
    %1502 = vmatprep.subr.mxu0 0.0
    %1503 = vmatpush1.msra.mxu0 0.0
    %1504 = vmatprep.subr.mxu0 0.0
    %1505 = vmatpush1.msra.mxu0 0.0
    %1506 = vmatprep.mubr.f32.mxu0 0.0
    %1507 = vmatmul.mubr.f32.gmra.mrb[0].mxu0 %v1440
    %v1508 = vpop.f32.mrb[0].mxu0
    %v1509 = vadd.f32 0.0, %v1508
    %v1510 = vpop.f32.mrb[0].mxu0
    %1511 = vdwg.mxu0
    %v1512 = vmul.f32 %v1509, 0.35355338
    %v1513 = vmax.f32 %v1433, %v1512
    %v1514 = vsub.f32 %v1433, %v1513
    %v1515 = vmul.f32 %v1514, 1.442695
    %v1516 = vpow.pop %v1515
    %v1517 = vsub.f32 %v1512, %v1513
    %v1518 = vmul.f32 %v1517, 1.442695
    %v1519 = vpow.pop %v1518
    %v1520 = vadd.f32 %v1516, %v1519
    %v1521 = vrcp.pop %v1520
    %v1522 = vmul.f32 %v1516, %v1521
    %v1524 = vsel %vm477, %v1522, 0
    %1526 = vmatprep.subr.mxu0 0.0
    %1527 = vmatpush1.msra.mxu0 %v482
    %1528 = vmatprep.subr.mxu0 0.0
    %1529 = vmatpush1.msra.mxu0 0.0
    %1530 = vmatprep.subr.mxu0 0.0
    %1531 = vmatpush1.msra.mxu0 0.0
    %1532 = vmatprep.subr.mxu0 0.0
    %1533 = vmatpush1.msra.mxu0 0.0
    %1534 = vmatprep.subr.mxu0 0.0
    %1535 = vmatpush1.msra.mxu0 0.0
    %1536 = vmatprep.subr.mxu0 0.0
    %1537 = vmatpush1.msra.mxu0 0.0
    %1538 = vmatprep.subr.mxu0 0.0
    %1539 = vmatpush1.msra.mxu0 0.0
    %1540 = vmatprep.subr.mxu0 0.0
    %1541 = vmatpush1.msra.mxu0 0.0
    %1542 = vmatprep.subr.mxu0 0.0
    %1543 = vmatpush1.msra.mxu0 0.0
    %1544 = vmatprep.subr.mxu0 0.0
    %1545 = vmatpush1.msra.mxu0 0.0
    %1546 = vmatprep.subr.mxu0 0.0
    %1547 = vmatpush1.msra.mxu0 0.0
    %1548 = vmatprep.subr.mxu0 0.0
    %1549 = vmatpush1.msra.mxu0 0.0
    %1550 = vmatprep.subr.mxu0 0.0
    %1551 = vmatpush1.msra.mxu0 0.0
    %1552 = vmatprep.subr.mxu0 0.0
    %1553 = vmatpush1.msra.mxu0 0.0
    %1554 = vmatprep.subr.mxu0 0.0
    %1555 = vmatpush1.msra.mxu0 0.0
    %1556 = vmatprep.subr.mxu0 0.0
    %1557 = vmatpush1.msra.mxu0 0.0
    %1558 = vmatprep.subr.mxu0 0.0
    %1559 = vmatpush1.msra.mxu0 0.0
    %1560 = vmatprep.subr.mxu0 0.0
    %1561 = vmatpush1.msra.mxu0 0.0
    %1562 = vmatprep.subr.mxu0 0.0
    %1563 = vmatpush1.msra.mxu0 0.0
    %1564 = vmatprep.subr.mxu0 0.0
    %1565 = vmatpush1.msra.mxu0 0.0
    %1566 = vmatprep.subr.mxu0 0.0
    %1567 = vmatpush1.msra.mxu0 0.0
    %1568 = vmatprep.subr.mxu0 0.0
    %1569 = vmatpush1.msra.mxu0 0.0
    %1570 = vmatprep.subr.mxu0 0.0
    %1571 = vmatpush1.msra.mxu0 0.0
    %1572 = vmatprep.subr.mxu0 0.0
    %1573 = vmatpush1.msra.mxu0 0.0
    %1574 = vmatprep.subr.mxu0 0.0
    %1575 = vmatpush1.msra.mxu0 0.0
    %1576 = vmatprep.subr.mxu0 0.0
    %1577 = vmatpush1.msra.mxu0 0.0
    %1578 = vmatprep.subr.mxu0 0.0
    %1579 = vmatpush1.msra.mxu0 0.0
    %1580 = vmatprep.subr.mxu0 0.0
    %1581 = vmatpush1.msra.mxu0 0.0
    %1582 = vmatprep.subr.mxu0 0.0
    %1583 = vmatpush1.msra.mxu0 0.0
    %1584 = vmatprep.subr.mxu0 0.0
    %1585 = vmatpush1.msra.mxu0 0.0
    %1586 = vmatprep.subr.mxu0 0.0
    %1587 = vmatpush1.msra.mxu0 0.0
    %1588 = vmatprep.subr.mxu0 0.0
    %1589 = vmatpush1.msra.mxu0 0.0
    %1590 = vmatprep.mubr.f32.mxu0 0.0
    %1591 = vmatmul.mubr.f32.gmra.mrb[0].mxu0 %v1524
    %v1592 = vpop.f32.mrb[0].mxu0
    %v1593 = vadd.f32 0.0, %v1592
    %v1594 = vpop.f32.mrb[0].mxu0
    %1595 = vdwg.mxu0
    %1596 = vrot.lane.b32.xlu0 %v1352, 64
    %v1597 = vpop.permute.xlu0 %1596
    %v1599 = vmul.f32 %v1593, %v1597
    %v1600 = vmul.f32 %v1519, %v1521
    %v1602 = vsel %vm477, %v1600, 0
    %1604 = vmatprep.subr.mxu0 0.0
    %1605 = vmatpush1.msra.mxu0 %v482
    %1606 = vmatprep.subr.mxu0 0.0
    %1607 = vmatpush1.msra.mxu0 0.0
    %1608 = vmatprep.subr.mxu0 0.0
    %1609 = vmatpush1.msra.mxu0 0.0
    %1610 = vmatprep.subr.mxu0 0.0
    %1611 = vmatpush1.msra.mxu0 0.0
    %1612 = vmatprep.subr.mxu0 0.0
    %1613 = vmatpush1.msra.mxu0 0.0
    %1614 = vmatprep.subr.mxu0 0.0
    %1615 = vmatpush1.msra.mxu0 0.0
    %1616 = vmatprep.subr.mxu0 0.0
    %1617 = vmatpush1.msra.mxu0 0.0
    %1618 = vmatprep.subr.mxu0 0.0
    %1619 = vmatpush1.msra.mxu0 0.0
    %1620 = vmatprep.subr.mxu0 0.0
    %1621 = vmatpush1.msra.mxu0 0.0
    %1622 = vmatprep.subr.mxu0 0.0
    %1623 = vmatpush1.msra.mxu0 0.0
    %1624 = vmatprep.subr.mxu0 0.0
    %1625 = vmatpush1.msra.mxu0 0.0
    %1626 = vmatprep.subr.mxu0 0.0
    %1627 = vmatpush1.msra.mxu0 0.0
    %1628 = vmatprep.subr.mxu0 0.0
    %1629 = vmatpush1.msra.mxu0 0.0
    %1630 = vmatprep.subr.mxu0 0.0
    %1631 = vmatpush1.msra.mxu0 0.0
    %1632 = vmatprep.subr.mxu0 0.0
    %1633 = vmatpush1.msra.mxu0 0.0
    %1634 = vmatprep.subr.mxu0 0.0
    %1635 = vmatpush1.msra.mxu0 0.0
    %1636 = vmatprep.subr.mxu0 0.0
    %1637 = vmatpush1.msra.mxu0 0.0
    %1638 = vmatprep.subr.mxu0 0.0
    %1639 = vmatpush1.msra.mxu0 0.0
    %1640 = vmatprep.subr.mxu0 0.0
    %1641 = vmatpush1.msra.mxu0 0.0
    %1642 = vmatprep.subr.mxu0 0.0
    %1643 = vmatpush1.msra.mxu0 0.0
    %1644 = vmatprep.subr.mxu0 0.0
    %1645 = vmatpush1.msra.mxu0 0.0
    %1646 = vmatprep.subr.mxu0 0.0
    %1647 = vmatpush1.msra.mxu0 0.0
    %1648 = vmatprep.subr.mxu0 0.0
    %1649 = vmatpush1.msra.mxu0 0.0
    %1650 = vmatprep.subr.mxu0 0.0
    %1651 = vmatpush1.msra.mxu0 0.0
    %1652 = vmatprep.subr.mxu0 0.0
    %1653 = vmatpush1.msra.mxu0 0.0
    %1654 = vmatprep.subr.mxu0 0.0
    %1655 = vmatpush1.msra.mxu0 0.0
    %1656 = vmatprep.subr.mxu0 0.0
    %1657 = vmatpush1.msra.mxu0 0.0
    %1658 = vmatprep.subr.mxu0 0.0
    %1659 = vmatpush1.msra.mxu0 0.0
    %1660 = vmatprep.subr.mxu0 0.0
    %1661 = vmatpush1.msra.mxu0 0.0
    %1662 = vmatprep.subr.mxu0 0.0
    %1663 = vmatpush1.msra.mxu0 0.0
    %1664 = vmatprep.subr.mxu0 0.0
    %1665 = vmatpush1.msra.mxu0 0.0
    %1666 = vmatprep.subr.mxu0 0.0
    %1667 = vmatpush1.msra.mxu0 0.0
    %1668 = vmatprep.mubr.f32.mxu0 0.0
    %1669 = vmatmul.mubr.f32.gmra.mrb[0].mxu0 %v1602
    %v1670 = vpop.f32.mrb[0].mxu0
    %v1671 = vadd.f32 0.0, %v1670
    %v1672 = vpop.f32.mrb[0].mxu0
    %1673 = vdwg.mxu0
    %1674 = vrot.lane.b32.xlu0 %v1434, 64
    %v1675 = vpop.permute.xlu0 %1674
    %v1677 = vmul.f32 %v1671, %v1675
    %v1678 = vadd.f32 %v1599, %v1677
    %v1679 = vrot.slane %v1352, 5
    %1680 = vrot.lane.b32.xlu0 %v1679, 96
    %v1681 = vpop.permute.xlu0 %1680
    %v1683 = vmul.f32 %v1352, %v1681
    %v1685 = vrot.slane %v1683, 3
    %v1686 = vsel %vm87, %v1685, 0
    %1688 = vmatprep.subr.mxu0 0.0
    %1689 = vmatpush1.msra.mxu0 %v189
    %1690 = vmatprep.subr.mxu0 0.0
    %1691 = vmatpush1.msra.mxu0 %v190
    %1692 = vmatprep.subr.mxu0 0.0
    %1693 = vmatpush1.msra.mxu0 %v191
    %1694 = vmatprep.subr.mxu0 0.0
    %1695 = vmatpush1.msra.mxu0 %v192
    %1696 = vmatprep.subr.mxu0 0.0
    %1697 = vmatpush1.msra.mxu0 0.0
    %1698 = vmatprep.subr.mxu0 0.0
    %1699 = vmatpush1.msra.mxu0 0.0
    %1700 = vmatprep.subr.mxu0 0.0
    %1701 = vmatpush1.msra.mxu0 0.0
    %1702 = vmatprep.subr.mxu0 0.0
    %1703 = vmatpush1.msra.mxu0 0.0
    %1704 = vmatprep.subr.mxu0 0.0
    %1705 = vmatpush1.msra.mxu0 0.0
    %1706 = vmatprep.subr.mxu0 0.0
    %1707 = vmatpush1.msra.mxu0 0.0
    %1708 = vmatprep.subr.mxu0 0.0
    %1709 = vmatpush1.msra.mxu0 0.0
    %1710 = vmatprep.subr.mxu0 0.0
    %1711 = vmatpush1.msra.mxu0 0.0
    %1712 = vmatprep.subr.mxu0 0.0
    %1713 = vmatpush1.msra.mxu0 0.0
    %1714 = vmatprep.subr.mxu0 0.0
    %1715 = vmatpush1.msra.mxu0 0.0
    %1716 = vmatprep.subr.mxu0 0.0
    %1717 = vmatpush1.msra.mxu0 0.0
    %1718 = vmatprep.subr.mxu0 0.0
    %1719 = vmatpush1.msra.mxu0 0.0
    %1720 = vmatprep.subr.mxu0 0.0
    %1721 = vmatpush1.msra.mxu0 0.0
    %1722 = vmatprep.subr.mxu0 0.0
    %1723 = vmatpush1.msra.mxu0 0.0
    %1724 = vmatprep.subr.mxu0 0.0
    %1725 = vmatpush1.msra.mxu0 0.0
    %1726 = vmatprep.subr.mxu0 0.0
    %1727 = vmatpush1.msra.mxu0 0.0
    %1728 = vmatprep.subr.mxu0 0.0
    %1729 = vmatpush1.msra.mxu0 0.0
    %1730 = vmatprep.subr.mxu0 0.0
    %1731 = vmatpush1.msra.mxu0 0.0
    %1732 = vmatprep.subr.mxu0 0.0
    %1733 = vmatpush1.msra.mxu0 0.0
    %1734 = vmatprep.subr.mxu0 0.0
    %1735 = vmatpush1.msra.mxu0 0.0
    %1736 = vmatprep.subr.mxu0 0.0
    %1737 = vmatpush1.msra.mxu0 0.0
    %1738 = vmatprep.subr.mxu0 0.0
    %1739 = vmatpush1.msra.mxu0 0.0
    %1740 = vmatprep.subr.mxu0 0.0
    %1741 = vmatpush1.msra.mxu0 0.0
    %1742 = vmatprep.subr.mxu0 0.0
    %1743 = vmatpush1.msra.mxu0 0.0
    %1744 = vmatprep.subr.mxu0 0.0
    %1745 = vmatpush1.msra.mxu0 0.0
    %1746 = vmatprep.subr.mxu0 0.0
    %1747 = vmatpush1.msra.mxu0 0.0
    %1748 = vmatprep.subr.mxu0 0.0
    %1749 = vmatpush1.msra.mxu0 0.0
    %1750 = vmatprep.subr.mxu0 0.0
    %1751 = vmatpush1.msra.mxu0 0.0
    %1752 = vmatprep.mubr.f32.mxu0 0.0
    %1753 = vmatmul.mubr.f32.gmra.mrb[0].mxu0 %v1686
    %v1754 = vpop.f32.mrb[0].mxu0
    %v1755 = vadd.f32 0.0, %v1754
    %v1756 = vpop.f32.mrb[0].mxu0
    %1757 = vdwg.mxu0
    %v1758 = vmul.f32 %v1755, 0.35355338
    %v1759 = vrot.slane %v1359, 3
    %v1760 = vsel %vm87, %v1759, 0
    %1762 = vmatprep.subr.mxu0 0.0
    %1763 = vmatpush1.msra.mxu0 %v189
    %1764 = vmatprep.subr.mxu0 0.0
    %1765 = vmatpush1.msra.mxu0 %v190
    %1766 = vmatprep.subr.mxu0 0.0
    %1767 = vmatpush1.msra.mxu0 %v191
    %1768 = vmatprep.subr.mxu0 0.0
    %1769 = vmatpush1.msra.mxu0 %v192
    %1770 = vmatprep.subr.mxu0 0.0
    %1771 = vmatpush1.msra.mxu0 0.0
    %1772 = vmatprep.subr.mxu0 0.0
    %1773 = vmatpush1.msra.mxu0 0.0
    %1774 = vmatprep.subr.mxu0 0.0
    %1775 = vmatpush1.msra.mxu0 0.0
    %1776 = vmatprep.subr.mxu0 0.0
    %1777 = vmatpush1.msra.mxu0 0.0
    %1778 = vmatprep.subr.mxu0 0.0
    %1779 = vmatpush1.msra.mxu0 0.0
    %1780 = vmatprep.subr.mxu0 0.0
    %1781 = vmatpush1.msra.mxu0 0.0
    %1782 = vmatprep.subr.mxu0 0.0
    %1783 = vmatpush1.msra.mxu0 0.0
    %1784 = vmatprep.subr.mxu0 0.0
    %1785 = vmatpush1.msra.mxu0 0.0
    %1786 = vmatprep.subr.mxu0 0.0
    %1787 = vmatpush1.msra.mxu0 0.0
    %1788 = vmatprep.subr.mxu0 0.0
    %1789 = vmatpush1.msra.mxu0 0.0
    %1790 = vmatprep.subr.mxu0 0.0
    %1791 = vmatpush1.msra.mxu0 0.0
    %1792 = vmatprep.subr.mxu0 0.0
    %1793 = vmatpush1.msra.mxu0 0.0
    %1794 = vmatprep.subr.mxu0 0.0
    %1795 = vmatpush1.msra.mxu0 0.0
    %1796 = vmatprep.subr.mxu0 0.0
    %1797 = vmatpush1.msra.mxu0 0.0
    %1798 = vmatprep.subr.mxu0 0.0
    %1799 = vmatpush1.msra.mxu0 0.0
    %1800 = vmatprep.subr.mxu0 0.0
    %1801 = vmatpush1.msra.mxu0 0.0
    %1802 = vmatprep.subr.mxu0 0.0
    %1803 = vmatpush1.msra.mxu0 0.0
    %1804 = vmatprep.subr.mxu0 0.0
    %1805 = vmatpush1.msra.mxu0 0.0
    %1806 = vmatprep.subr.mxu0 0.0
    %1807 = vmatpush1.msra.mxu0 0.0
    %1808 = vmatprep.subr.mxu0 0.0
    %1809 = vmatpush1.msra.mxu0 0.0
    %1810 = vmatprep.subr.mxu0 0.0
    %1811 = vmatpush1.msra.mxu0 0.0
    %1812 = vmatprep.subr.mxu0 0.0
    %1813 = vmatpush1.msra.mxu0 0.0
    %1814 = vmatprep.subr.mxu0 0.0
    %1815 = vmatpush1.msra.mxu0 0.0
    %1816 = vmatprep.subr.mxu0 0.0
    %1817 = vmatpush1.msra.mxu0 0.0
    %1818 = vmatprep.subr.mxu0 0.0
    %1819 = vmatpush1.msra.mxu0 0.0
    %1820 = vmatprep.subr.mxu0 0.0
    %1821 = vmatpush1.msra.mxu0 0.0
    %1822 = vmatprep.subr.mxu0 0.0
    %1823 = vmatpush1.msra.mxu0 0.0
    %1824 = vmatprep.subr.mxu0 0.0
    %1825 = vmatpush1.msra.mxu0 0.0
    %1826 = vmatprep.mubr.f32.mxu0 0.0
    %1827 = vmatmul.mubr.f32.gmra.mrb[0].mxu0 %v1760
    %v1828 = vpop.f32.mrb[0].mxu0
    %v1829 = vadd.f32 0.0, %v1828
    %v1830 = vpop.f32.mrb[0].mxu0
    %1831 = vdwg.mxu0
    %v1832 = vmul.f32 %v1829, 0.35355338
    %v1833 = vmax.f32 %v1758, %v1832
    %v1834 = vsub.f32 %v1758, %v1833
    %v1835 = vmul.f32 %v1834, 1.442695
    %v1836 = vpow.pop %v1835
    %v1837 = vsub.f32 %v1832, %v1833
    %v1838 = vmul.f32 %v1837, 1.442695
    %v1839 = vpow.pop %v1838
    %v1840 = vadd.f32 %v1836, %v1839
    %v1841 = vrcp.pop %v1840
    %v1842 = vmul.f32 %v1836, %v1841
    %v1844 = vsel %vm477, %v1842, 0
    %1846 = vmatprep.subr.mxu0 0.0
    %1847 = vmatpush1.msra.mxu0 %v482
    %1848 = vmatprep.subr.mxu0 0.0
    %1849 = vmatpush1.msra.mxu0 0.0
    %1850 = vmatprep.subr.mxu0 0.0
    %1851 = vmatpush1.msra.mxu0 0.0
    %1852 = vmatprep.subr.mxu0 0.0
    %1853 = vmatpush1.msra.mxu0 0.0
    %1854 = vmatprep.subr.mxu0 0.0
    %1855 = vmatpush1.msra.mxu0 0.0
    %1856 = vmatprep.subr.mxu0 0.0
    %1857 = vmatpush1.msra.mxu0 0.0
    %1858 = vmatprep.subr.mxu0 0.0
    %1859 = vmatpush1.msra.mxu0 0.0
    %1860 = vmatprep.subr.mxu0 0.0
    %1861 = vmatpush1.msra.mxu0 0.0
    %1862 = vmatprep.subr.mxu0 0.0
    %1863 = vmatpush1.msra.mxu0 0.0
    %1864 = vmatprep.subr.mxu0 0.0
    %1865 = vmatpush1.msra.mxu0 0.0
    %1866 = vmatprep.subr.mxu0 0.0
    %1867 = vmatpush1.msra.mxu0 0.0
    %1868 = vmatprep.subr.mxu0 0.0
    %1869 = vmatpush1.msra.mxu0 0.0
    %1870 = vmatprep.subr.mxu0 0.0
    %1871 = vmatpush1.msra.mxu0 0.0
    %1872 = vmatprep.subr.mxu0 0.0
    %1873 = vmatpush1.msra.mxu0 0.0
    %1874 = vmatprep.subr.mxu0 0.0
    %1875 = vmatpush1.msra.mxu0 0.0
    %1876 = vmatprep.subr.mxu0 0.0
    %1877 = vmatpush1.msra.mxu0 0.0
    %1878 = vmatprep.subr.mxu0 0.0
    %1879 = vmatpush1.msra.mxu0 0.0
    %1880 = vmatprep.subr.mxu0 0.0
    %1881 = vmatpush1.msra.mxu0 0.0
    %1882 = vmatprep.subr.mxu0 0.0
    %1883 = vmatpush1.msra.mxu0 0.0
    %1884 = vmatprep.subr.mxu0 0.0
    %1885 = vmatpush1.msra.mxu0 0.0
    %1886 = vmatprep.subr.mxu0 0.0
    %1887 = vmatpush1.msra.mxu0 0.0
    %1888 = vmatprep.subr.mxu0 0.0
    %1889 = vmatpush1.msra.mxu0 0.0
    %1890 = vmatprep.subr.mxu0 0.0
    %1891 = vmatpush1.msra.mxu0 0.0
    %1892 = vmatprep.subr.mxu0 0.0
    %1893 = vmatpush1.msra.mxu0 0.0
    %1894 = vmatprep.subr.mxu0 0.0
    %1895 = vmatpush1.msra.mxu0 0.0
    %1896 = vmatprep.subr.mxu0 0.0
    %1897 = vmatpush1.msra.mxu0 0.0
    %1898 = vmatprep.subr.mxu0 0.0
    %1899 = vmatpush1.msra.mxu0 0.0
    %1900 = vmatprep.subr.mxu0 0.0
    %1901 = vmatpush1.msra.mxu0 0.0
    %1902 = vmatprep.subr.mxu0 0.0
    %1903 = vmatpush1.msra.mxu0 0.0
    %1904 = vmatprep.subr.mxu0 0.0
    %1905 = vmatpush1.msra.mxu0 0.0
    %1906 = vmatprep.subr.mxu0 0.0
    %1907 = vmatpush1.msra.mxu0 0.0
    %1908 = vmatprep.subr.mxu0 0.0
    %1909 = vmatpush1.msra.mxu0 0.0
    %1910 = vmatprep.mubr.f32.mxu0 0.0
    %1911 = vmatmul.mubr.f32.gmra.mrb[0].mxu0 %v1844
    %v1912 = vpop.f32.mrb[0].mxu0
    %v1913 = vadd.f32 0.0, %v1912
    %v1914 = vpop.f32.mrb[0].mxu0
    %1915 = vdwg.mxu0
    %v1916 = vmul.f32 %v1913, %v1597
    %v1917 = vmul.f32 %v1839, %v1841
    %v1919 = vsel %vm477, %v1917, 0
    %1921 = vmatprep.subr.mxu0 0.0
    %1922 = vmatpush1.msra.mxu0 %v482
    %1923 = vmatprep.subr.mxu0 0.0
    %1924 = vmatpush1.msra.mxu0 0.0
    %1925 = vmatprep.subr.mxu0 0.0
    %1926 = vmatpush1.msra.mxu0 0.0
    %1927 = vmatprep.subr.mxu0 0.0
    %1928 = vmatpush1.msra.mxu0 0.0
    %1929 = vmatprep.subr.mxu0 0.0
    %1930 = vmatpush1.msra.mxu0 0.0
    %1931 = vmatprep.subr.mxu0 0.0
    %1932 = vmatpush1.msra.mxu0 0.0
    %1933 = vmatprep.subr.mxu0 0.0
    %1934 = vmatpush1.msra.mxu0 0.0
    %1935 = vmatprep.subr.mxu0 0.0
    %1936 = vmatpush1.msra.mxu0 0.0
    %1937 = vmatprep.subr.mxu0 0.0
    %1938 = vmatpush1.msra.mxu0 0.0
    %1939 = vmatprep.subr.mxu0 0.0
    %1940 = vmatpush1.msra.mxu0 0.0
    %1941 = vmatprep.subr.mxu0 0.0
    %1942 = vmatpush1.msra.mxu0 0.0
    %1943 = vmatprep.subr.mxu0 0.0
    %1944 = vmatpush1.msra.mxu0 0.0
    %1945 = vmatprep.subr.mxu0 0.0
    %1946 = vmatpush1.msra.mxu0 0.0
    %1947 = vmatprep.subr.mxu0 0.0
    %1948 = vmatpush1.msra.mxu0 0.0
    %1949 = vmatprep.subr.mxu0 0.0
    %1950 = vmatpush1.msra.mxu0 0.0
    %1951 = vmatprep.subr.mxu0 0.0
    %1952 = vmatpush1.msra.mxu0 0.0
    %1953 = vmatprep.subr.mxu0 0.0
    %1954 = vmatpush1.msra.mxu0 0.0
    %1955 = vmatprep.subr.mxu0 0.0
    %1956 = vmatpush1.msra.mxu0 0.0
    %1957 = vmatprep.subr.mxu0 0.0
    %1958 = vmatpush1.msra.mxu0 0.0
    %1959 = vmatprep.subr.mxu0 0.0
    %1960 = vmatpush1.msra.mxu0 0.0
    %1961 = vmatprep.subr.mxu0 0.0
    %1962 = vmatpush1.msra.mxu0 0.0
    %1963 = vmatprep.subr.mxu0 0.0
    %1964 = vmatpush1.msra.mxu0 0.0
    %1965 = vmatprep.subr.mxu0 0.0
    %1966 = vmatpush1.msra.mxu0 0.0
    %1967 = vmatprep.subr.mxu0 0.0
    %1968 = vmatpush1.msra.mxu0 0.0
    %1969 = vmatprep.subr.mxu0 0.0
    %1970 = vmatpush1.msra.mxu0 0.0
    %1971 = vmatprep.subr.mxu0 0.0
    %1972 = vmatpush1.msra.mxu0 0.0
    %1973 = vmatprep.subr.mxu0 0.0
    %1974 = vmatpush1.msra.mxu0 0.0
    %1975 = vmatprep.subr.mxu0 0.0
    %1976 = vmatpush1.msra.mxu0 0.0
    %1977 = vmatprep.subr.mxu0 0.0
    %1978 = vmatpush1.msra.mxu0 0.0
    %1979 = vmatprep.subr.mxu0 0.0
    %1980 = vmatpush1.msra.mxu0 0.0
    %1981 = vmatprep.subr.mxu0 0.0
    %1982 = vmatpush1.msra.mxu0 0.0
    %1983 = vmatprep.subr.mxu0 0.0
    %1984 = vmatpush1.msra.mxu0 0.0
    %1985 = vmatprep.mubr.f32.mxu0 0.0
    %1986 = vmatmul.mubr.f32.gmra.mrb[0].mxu0 %v1919
    %v1987 = vpop.f32.mrb[0].mxu0
    %v1988 = vadd.f32 0.0, %v1987
    %v1989 = vpop.f32.mrb[0].mxu0
    %1990 = vdwg.mxu0
    %v1991 = vmul.f32 %v1988, %v1675
    %v1992 = vadd.f32 %v1916, %v1991
    %v1994 = vrot.slane %v1992, 5
    %v1996 = vsel %vm185, %v1678, %v1994
    %s1997 = scalar_lea.vmem %s9, 32
    %v1998 = vld [vmem:[%s1997] sm:$0xff]
    %v1999 = vld [vmem:[%s1997 + $0x8] sm:$0xff]
    %v2000 = vld [vmem:[%s1997 + $0x10] sm:$0xff]
    %v2001 = vld [vmem:[%s1997 + $0x18] sm:$0xff]
    %s2002 = scalar_lea.vmem %s10, 1
    %v2003 = vld [vmem:[%s2002] sm:$0x1]
    %v2005 = vlaneseq
    %v2006 = vshrl.u32 %v2005, 7
    %v2007 = vsub.s32 0, %v2006
    %v2008 = vrot.slane %v2003, %v2007
    %v2011 = vsel %vm87, %v1996, 0
    %2013 = vmatprep.subr.mxu0 0.0
    %2014 = vmatpush1.msra.mxu0 %v1998
    %2015 = vmatprep.subr.mxu0 0.0
    %2016 = vmatpush1.msra.mxu0 %v1999
    %2017 = vmatprep.subr.mxu0 0.0
    %2018 = vmatpush1.msra.mxu0 %v2000
    %2019 = vmatprep.subr.mxu0 0.0
    %2020 = vmatpush1.msra.mxu0 %v2001
    %2021 = vmatprep.subr.mxu0 0.0
    %2022 = vmatpush1.msra.mxu0 0.0
    %2023 = vmatprep.subr.mxu0 0.0
    %2024 = vmatpush1.msra.mxu0 0.0
    %2025 = vmatprep.subr.mxu0 0.0
    %2026 = vmatpush1.msra.mxu0 0.0
    %2027 = vmatprep.subr.mxu0 0.0
    %2028 = vmatpush1.msra.mxu0 0.0
    %2029 = vmatprep.subr.mxu0 0.0
    %2030 = vmatpush1.msra.mxu0 0.0
    %2031 = vmatprep.subr.mxu0 0.0
    %2032 = vmatpush1.msra.mxu0 0.0
    %2033 = vmatprep.subr.mxu0 0.0
    %2034 = vmatpush1.msra.mxu0 0.0
    %2035 = vmatprep.subr.mxu0 0.0
    %2036 = vmatpush1.msra.mxu0 0.0
    %2037 = vmatprep.subr.mxu0 0.0
    %2038 = vmatpush1.msra.mxu0 0.0
    %2039 = vmatprep.subr.mxu0 0.0
    %2040 = vmatpush1.msra.mxu0 0.0
    %2041 = vmatprep.subr.mxu0 0.0
    %2042 = vmatpush1.msra.mxu0 0.0
    %2043 = vmatprep.subr.mxu0 0.0
    %2044 = vmatpush1.msra.mxu0 0.0
    %2045 = vmatprep.subr.mxu0 0.0
    %2046 = vmatpush1.msra.mxu0 0.0
    %2047 = vmatprep.subr.mxu0 0.0
    %2048 = vmatpush1.msra.mxu0 0.0
    %2049 = vmatprep.subr.mxu0 0.0
    %2050 = vmatpush1.msra.mxu0 0.0
    %2051 = vmatprep.subr.mxu0 0.0
    %2052 = vmatpush1.msra.mxu0 0.0
    %2053 = vmatprep.subr.mxu0 0.0
    %2054 = vmatpush1.msra.mxu0 0.0
    %2055 = vmatprep.subr.mxu0 0.0
    %2056 = vmatpush1.msra.mxu0 0.0
    %2057 = vmatprep.subr.mxu0 0.0
    %2058 = vmatpush1.msra.mxu0 0.0
    %2059 = vmatprep.subr.mxu0 0.0
    %2060 = vmatpush1.msra.mxu0 0.0
    %2061 = vmatprep.subr.mxu0 0.0
    %2062 = vmatpush1.msra.mxu0 0.0
    %2063 = vmatprep.subr.mxu0 0.0
    %2064 = vmatpush1.msra.mxu0 0.0
    %2065 = vmatprep.subr.mxu0 0.0
    %2066 = vmatpush1.msra.mxu0 0.0
    %2067 = vmatprep.subr.mxu0 0.0
    %2068 = vmatpush1.msra.mxu0 0.0
    %2069 = vmatprep.subr.mxu0 0.0
    %2070 = vmatpush1.msra.mxu0 0.0
    %2071 = vmatprep.subr.mxu0 0.0
    %2072 = vmatpush1.msra.mxu0 0.0
    %2073 = vmatprep.subr.mxu0 0.0
    %2074 = vmatpush1.msra.mxu0 0.0
    %2075 = vmatprep.subr.mxu0 0.0
    %2076 = vmatpush1.msra.mxu0 0.0
    %2077 = vmatprep.mubr.f32.mxu0 0.0
    %2078 = vmatmul.mubr.f32.gmra.mrb[0].mxu0 %v2011
    %v2079 = vpop.f32.mrb[0].mxu0
    %v2080 = vadd.f32 %v2008, %v2079
    %v2081 = vpop.f32.mrb[0].mxu0
    %2082 = vdwg.mxu0
    %v2083 = vadd.f32 %v2080, %v1237
    %v2084 = vsel %vm196, %v2083, 0.0
    %2085 = vadd.xlane.f32.xlu0 %v2084
    %v2086 = vpop.xlane.xlu0 %2085
    %v2087 = vmul.f32 %v2086, %v200
    %v2088 = vsub.f32 %v2083, %v2087
    %v2089 = vmul.f32 %v2088, %v2088
    %v2090 = vsel %vm196, %v2089, 0.0
    %2091 = vadd.xlane.f32.xlu0 %v2090
    %v2092 = vpop.xlane.xlu0 %2091
    %v2093 = vmul.f32 %v2092, %v200
    %v2094 = vadd.f32 %v2093, 1e-05
    %v2095 = vrsqrt.pop %v2094
    %v2096 = vmul.f32 %v2088, %v2095
    %v2097 = vmul.f32 %v2096, %v1259
    %v2098 = vadd.f32 %v2097, %v1266
    %s2099 = scalar_lea.vmem %s11, 32
    %v2100 = vld [vmem:[%s2099] sm:$0xff]
    %v2101 = vld [vmem:[%s2099 + $0x8] sm:$0xff]
    %v2102 = vld [vmem:[%s2099 + $0x10] sm:$0xff]
    %v2103 = vld [vmem:[%s2099 + $0x18] sm:$0xff]
    %s2104 = scalar_lea.vmem %s12, 1
    %v2105 = vld [vmem:[%s2104] sm:$0x1]
    %v2107 = vlaneseq
    %v2108 = vshrl.u32 %v2107, 7
    %v2109 = vsub.s32 0, %v2108
    %v2110 = vrot.slane %v2105, %v2109
    %v2113 = vsel %vm87, %v2098, 0
    %2115 = vmatprep.subr.mxu0 0.0
    %2116 = vmatpush1.msra.mxu0 %v2100
    %2117 = vmatprep.subr.mxu0 0.0
    %2118 = vmatpush1.msra.mxu0 %v2101
    %2119 = vmatprep.subr.mxu0 0.0
    %2120 = vmatpush1.msra.mxu0 %v2102
    %2121 = vmatprep.subr.mxu0 0.0
    %2122 = vmatpush1.msra.mxu0 %v2103
    %2123 = vmatprep.subr.mxu0 0.0
    %2124 = vmatpush1.msra.mxu0 0.0
    %2125 = vmatprep.subr.mxu0 0.0
    %2126 = vmatpush1.msra.mxu0 0.0
    %2127 = vmatprep.subr.mxu0 0.0
    %2128 = vmatpush1.msra.mxu0 0.0
    %2129 = vmatprep.subr.mxu0 0.0
    %2130 = vmatpush1.msra.mxu0 0.0
    %2131 = vmatprep.subr.mxu0 0.0
    %2132 = vmatpush1.msra.mxu0 0.0
    %2133 = vmatprep.subr.mxu0 0.0
    %2134 = vmatpush1.msra.mxu0 0.0
    %2135 = vmatprep.subr.mxu0 0.0
    %2136 = vmatpush1.msra.mxu0 0.0
    %2137 = vmatprep.subr.mxu0 0.0
    %2138 = vmatpush1.msra.mxu0 0.0
    %2139 = vmatprep.subr.mxu0 0.0
    %2140 = vmatpush1.msra.mxu0 0.0
    %2141 = vmatprep.subr.mxu0 0.0
    %2142 = vmatpush1.msra.mxu0 0.0
    %2143 = vmatprep.subr.mxu0 0.0
    %2144 = vmatpush1.msra.mxu0 0.0
    %2145 = vmatprep.subr.mxu0 0.0
    %2146 = vmatpush1.msra.mxu0 0.0
    %2147 = vmatprep.subr.mxu0 0.0
    %2148 = vmatpush1.msra.mxu0 0.0
    %2149 = vmatprep.subr.mxu0 0.0
    %2150 = vmatpush1.msra.mxu0 0.0
    %2151 = vmatprep.subr.mxu0 0.0
    %2152 = vmatpush1.msra.mxu0 0.0
    %2153 = vmatprep.subr.mxu0 0.0
    %2154 = vmatpush1.msra.mxu0 0.0
    %2155 = vmatprep.subr.mxu0 0.0
    %2156 = vmatpush1.msra.mxu0 0.0
    %2157 = vmatprep.subr.mxu0 0.0
    %2158 = vmatpush1.msra.mxu0 0.0
    %2159 = vmatprep.subr.mxu0 0.0
    %2160 = vmatpush1.msra.mxu0 0.0
    %2161 = vmatprep.subr.mxu0 0.0
    %2162 = vmatpush1.msra.mxu0 0.0
    %2163 = vmatprep.subr.mxu0 0.0
    %2164 = vmatpush1.msra.mxu0 0.0
    %2165 = vmatprep.subr.mxu0 0.0
    %2166 = vmatpush1.msra.mxu0 0.0
    %2167 = vmatprep.subr.mxu0 0.0
    %2168 = vmatpush1.msra.mxu0 0.0
    %2169 = vmatprep.subr.mxu0 0.0
    %2170 = vmatpush1.msra.mxu0 0.0
    %2171 = vmatprep.subr.mxu0 0.0
    %2172 = vmatpush1.msra.mxu0 0.0
    %2173 = vmatprep.subr.mxu0 0.0
    %2174 = vmatpush1.msra.mxu0 0.0
    %2175 = vmatprep.subr.mxu0 0.0
    %2176 = vmatpush1.msra.mxu0 0.0
    %2177 = vmatprep.subr.mxu0 0.0
    %2178 = vmatpush1.msra.mxu0 0.0
    %2179 = vmatprep.mubr.f32.mxu0 0.0
    %2180 = vmatmul.mubr.f32.gmra.mrb[0].mxu0 %v2113
    %v2181 = vpop.f32.mrb[0].mxu0
    %v2182 = vadd.f32 %v2110, %v2181
    %v2183 = vpop.f32.mrb[0].mxu0
    %2184 = vdwg.mxu0
    %v2185 = vmul.f32 %v2182, 0.5
    %v2186 = vmul.f32 %v2182, 0.70710677
    %v2187 = verf.f32.pop %v2186
    %v2188 = vadd.f32 %v2187, 1.0
    %v2189 = vmul.f32 %v2185, %v2188
    %s2190 = scalar_lea.vmem %s13, 128
    %v2191 = vld [vmem:[%s2190] sm:$0xff]
    %v2192 = vld [vmem:[%s2190 + $0x8] sm:$0xff]
    %v2193 = vld [vmem:[%s2190 + $0x10] sm:$0xff]
    %v2194 = vld [vmem:[%s2190 + $0x18] sm:$0xff]
    %v2195 = vld [vmem:[%s2190 + $0x20] sm:$0xff]
    %v2196 = vld [vmem:[%s2190 + $0x28] sm:$0xff]
    %v2197 = vld [vmem:[%s2190 + $0x30] sm:$0xff]
    %v2198 = vld [vmem:[%s2190 + $0x38] sm:$0xff]
    %v2199 = vld [vmem:[%s2190 + $0x40] sm:$0xff]
    %v2200 = vld [vmem:[%s2190 + $0x48] sm:$0xff]
    %v2201 = vld [vmem:[%s2190 + $0x50] sm:$0xff]
    %v2202 = vld [vmem:[%s2190 + $0x58] sm:$0xff]
    %v2203 = vld [vmem:[%s2190 + $0x60] sm:$0xff]
    %v2204 = vld [vmem:[%s2190 + $0x68] sm:$0xff]
    %v2205 = vld [vmem:[%s2190 + $0x70] sm:$0xff]
    %v2206 = vld [vmem:[%s2190 + $0x78] sm:$0xff]
    %s2207 = scalar_lea.vmem %s14, 1
    %v2208 = vld [vmem:[%s2207] sm:$0x1]
    %v2210 = vlaneseq
    %v2211 = vshrl.u32 %v2210, 7
    %v2212 = vsub.s32 0, %v2211
    %v2213 = vrot.slane %v2208, %v2212
    %2215 = vmatprep.subr.mxu0 0.0
    %2216 = vmatpush1.msra.mxu0 %v2191
    %2217 = vmatprep.subr.mxu0 0.0
    %2218 = vmatpush1.msra.mxu0 %v2192
    %2219 = vmatprep.subr.mxu0 0.0
    %2220 = vmatpush1.msra.mxu0 %v2193
    %2221 = vmatprep.subr.mxu0 0.0
    %2222 = vmatpush1.msra.mxu0 %v2194
    %2223 = vmatprep.subr.mxu0 0.0
    %2224 = vmatpush1.msra.mxu0 %v2195
    %2225 = vmatprep.subr.mxu0 0.0
    %2226 = vmatpush1.msra.mxu0 %v2196
    %2227 = vmatprep.subr.mxu0 0.0
    %2228 = vmatpush1.msra.mxu0 %v2197
    %2229 = vmatprep.subr.mxu0 0.0
    %2230 = vmatpush1.msra.mxu0 %v2198
    %2231 = vmatprep.subr.mxu0 0.0
    %2232 = vmatpush1.msra.mxu0 %v2199
    %2233 = vmatprep.subr.mxu0 0.0
    %2234 = vmatpush1.msra.mxu0 %v2200
    %2235 = vmatprep.subr.mxu0 0.0
    %2236 = vmatpush1.msra.mxu0 %v2201
    %2237 = vmatprep.subr.mxu0 0.0
    %2238 = vmatpush1.msra.mxu0 %v2202
    %2239 = vmatprep.subr.mxu0 0.0
    %2240 = vmatpush1.msra.mxu0 %v2203
    %2241 = vmatprep.subr.mxu0 0.0
    %2242 = vmatpush1.msra.mxu0 %v2204
    %2243 = vmatprep.subr.mxu0 0.0
    %2244 = vmatpush1.msra.mxu0 %v2205
    %2245 = vmatprep.subr.mxu0 0.0
    %2246 = vmatpush1.msra.mxu0 %v2206
    %2247 = vmatprep.subr.mxu0 0.0
    %2248 = vmatpush1.msra.mxu0 0.0
    %2249 = vmatprep.subr.mxu0 0.0
    %2250 = vmatpush1.msra.mxu0 0.0
    %2251 = vmatprep.subr.mxu0 0.0
    %2252 = vmatpush1.msra.mxu0 0.0
    %2253 = vmatprep.subr.mxu0 0.0
    %2254 = vmatpush1.msra.mxu0 0.0
    %2255 = vmatprep.subr.mxu0 0.0
    %2256 = vmatpush1.msra.mxu0 0.0
    %2257 = vmatprep.subr.mxu0 0.0
    %2258 = vmatpush1.msra.mxu0 0.0
    %2259 = vmatprep.subr.mxu0 0.0
    %2260 = vmatpush1.msra.mxu0 0.0
    %2261 = vmatprep.subr.mxu0 0.0
    %2262 = vmatpush1.msra.mxu0 0.0
    %2263 = vmatprep.subr.mxu0 0.0
    %2264 = vmatpush1.msra.mxu0 0.0
    %2265 = vmatprep.subr.mxu0 0.0
    %2266 = vmatpush1.msra.mxu0 0.0
    %2267 = vmatprep.subr.mxu0 0.0
    %2268 = vmatpush1.msra.mxu0 0.0
    %2269 = vmatprep.subr.mxu0 0.0
    %2270 = vmatpush1.msra.mxu0 0.0
    %2271 = vmatprep.subr.mxu0 0.0
    %2272 = vmatpush1.msra.mxu0 0.0
    %2273 = vmatprep.subr.mxu0 0.0
    %2274 = vmatpush1.msra.mxu0 0.0
    %2275 = vmatprep.subr.mxu0 0.0
    %2276 = vmatpush1.msra.mxu0 0.0
    %2277 = vmatprep.subr.mxu0 0.0
    %2278 = vmatpush1.msra.mxu0 0.0
    %2279 = vmatprep.mubr.f32.mxu0 0.0
    %2280 = vmatmul.mubr.f32.gmra.mrb[0].mxu0 %v2189
    %v2281 = vpop.f32.mrb[0].mxu0
    %v2282 = vadd.f32 %v2213, %v2281
    %v2283 = vpop.f32.mrb[0].mxu0
    %2284 = vdwg.mxu0
    %v2285 = vadd.f32 %v2282, %v2083
    %v2287 = vrot.slane %v2285, 2
    %v2289 = vsel %vm183, %v2285, %v2287
    %v2290 = vld [vmem:[%s15] sm:$0x1]
    %v2291 = vld [vmem:[%s16] sm:$0x1]
    %vm2292 = vcmask 254976
    %v2293 = vsel %vm2292, %v2289, 0.0
    %2294 = vadd.xlane.f32.xlu0 %v2293
    %v2295 = vpop.xlane.xlu0 %2294
    %v2296 = vmul.f32 %v2295, %v200
    %v2297 = vsub.f32 %v2289, %v2296
    %v2298 = vmul.f32 %v2297, %v2297
    %v2299 = vsel %vm2292, %v2298, 0.0
    %2300 = vadd.xlane.f32.xlu0 %v2299
    %v2301 = vpop.xlane.xlu0 %2300
    %v2302 = vmul.f32 %v2301, %v200
    %v2303 = vadd.f32 %v2302, 1e-05
    %v2304 = vrsqrt.pop %v2303
    %v2305 = vmul.f32 %v2297, %v2304
    %v2307 = vlaneseq
    %v2308 = vshrl.u32 %v2307, 7
    %v2309 = vsub.s32 0, %v2308
    %v2310 = vrot.slane %v2290, %v2309
    %v2312 = vmul.f32 %v2305, %v2310
    %v2314 = vlaneseq
    %v2315 = vshrl.u32 %v2314, 7
    %v2316 = vsub.s32 0, %v2315
    %v2317 = vrot.slane %v2291, %v2316
    %v2319 = vadd.f32 %v2312, %v2317
    %v2320 = vld [vmem:[%s17] sm:$0xff]
    %v2321 = vld [vmem:[%s17 + $0x8] sm:$0xff]
    %v2322 = vld [vmem:[%s17 + $0x10] sm:$0xff]
    %v2323 = vld [vmem:[%s17 + $0x18] sm:$0xff]
    %v2324 = vld [vmem:[%s18] sm:$0x1]
    %v2326 = vlaneseq
    %v2327 = vshrl.u32 %v2326, 7
    %v2328 = vsub.s32 0, %v2327
    %v2329 = vrot.slane %v2324, %v2328
    %v2332 = vsel %vm87, %v2319, 0
    %2334 = vmatprep.subr.mxu0 0.0
    %2335 = vmatpush1.msra.mxu0 %v2320
    %2336 = vmatprep.subr.mxu0 0.0
    %2337 = vmatpush1.msra.mxu0 %v2321
    %2338 = vmatprep.subr.mxu0 0.0
    %2339 = vmatpush1.msra.mxu0 %v2322
    %2340 = vmatprep.subr.mxu0 0.0
    %2341 = vmatpush1.msra.mxu0 %v2323
    %2342 = vmatprep.subr.mxu0 0.0
    %2343 = vmatpush1.msra.mxu0 0.0
    %2344 = vmatprep.subr.mxu0 0.0
    %2345 = vmatpush1.msra.mxu0 0.0
    %2346 = vmatprep.subr.mxu0 0.0
    %2347 = vmatpush1.msra.mxu0 0.0
    %2348 = vmatprep.subr.mxu0 0.0
    %2349 = vmatpush1.msra.mxu0 0.0
    %2350 = vmatprep.subr.mxu0 0.0
    %2351 = vmatpush1.msra.mxu0 0.0
    %2352 = vmatprep.subr.mxu0 0.0
    %2353 = vmatpush1.msra.mxu0 0.0
    %2354 = vmatprep.subr.mxu0 0.0
    %2355 = vmatpush1.msra.mxu0 0.0
    %2356 = vmatprep.subr.mxu0 0.0
    %2357 = vmatpush1.msra.mxu0 0.0
    %2358 = vmatprep.subr.mxu0 0.0
    %2359 = vmatpush1.msra.mxu0 0.0
    %2360 = vmatprep.subr.mxu0 0.0
    %2361 = vmatpush1.msra.mxu0 0.0
    %2362 = vmatprep.subr.mxu0 0.0
    %2363 = vmatpush1.msra.mxu0 0.0
    %2364 = vmatprep.subr.mxu0 0.0
    %2365 = vmatpush1.msra.mxu0 0.0
    %2366 = vmatprep.subr.mxu0 0.0
    %2367 = vmatpush1.msra.mxu0 0.0
    %2368 = vmatprep.subr.mxu0 0.0
    %2369 = vmatpush1.msra.mxu0 0.0
    %2370 = vmatprep.subr.mxu0 0.0
    %2371 = vmatpush1.msra.mxu0 0.0
    %2372 = vmatprep.subr.mxu0 0.0
    %2373 = vmatpush1.msra.mxu0 0.0
    %2374 = vmatprep.subr.mxu0 0.0
    %2375 = vmatpush1.msra.mxu0 0.0
    %2376 = vmatprep.subr.mxu0 0.0
    %2377 = vmatpush1.msra.mxu0 0.0
    %2378 = vmatprep.subr.mxu0 0.0
    %2379 = vmatpush1.msra.mxu0 0.0
    %2380 = vmatprep.subr.mxu0 0.0
    %2381 = vmatpush1.msra.mxu0 0.0
    %2382 = vmatprep.subr.mxu0 0.0
    %2383 = vmatpush1.msra.mxu0 0.0
    %2384 = vmatprep.subr.mxu0 0.0
    %2385 = vmatpush1.msra.mxu0 0.0
    %2386 = vmatprep.subr.mxu0 0.0
    %2387 = vmatpush1.msra.mxu0 0.0
    %2388 = vmatprep.subr.mxu0 0.0
    %2389 = vmatpush1.msra.mxu0 0.0
    %2390 = vmatprep.subr.mxu0 0.0
    %2391 = vmatpush1.msra.mxu0 0.0
    %2392 = vmatprep.subr.mxu0 0.0
    %2393 = vmatpush1.msra.mxu0 0.0
    %2394 = vmatprep.subr.mxu0 0.0
    %2395 = vmatpush1.msra.mxu0 0.0
    %2396 = vmatprep.subr.mxu0 0.0
    %2397 = vmatpush1.msra.mxu0 0.0
    %2398 = vmatprep.mubr.f32.mxu0 0.0
    %2399 = vmatmul.mubr.f32.gmra.mrb[0].mxu0 %v2332
    %v2400 = vpop.f32.mrb[0].mxu0
    %v2401 = vadd.f32 %v2329, %v2400
    %v2402 = vpop.f32.mrb[0].mxu0
    %2403 = vdwg.mxu0
    %v2404 = vld [vmem:[%s19] sm:$0xff]
    %v2405 = vld [vmem:[%s19 + $0x8] sm:$0xff]
    %v2406 = vld [vmem:[%s19 + $0x10] sm:$0xff]
    %v2407 = vld [vmem:[%s19 + $0x18] sm:$0xff]
    %v2408 = vld [vmem:[%s20] sm:$0x1]
    %v2410 = vlaneseq
    %v2411 = vshrl.u32 %v2410, 7
    %v2412 = vsub.s32 0, %v2411
    %v2413 = vrot.slane %v2408, %v2412
    %v2416 = vsel %vm87, %v2401, 0
    %2418 = vmatprep.subr.mxu0 0.0
    %2419 = vmatpush1.msra.mxu0 %v2404
    %2420 = vmatprep.subr.mxu0 0.0
    %2421 = vmatpush1.msra.mxu0 %v2405
    %2422 = vmatprep.subr.mxu0 0.0
    %2423 = vmatpush1.msra.mxu0 %v2406
    %2424 = vmatprep.subr.mxu0 0.0
    %2425 = vmatpush1.msra.mxu0 %v2407
    %2426 = vmatprep.subr.mxu0 0.0
    %2427 = vmatpush1.msra.mxu0 0.0
    %2428 = vmatprep.subr.mxu0 0.0
    %2429 = vmatpush1.msra.mxu0 0.0
    %2430 = vmatprep.subr.mxu0 0.0
    %2431 = vmatpush1.msra.mxu0 0.0
    %2432 = vmatprep.subr.mxu0 0.0
    %2433 = vmatpush1.msra.mxu0 0.0
    %2434 = vmatprep.subr.mxu0 0.0
    %2435 = vmatpush1.msra.mxu0 0.0
    %2436 = vmatprep.subr.mxu0 0.0
    %2437 = vmatpush1.msra.mxu0 0.0
    %2438 = vmatprep.subr.mxu0 0.0
    %2439 = vmatpush1.msra.mxu0 0.0
    %2440 = vmatprep.subr.mxu0 0.0
    %2441 = vmatpush1.msra.mxu0 0.0
    %2442 = vmatprep.subr.mxu0 0.0
    %2443 = vmatpush1.msra.mxu0 0.0
    %2444 = vmatprep.subr.mxu0 0.0
    %2445 = vmatpush1.msra.mxu0 0.0
    %2446 = vmatprep.subr.mxu0 0.0
    %2447 = vmatpush1.msra.mxu0 0.0
    %2448 = vmatprep.subr.mxu0 0.0
    %2449 = vmatpush1.msra.mxu0 0.0
    %2450 = vmatprep.subr.mxu0 0.0
    %2451 = vmatpush1.msra.mxu0 0.0
    %2452 = vmatprep.subr.mxu0 0.0
    %2453 = vmatpush1.msra.mxu0 0.0
    %2454 = vmatprep.subr.mxu0 0.0
    %2455 = vmatpush1.msra.mxu0 0.0
    %2456 = vmatprep.subr.mxu0 0.0
    %2457 = vmatpush1.msra.mxu0 0.0
    %2458 = vmatprep.subr.mxu0 0.0
    %2459 = vmatpush1.msra.mxu0 0.0
    %2460 = vmatprep.subr.mxu0 0.0
    %2461 = vmatpush1.msra.mxu0 0.0
    %2462 = vmatprep.subr.mxu0 0.0
    %2463 = vmatpush1.msra.mxu0 0.0
    %2464 = vmatprep.subr.mxu0 0.0
    %2465 = vmatpush1.msra.mxu0 0.0
    %2466 = vmatprep.subr.mxu0 0.0
    %2467 = vmatpush1.msra.mxu0 0.0
    %2468 = vmatprep.subr.mxu0 0.0
    %2469 = vmatpush1.msra.mxu0 0.0
    %2470 = vmatprep.subr.mxu0 0.0
    %2471 = vmatpush1.msra.mxu0 0.0
    %2472 = vmatprep.subr.mxu0 0.0
    %2473 = vmatpush1.msra.mxu0 0.0
    %2474 = vmatprep.subr.mxu0 0.0
    %2475 = vmatpush1.msra.mxu0 0.0
    %2476 = vmatprep.subr.mxu0 0.0
    %2477 = vmatpush1.msra.mxu0 0.0
    %2478 = vmatprep.subr.mxu0 0.0
    %2479 = vmatpush1.msra.mxu0 0.0
    %2480 = vmatprep.subr.mxu0 0.0
    %2481 = vmatpush1.msra.mxu0 0.0
    %2482 = vmatprep.mubr.f32.mxu0 0.0
    %2483 = vmatmul.mubr.f32.gmra.mrb[0].mxu0 %v2416
    %v2484 = vpop.f32.mrb[0].mxu0
    %v2485 = vadd.f32 %v2413, %v2484
    %v2486 = vpop.f32.mrb[0].mxu0
    %2487 = vdwg.mxu0
    %vm2488 = vcmask 74752
    %2489 = vst.msk [vmem:[#allocation2] sm:$0x3] %vm2488, %v2485
    // Predicated region
    $region94: #{vit_forward_pallas.1} parent=1 // pred_check
      _
    $region95: #{vit_forward_pallas.1} parent=1 // pred_check_branch
      %2491 = sbr.rel (0) target = $region97
    $region96: #{vit_forward_pallas.1} parent=1 // pred_region
      %s2493 = ssub.s32 32, 32
      %2494 = vsyncadd [#allocation3], %s2493
      %s2496 = sshll.u32 [#allocation2], 4
      %s2497 = int_to_ptr.vmem [resolvable:$true] %s2496
      %2499 = dma.vmem_to_hbm [thread:$0]  %s2497, 32, %s23, [#allocation3]
    $region97: #{vit_forward_pallas.1} parent=1 // pred_fallthru
      _
    // Predicated region
    $region98: #{vit_forward_pallas.1} parent=1 // pred_check
      _
    $region99: #{vit_forward_pallas.1} parent=1 // pred_check_branch
      %2501 = sbr.rel (0) target = $region101
    $region100: #{vit_forward_pallas.1} parent=1 // pred_region
      %2502 = dma.done [#allocation3], 32
    $region101: #{vit_forward_pallas.1} parent=1 // pred_fallthru
      _
    %2503 = vsyncpa [#allocation3], 1

</llo_original>
